<compile_context>
chip_gen: v5e
topology: v5e:2x2
jax: 0.10.0
libtpu: 0.0.40
codegen_flags: <defaults>
</compile_context>

<pallas_src>
import functools

import jax
import jax.numpy as jnp
from jax import lax
from jax.experimental import pallas as pl
from jax.experimental.pallas import tpu as pltpu


# ----------------------------- fused Pallas kernel ---------------------------

def _fused_net_kernel(xc_ref, w1_ref, b1_ref, w2_ref, b2_ref,
                      w3_ref, bf_ref, wo_ref, bo_ref,
                      o_ref,
                      a1_ref, cat_ref, a2_ref, m_ref, flat_ref,
                      *, W, HW, HP, WP, C1, C2):
    """Whole forward pass on VMEM-resident data.

    xc_ref  : [R1, 9*Cin]   conv1 im2col (rows = (b,h,w) grid rows, stride W)
    w1_ref  : [9*Cin, C1]   conv1 weight, rows ordered (tap, cin)
    w2_ref  : [9*C1, C2]    conv2 weight, rows ordered (tap, c1)
    w3_ref  : [flat, 128]   fc1 weight, rows permuted to (b, ph, pw, c)
    a1_ref  : [R1, C1]      conv1 output embedded in the input (stride-W) grid
    cat_ref : [R2, 9*C1]    conv2 im2col assembled in VMEM
    a2_ref  : [R2, C2]      conv2 output embedded in the input grid
    m_ref   : [Rm, C2]      4-way shifted max (pool values live at strided rows)
    flat_ref: [1, flat]     lane-flat pooled activations (torch.flatten order, permuted)
    """
    R2 = a2_ref.shape[0]
    Rm = m_ref.shape[0]

    # ---- conv1: ONE K=9*Cin matmul, bias + ReLU, single store ---------------
    a1 = jnp.dot(xc_ref[...], w1_ref[...], preferred_element_type=jnp.float32)
    a1_ref[...] = jnp.maximum(a1 + b1_ref[...], 0.0)

    # ---- conv2: assemble im2col in VMEM (9 lane-slab stores), ONE K=144 dot -
    for t in range(9):
        off = (t // 3) * W + (t % 3)
        cat_ref[:, t * C1:(t + 1) * C1] = a1_ref[off:off + R2, :]
    a2 = jnp.dot(cat_ref[...], w2_ref[...], preferred_element_type=jnp.float32)
    a2_ref[...] = jnp.maximum(a2 + b2_ref[...], 0.0)

    # ---- MaxPool2d(2,2): vectorized 4-way shifted slab max ------------------
    m_ref[...] = jnp.maximum(
        jnp.maximum(a2_ref[0:Rm, :], a2_ref[1:Rm + 1, :]),
        jnp.maximum(a2_ref[W:Rm + W, :], a2_ref[W + 1:Rm + W + 1, :]))

    # ---- torch.flatten: scatter pooled rows into one lane-flat row ----------
    n_pool = flat_ref.shape[1] // C2
    for p in range(n_pool):
        b, rem = divmod(p, HP * WP)
        ph, pw = divmod(rem, WP)
        r0 = b * HW + (2 * ph) * W + (2 * pw)
        flat_ref[0:1, p * C2:(p + 1) * C2] = m_ref[r0:r0 + 1, :]

    # ---- fc1 as ONE K=flat_dim matmul + ReLU ---------------------------------
    h = jnp.maximum(
        jnp.dot(flat_ref[...], w3_ref[...], preferred_element_type=jnp.float32)
        + bf_ref[...], 0.0)

    # TODO(synk): nn.Dropout(p=0.7) is identity in eval mode; training-mode parity
    # would need pltpu.prng_seed/prng_random_bits masking + 1/(1-p) scaling.

    # ---- op_fcl ---------------------------------------------------------------
    o_ref[...] = (jnp.dot(h, wo_ref[...], preferred_element_type=jnp.float32)
                  + bo_ref[...]).astype(o_ref.dtype)


# ----------------------------- wrapper ---------------------------------------

def _full(shape):
    zeros = (0,) * len(shape)
    return pl.BlockSpec(shape, lambda i: zeros)


def net_forward(x_nchw, params):
    x_nchw = x_nchw.astype(jnp.float32)
    B, Cin, H, W = x_nchw.shape
    C1, C2 = 16, 32
    H1, W1 = H - 2, W - 2            # after conv1 (valid, stride 1)
    H2, W2 = H1 - 2, W1 - 2          # after conv2
    HP, WP = H2 // 2, W2 // 2        # after MaxPool2d(2,2), floor mode
    flat_dim = B * C2 * HP * WP      # torch.flatten includes the batch dim
    NC = params["op_b"].shape[0]
    assert params["fc1_w"].shape == (flat_dim, 128)

    HW = H * W
    # Rows of each grid-embedded activation that downstream stages actually read.
    R2 = (B - 1) * HW + (2 * HP - 1) * W + 2 * WP                 # conv2 rows needed
    R1 = R2 + 2 * W + 2                                           # conv1 rows needed
    Rm = (B - 1) * HW + 2 * (HP - 1) * W + 2 * (WP - 1) + 1       # pooled-max rows
    assert R1 + 2 * W + 2 <= B * HW                               # conv1 im2col bound

    # --- layout prep: only non-Pallas ops (all fused under jit) --------------
    x2 = jnp.transpose(x_nchw, (0, 2, 3, 1)).reshape(B * HW, Cin)
    offs = [(t // 3) * W + (t % 3) for t in range(9)]
    xc = jnp.concatenate([x2[o:o + R1, :] for o in offs], axis=1)  # [R1, 9*Cin]
    w1 = jnp.transpose(params["conv1_w"], (2, 3, 1, 0)).reshape(9 * Cin, C1)
    w2 = jnp.transpose(params["conv2_w"], (2, 3, 1, 0)).reshape(9 * C1, C2)
    # fc1 rows re-ordered from torch.flatten's (b, c, ph, pw) to (b, ph, pw, c).
    w3 = (params["fc1_w"].reshape(B, C2, HP, WP, 128)
          .transpose(0, 2, 3, 1, 4).reshape(flat_dim, 128))
    b1 = params["conv1_b"][None, :]
    b2 = params["conv2_b"][None, :]
    bf = params["fc1_b"][None, :]
    wo = params["op_w"]
    bo = params["op_b"][None, :]

    kernel = functools.partial(_fused_net_kernel, W=W, HW=HW,
                               HP=HP, WP=WP, C1=C1, C2=C2)
    out = pl.pallas_call(
        kernel,
        out_shape=jax.ShapeDtypeStruct((1, NC), jnp.float32),
        grid=(1,),
        in_specs=[_full((R1, 9 * Cin)),
                  _full((9 * Cin, C1)), _full((1, C1)),
                  _full((9 * C1, C2)), _full((1, C2)),
                  _full((flat_dim, 128)), _full((1, 128)),
                  _full((128, NC)), _full((1, NC))],
        out_specs=_full((1, NC)),
        scratch_shapes=[pltpu.VMEM((R1, C1), jnp.float32),
                        pltpu.VMEM((R2, 9 * C1), jnp.float32),
                        pltpu.VMEM((R2, C2), jnp.float32),
                        pltpu.VMEM((Rm, C2), jnp.float32),
                        pltpu.VMEM((1, flat_dim), jnp.float32)],
        compiler_params=pltpu.CompilerParams(
            dimension_semantics=("arbitrary",)),
    )(xc, w1, b1, w2, b2, w3, bf, wo, bo)
    return out[0]                                              # [no_classes]


# ----------------------------- pure-JAX reference -----------------------------

def reference_forward(x, params):
    hi = lax.Precision.HIGHEST
    y = lax.conv_general_dilated(x, params["conv1_w"], (1, 1), "VALID",
                                 dimension_numbers=("NCHW", "OIHW", "NCHW"),
                                 precision=hi)
    y = jax.nn.relu(y + params["conv1_b"][None, :, None, None])
    y = lax.conv_general_dilated(y, params["conv2_w"], (1, 1), "VALID",
                                 dimension_numbers=("NCHW", "OIHW", "NCHW"),
                                 precision=hi)
    y = jax.nn.relu(y + params["conv2_b"][None, :, None, None])
    y = lax.reduce_window(y, -jnp.inf, lax.max, (1, 1, 2, 2), (1, 1, 2, 2), "VALID")
    f = y.reshape(-1)                                          # torch.flatten
    h = jax.nn.relu(jnp.dot(f, params["fc1_w"], precision=hi) + params["fc1_b"])
    return jnp.dot(h, params["op_w"], precision=hi) + params["op_b"]


# ----------------------------- parameter init --------------------------------

def _uniform(key, shape, fan_in):
    bound = 1.0 / jnp.sqrt(jnp.float32(fan_in))
    return jax.random.uniform(key, shape, jnp.float32, -bound, bound)


def init_params(key, *, batch, in_h, in_w, no_classes):
    h1, w1 = in_h - 2, in_w - 2
    h2, w2 = h1 - 2, w1 - 2
    hp, wp = h2 // 2, w2 // 2
    flat_dim = batch * 32 * hp * wp   # torch.flatten includes the batch dim

    ks = jax.random.split(key, 8)
    return {
        "conv1_w": _uniform(ks[0], (16, 3, 3, 3), 3 * 3 * 3),
        "conv1_b": _uniform(ks[1], (16,), 3 * 3 * 3),
        "conv2_w": _uniform(ks[2], (32, 16, 3, 3), 16 * 3 * 3),
        "conv2_b": _uniform(ks[3], (32,), 16 * 3 * 3),
        # fc1 is created dynamically in the torch forward; resolved statically
        # here and stored in math orientation [in, out].
        "fc1_w": _uniform(ks[4], (flat_dim, 128), flat_dim),
        "fc1_b": _uniform(ks[5], (128,), flat_dim),
        "op_w": _uniform(ks[6], (128, no_classes), 128),
        "op_b": _uniform(ks[7], (no_classes,), 128),
    }


# ----------------------------- main -------------------------------------------

if __name__ == "__main__":
    key = jax.random.PRNGKey(0)
    kx, kp = jax.random.split(key)

    B, C, H, W = 2, 3, 12, 12          # conv/pool give a 4x4x32 pooled map
    NO_CLASSES = 10                    # EuroSAT ('2750') has 10 classes

    x = jax.random.normal(kx, (B, C, H, W), jnp.float32)
    params = init_params(kp, batch=B, in_h=H, in_w=W, no_classes=NO_CLASSES)

    out = jax.jit(net_forward)(x, params)
    jax.block_until_ready(out)
    assert out.shape == (NO_CLASSES,)

    ref = reference_forward(x, params)
    max_err = float(jnp.max(jnp.abs(out - ref)))
    assert max_err < 5e-2, f"kernel/reference mismatch: {max_err}"

    print("KERNEL_OK")
</pallas_src>

<mosaic_0001>
module attributes {stable_mosaic.version = 11 : i64} {
  func.func @_fused_net_kernel(%arg0: i32, %arg1: memref<262x27xf32, #tpu.memory_space<vmem>>, %arg2: memref<27x16xf32, #tpu.memory_space<vmem>>, %arg3: memref<1x16xf32, #tpu.memory_space<vmem>>, %arg4: memref<144x32xf32, #tpu.memory_space<vmem>>, %arg5: memref<1x32xf32, #tpu.memory_space<vmem>>, %arg6: memref<1024x128xf32, #tpu.memory_space<vmem>>, %arg7: memref<1x128xf32, #tpu.memory_space<vmem>>, %arg8: memref<128x10xf32, #tpu.memory_space<vmem>>, %arg9: memref<1x10xf32, #tpu.memory_space<vmem>>, %arg10: memref<1x10xf32, #tpu.memory_space<vmem>>, %arg11: memref<262x16xf32, #tpu.memory_space<vmem>>, %arg12: memref<236x144xf32, #tpu.memory_space<vmem>>, %arg13: memref<236x32xf32, #tpu.memory_space<vmem>>, %arg14: memref<223x32xf32, #tpu.memory_space<vmem>>, %arg15: memref<1x1024xf32, #tpu.memory_space<vmem>>) attributes {dimension_semantics = [#tpu.dimension_semantics<arbitrary>], iteration_bounds = array<i64: 1>, scalar_prefetch = 0 : i64, scratch_operands = 5 : i64, tpu.core_type = #tpu.core_type<tc>, window_params = [{pipeline_mode = #tpu.pipeline_mode<synchronous>, transform_indices = @transform_0, window_bounds = array<i64: 262, 27>}, {pipeline_mode = #tpu.pipeline_mode<synchronous>, transform_indices = @transform_1, window_bounds = array<i64: 27, 16>}, {pipeline_mode = #tpu.pipeline_mode<synchronous>, transform_indices = @transform_2, window_bounds = array<i64: 1, 16>}, {pipeline_mode = #tpu.pipeline_mode<synchronous>, transform_indices = @transform_3, window_bounds = array<i64: 144, 32>}, {pipeline_mode = #tpu.pipeline_mode<synchronous>, transform_indices = @transform_4, window_bounds = array<i64: 1, 32>}, {pipeline_mode = #tpu.pipeline_mode<synchronous>, transform_indices = @transform_5, window_bounds = array<i64: 1024, 128>}, {pipeline_mode = #tpu.pipeline_mode<synchronous>, transform_indices = @transform_6, window_bounds = array<i64: 1, 128>}, {pipeline_mode = #tpu.pipeline_mode<synchronous>, transform_indices = @transform_7, window_bounds = array<i64: 128, 10>}, {pipeline_mode = #tpu.pipeline_mode<synchronous>, transform_indices = @transform_8, window_bounds = array<i64: 1, 10>}, {pipeline_mode = #tpu.pipeline_mode<synchronous>, transform_indices = @transform_9, window_bounds = array<i64: 1, 10>}]} {
    %c0 = arith.constant 0 : index
    %c0_0 = arith.constant 0 : index
    %0 = vector.load %arg1[%c0, %c0_0] : memref<262x27xf32, #tpu.memory_space<vmem>>, vector<262x27xf32>
    %c0_1 = arith.constant 0 : index
    %c0_2 = arith.constant 0 : index
    %1 = vector.load %arg2[%c0_1, %c0_2] : memref<27x16xf32, #tpu.memory_space<vmem>>, vector<27x16xf32>
    %cst = arith.constant dense<0.000000e+00> : vector<262x16xf32>
    %2 = tpu.matmul %0, %1, %cst {dimension_numbers = #tpu.dot_dimension_numbers<[1], [0], [0], [1], [0, 0, 1, 1], [], []>} : vector<262x27xf32>, vector<27x16xf32>, vector<262x16xf32> -> vector<262x16xf32>
    %c0_3 = arith.constant 0 : index
    %c0_4 = arith.constant 0 : index
    %3 = vector.load %arg3[%c0_3, %c0_4] : memref<1x16xf32, #tpu.memory_space<vmem>>, vector<1x16xf32>
    %4 = vector.broadcast %3 : vector<1x16xf32> to vector<262x16xf32>
    %5 = arith.addf %2, %4 : vector<262x16xf32>
    %cst_5 = arith.constant 0.000000e+00 : f32
    %6 = vector.broadcast %cst_5 : f32 to vector<262x16xf32>
    %7 = arith.maximumf %5, %6 : vector<262x16xf32>
    %c0_6 = arith.constant 0 : index
    %c0_7 = arith.constant 0 : index
    %8 = vector.load %arg11[%c0_6, %c0_7] : memref<262x16xf32, #tpu.memory_space<vmem>>, vector<262x16xf32>
    tpu.vector_store %arg11[%c0_6, %c0_7], %7 {strides = array<i32>} : memref<262x16xf32, #tpu.memory_space<vmem>>, vector<262x16xf32>,
    %c0_8 = arith.constant 0 : index
    %c0_9 = arith.constant 0 : index
    %9 = vector.load %arg11[%c0_8, %c0_9] : memref<262x16xf32, #tpu.memory_space<vmem>>, vector<236x16xf32>
    %c0_10 = arith.constant 0 : index
    %c0_11 = arith.constant 0 : index
    %10 = vector.load %arg12[%c0_10, %c0_11] : memref<236x144xf32, #tpu.memory_space<vmem>>, vector<236x16xf32>
    tpu.vector_store %arg12[%c0_10, %c0_11], %9 {strides = array<i32>} : memref<236x144xf32, #tpu.memory_space<vmem>>, vector<236x16xf32>,
    %c1 = arith.constant 1 : index
    %c0_12 = arith.constant 0 : index
    %11 = vector.load %arg11[%c1, %c0_12] : memref<262x16xf32, #tpu.memory_space<vmem>>, vector<236x16xf32>
    %c0_13 = arith.constant 0 : index
    %c16 = arith.constant 16 : index
    %12 = vector.load %arg12[%c0_13, %c16] : memref<236x144xf32, #tpu.memory_space<vmem>>, vector<236x16xf32>
    tpu.vector_store %arg12[%c0_13, %c16], %11 {strides = array<i32>} : memref<236x144xf32, #tpu.memory_space<vmem>>, vector<236x16xf32>,
    %c2 = arith.constant 2 : index
    %c0_14 = arith.constant 0 : index
    %13 = vector.load %arg11[%c2, %c0_14] : memref<262x16xf32, #tpu.memory_space<vmem>>, vector<236x16xf32>
    %c0_15 = arith.constant 0 : index
    %c32 = arith.constant 32 : index
    %14 = vector.load %arg12[%c0_15, %c32] : memref<236x144xf32, #tpu.memory_space<vmem>>, vector<236x16xf32>
    tpu.vector_store %arg12[%c0_15, %c32], %13 {strides = array<i32>} : memref<236x144xf32, #tpu.memory_space<vmem>>, vector<236x16xf32>,
    %c12 = arith.constant 12 : index
    %c0_16 = arith.constant 0 : index
    %15 = vector.load %arg11[%c12, %c0_16] : memref<262x16xf32, #tpu.memory_space<vmem>>, vector<236x16xf32>
    %c0_17 = arith.constant 0 : index
    %c48 = arith.constant 48 : index
    %16 = vector.load %arg12[%c0_17, %c48] : memref<236x144xf32, #tpu.memory_space<vmem>>, vector<236x16xf32>
    tpu.vector_store %arg12[%c0_17, %c48], %15 {strides = array<i32>} : memref<236x144xf32, #tpu.memory_space<vmem>>, vector<236x16xf32>,
    %c13 = arith.constant 13 : index
    %c0_18 = arith.constant 0 : index
    %17 = vector.load %arg11[%c13, %c0_18] : memref<262x16xf32, #tpu.memory_space<vmem>>, vector<236x16xf32>
    %c0_19 = arith.constant 0 : index
    %c64 = arith.constant 64 : index
    %18 = vector.load %arg12[%c0_19, %c64] : memref<236x144xf32, #tpu.memory_space<vmem>>, vector<236x16xf32>
    tpu.vector_store %arg12[%c0_19, %c64], %17 {strides = array<i32>} : memref<236x144xf32, #tpu.memory_space<vmem>>, vector<236x16xf32>,
    %c14 = arith.constant 14 : index
    %c0_20 = arith.constant 0 : index
    %19 = vector.load %arg11[%c14, %c0_20] : memref<262x16xf32, #tpu.memory_space<vmem>>, vector<236x16xf32>
    %c0_21 = arith.constant 0 : index
    %c80 = arith.constant 80 : index
    %20 = vector.load %arg12[%c0_21, %c80] : memref<236x144xf32, #tpu.memory_space<vmem>>, vector<236x16xf32>
    tpu.vector_store %arg12[%c0_21, %c80], %19 {strides = array<i32>} : memref<236x144xf32, #tpu.memory_space<vmem>>, vector<236x16xf32>,
    %c24 = arith.constant 24 : index
    %c0_22 = arith.constant 0 : index
    %21 = vector.load %arg11[%c24, %c0_22] : memref<262x16xf32, #tpu.memory_space<vmem>>, vector<236x16xf32>
    %c0_23 = arith.constant 0 : index
    %c96 = arith.constant 96 : index
    %22 = vector.load %arg12[%c0_23, %c96] : memref<236x144xf32, #tpu.memory_space<vmem>>, vector<236x16xf32>
    tpu.vector_store %arg12[%c0_23, %c96], %21 {strides = array<i32>} : memref<236x144xf32, #tpu.memory_space<vmem>>, vector<236x16xf32>,
    %c25 = arith.constant 25 : index
    %c0_24 = arith.constant 0 : index
    %23 = vector.load %arg11[%c25, %c0_24] : memref<262x16xf32, #tpu.memory_space<vmem>>, vector<236x16xf32>
    %c0_25 = arith.constant 0 : index
    %c112 = arith.constant 112 : index
    %24 = vector.load %arg12[%c0_25, %c112] : memref<236x144xf32, #tpu.memory_space<vmem>>, vector<236x16xf32>
    tpu.vector_store %arg12[%c0_25, %c112], %23 {strides = array<i32>} : memref<236x144xf32, #tpu.memory_space<vmem>>, vector<236x16xf32>,
    %c26 = arith.constant 26 : index
    %c0_26 = arith.constant 0 : index
    %25 = vector.load %arg11[%c26, %c0_26] : memref<262x16xf32, #tpu.memory_space<vmem>>, vector<236x16xf32>
    %c0_27 = arith.constant 0 : index
    %c128 = arith.constant 128 : index
    %26 = vector.load %arg12[%c0_27, %c128] : memref<236x144xf32, #tpu.memory_space<vmem>>, vector<236x16xf32>
    tpu.vector_store %arg12[%c0_27, %c128], %25 {strides = array<i32>} : memref<236x144xf32, #tpu.memory_space<vmem>>, vector<236x16xf32>,
    %c0_28 = arith.constant 0 : index
    %c0_29 = arith.constant 0 : index
    %27 = vector.load %arg12[%c0_28, %c0_29] : memref<236x144xf32, #tpu.memory_space<vmem>>, vector<236x144xf32>
    %c0_30 = arith.constant 0 : index
    %c0_31 = arith.constant 0 : index
    %28 = vector.load %arg4[%c0_30, %c0_31] : memref<144x32xf32, #tpu.memory_space<vmem>>, vector<144x32xf32>
    %cst_32 = arith.constant dense<0.000000e+00> : vector<236x32xf32>
    %29 = tpu.matmul %27, %28, %cst_32 {dimension_numbers = #tpu.dot_dimension_numbers<[1], [0], [0], [1], [0, 0, 1, 1], [], []>} : vector<236x144xf32>, vector<144x32xf32>, vector<236x32xf32> -> vector<236x32xf32>
    %c0_33 = arith.constant 0 : index
    %c0_34 = arith.constant 0 : index
    %30 = vector.load %arg5[%c0_33, %c0_34] : memref<1x32xf32, #tpu.memory_space<vmem>>, vector<1x32xf32>
    %31 = vector.broadcast %30 : vector<1x32xf32> to vector<236x32xf32>
    %32 = arith.addf %29, %31 : vector<236x32xf32>
    %cst_35 = arith.constant 0.000000e+00 : f32
    %33 = vector.broadcast %cst_35 : f32 to vector<236x32xf32>
    %34 = arith.maximumf %32, %33 : vector<236x32xf32>
    %c0_36 = arith.constant 0 : index
    %c0_37 = arith.constant 0 : index
    %35 = vector.load %arg13[%c0_36, %c0_37] : memref<236x32xf32, #tpu.memory_space<vmem>>, vector<236x32xf32>
    tpu.vector_store %arg13[%c0_36, %c0_37], %34 {strides = array<i32>} : memref<236x32xf32, #tpu.memory_space<vmem>>, vector<236x32xf32>,
    %c0_38 = arith.constant 0 : index
    %c0_39 = arith.constant 0 : index
    %36 = vector.load %arg13[%c0_38, %c0_39] : memref<236x32xf32, #tpu.memory_space<vmem>>, vector<223x32xf32>
    %c1_40 = arith.constant 1 : index
    %c0_41 = arith.constant 0 : index
    %37 = vector.load %arg13[%c1_40, %c0_41] : memref<236x32xf32, #tpu.memory_space<vmem>>, vector<223x32xf32>
    %38 = arith.maximumf %36, %37 : vector<223x32xf32>
    %c12_42 = arith.constant 12 : index
    %c0_43 = arith.constant 0 : index
    %39 = vector.load %arg13[%c12_42, %c0_43] : memref<236x32xf32, #tpu.memory_space<vmem>>, vector<223x32xf32>
    %c13_44 = arith.constant 13 : index
    %c0_45 = arith.constant 0 : index
    %40 = vector.load %arg13[%c13_44, %c0_45] : memref<236x32xf32, #tpu.memory_space<vmem>>, vector<223x32xf32>
    %41 = arith.maximumf %39, %40 : vector<223x32xf32>
    %42 = arith.maximumf %38, %41 : vector<223x32xf32>
    %c0_46 = arith.constant 0 : index
    %c0_47 = arith.constant 0 : index
    %43 = vector.load %arg14[%c0_46, %c0_47] : memref<223x32xf32, #tpu.memory_space<vmem>>, vector<223x32xf32>
    tpu.vector_store %arg14[%c0_46, %c0_47], %42 {strides = array<i32>} : memref<223x32xf32, #tpu.memory_space<vmem>>, vector<223x32xf32>,
    %c0_48 = arith.constant 0 : index
    %c0_49 = arith.constant 0 : index
    %44 = vector.load %arg14[%c0_48, %c0_49] : memref<223x32xf32, #tpu.memory_space<vmem>>, vector<1x32xf32>
    %c0_50 = arith.constant 0 : index
    %c0_51 = arith.constant 0 : index
    %45 = vector.load %arg15[%c0_50, %c0_51] : memref<1x1024xf32, #tpu.memory_space<vmem>>, vector<1x32xf32>
    tpu.vector_store %arg15[%c0_50, %c0_51], %44 {strides = array<i32>} : memref<1x1024xf32, #tpu.memory_space<vmem>>, vector<1x32xf32>,
    %c2_52 = arith.constant 2 : index
    %c0_53 = arith.constant 0 : index
    %46 = vector.load %arg14[%c2_52, %c0_53] : memref<223x32xf32, #tpu.memory_space<vmem>>, vector<1x32xf32>
    %c0_54 = arith.constant 0 : index
    %c32_55 = arith.constant 32 : index
    %47 = vector.load %arg15[%c0_54, %c32_55] : memref<1x1024xf32, #tpu.memory_space<vmem>>, vector<1x32xf32>
    tpu.vector_store %arg15[%c0_54, %c32_55], %46 {strides = array<i32>} : memref<1x1024xf32, #tpu.memory_space<vmem>>, vector<1x32xf32>,
    %c4 = arith.constant 4 : index
    %c0_56 = arith.constant 0 : index
    %48 = vector.load %arg14[%c4, %c0_56] : memref<223x32xf32, #tpu.memory_space<vmem>>, vector<1x32xf32>
    %c0_57 = arith.constant 0 : index
    %c64_58 = arith.constant 64 : index
    %49 = vector.load %arg15[%c0_57, %c64_58] : memref<1x1024xf32, #tpu.memory_space<vmem>>, vector<1x32xf32>
    tpu.vector_store %arg15[%c0_57, %c64_58], %48 {strides = array<i32>} : memref<1x1024xf32, #tpu.memory_space<vmem>>, vector<1x32xf32>,
    %c6 = arith.constant 6 : index
    %c0_59 = arith.constant 0 : index
    %50 = vector.load %arg14[%c6, %c0_59] : memref<223x32xf32, #tpu.memory_space<vmem>>, vector<1x32xf32>
    %c0_60 = arith.constant 0 : index
    %c96_61 = arith.constant 96 : index
    %51 = vector.load %arg15[%c0_60, %c96_61] : memref<1x1024xf32, #tpu.memory_space<vmem>>, vector<1x32xf32>
    tpu.vector_store %arg15[%c0_60, %c96_61], %50 {strides = array<i32>} : memref<1x1024xf32, #tpu.memory_space<vmem>>, vector<1x32xf32>,
    %c24_62 = arith.constant 24 : index
    %c0_63 = arith.constant 0 : index
    %52 = vector.load %arg14[%c24_62, %c0_63] : memref<223x32xf32, #tpu.memory_space<vmem>>, vector<1x32xf32>
    %c0_64 = arith.constant 0 : index
    %c128_65 = arith.constant 128 : index
    %53 = vector.load %arg15[%c0_64, %c128_65] : memref<1x1024xf32, #tpu.memory_space<vmem>>, vector<1x32xf32>
    tpu.vector_store %arg15[%c0_64, %c128_65], %52 {strides = array<i32>} : memref<1x1024xf32, #tpu.memory_space<vmem>>, vector<1x32xf32>,
    %c26_66 = arith.constant 26 : index
    %c0_67 = arith.constant 0 : index
    %54 = vector.load %arg14[%c26_66, %c0_67] : memref<223x32xf32, #tpu.memory_space<vmem>>, vector<1x32xf32>
    %c0_68 = arith.constant 0 : index
    %c160 = arith.constant 160 : index
    %55 = vector.load %arg15[%c0_68, %c160] : memref<1x1024xf32, #tpu.memory_space<vmem>>, vector<1x32xf32>
    tpu.vector_store %arg15[%c0_68, %c160], %54 {strides = array<i32>} : memref<1x1024xf32, #tpu.memory_space<vmem>>, vector<1x32xf32>,
    %c28 = arith.constant 28 : index
    %c0_69 = arith.constant 0 : index
    %56 = vector.load %arg14[%c28, %c0_69] : memref<223x32xf32, #tpu.memory_space<vmem>>, vector<1x32xf32>
    %c0_70 = arith.constant 0 : index
    %c192 = arith.constant 192 : index
    %57 = vector.load %arg15[%c0_70, %c192] : memref<1x1024xf32, #tpu.memory_space<vmem>>, vector<1x32xf32>
    tpu.vector_store %arg15[%c0_70, %c192], %56 {strides = array<i32>} : memref<1x1024xf32, #tpu.memory_space<vmem>>, vector<1x32xf32>,
    %c30 = arith.constant 30 : index
    %c0_71 = arith.constant 0 : index
    %58 = vector.load %arg14[%c30, %c0_71] : memref<223x32xf32, #tpu.memory_space<vmem>>, vector<1x32xf32>
    %c0_72 = arith.constant 0 : index
    %c224 = arith.constant 224 : index
    %59 = vector.load %arg15[%c0_72, %c224] : memref<1x1024xf32, #tpu.memory_space<vmem>>, vector<1x32xf32>
    tpu.vector_store %arg15[%c0_72, %c224], %58 {strides = array<i32>} : memref<1x1024xf32, #tpu.memory_space<vmem>>, vector<1x32xf32>,
    %c48_73 = arith.constant 48 : index
    %c0_74 = arith.constant 0 : index
    %60 = vector.load %arg14[%c48_73, %c0_74] : memref<223x32xf32, #tpu.memory_space<vmem>>, vector<1x32xf32>
    %c0_75 = arith.constant 0 : index
    %c256 = arith.constant 256 : index
    %61 = vector.load %arg15[%c0_75, %c256] : memref<1x1024xf32, #tpu.memory_space<vmem>>, vector<1x32xf32>
    tpu.vector_store %arg15[%c0_75, %c256], %60 {strides = array<i32>} : memref<1x1024xf32, #tpu.memory_space<vmem>>, vector<1x32xf32>,
    %c50 = arith.constant 50 : index
    %c0_76 = arith.constant 0 : index
    %62 = vector.load %arg14[%c50, %c0_76] : memref<223x32xf32, #tpu.memory_space<vmem>>, vector<1x32xf32>
    %c0_77 = arith.constant 0 : index
    %c288 = arith.constant 288 : index
    %63 = vector.load %arg15[%c0_77, %c288] : memref<1x1024xf32, #tpu.memory_space<vmem>>, vector<1x32xf32>
    tpu.vector_store %arg15[%c0_77, %c288], %62 {strides = array<i32>} : memref<1x1024xf32, #tpu.memory_space<vmem>>, vector<1x32xf32>,
    %c52 = arith.constant 52 : index
    %c0_78 = arith.constant 0 : index
    %64 = vector.load %arg14[%c52, %c0_78] : memref<223x32xf32, #tpu.memory_space<vmem>>, vector<1x32xf32>
    %c0_79 = arith.constant 0 : index
    %c320 = arith.constant 320 : index
    %65 = vector.load %arg15[%c0_79, %c320] : memref<1x1024xf32, #tpu.memory_space<vmem>>, vector<1x32xf32>
    tpu.vector_store %arg15[%c0_79, %c320], %64 {strides = array<i32>} : memref<1x1024xf32, #tpu.memory_space<vmem>>, vector<1x32xf32>,
    %c54 = arith.constant 54 : index
    %c0_80 = arith.constant 0 : index
    %66 = vector.load %arg14[%c54, %c0_80] : memref<223x32xf32, #tpu.memory_space<vmem>>, vector<1x32xf32>
    %c0_81 = arith.constant 0 : index
    %c352 = arith.constant 352 : index
    %67 = vector.load %arg15[%c0_81, %c352] : memref<1x1024xf32, #tpu.memory_space<vmem>>, vector<1x32xf32>
    tpu.vector_store %arg15[%c0_81, %c352], %66 {strides = array<i32>} : memref<1x1024xf32, #tpu.memory_space<vmem>>, vector<1x32xf32>,
    %c72 = arith.constant 72 : index
    %c0_82 = arith.constant 0 : index
    %68 = vector.load %arg14[%c72, %c0_82] : memref<223x32xf32, #tpu.memory_space<vmem>>, vector<1x32xf32>
    %c0_83 = arith.constant 0 : index
    %c384 = arith.constant 384 : index
    %69 = vector.load %arg15[%c0_83, %c384] : memref<1x1024xf32, #tpu.memory_space<vmem>>, vector<1x32xf32>
    tpu.vector_store %arg15[%c0_83, %c384], %68 {strides = array<i32>} : memref<1x1024xf32, #tpu.memory_space<vmem>>, vector<1x32xf32>,
    %c74 = arith.constant 74 : index
    %c0_84 = arith.constant 0 : index
    %70 = vector.load %arg14[%c74, %c0_84] : memref<223x32xf32, #tpu.memory_space<vmem>>, vector<1x32xf32>
    %c0_85 = arith.constant 0 : index
    %c416 = arith.constant 416 : index
    %71 = vector.load %arg15[%c0_85, %c416] : memref<1x1024xf32, #tpu.memory_space<vmem>>, vector<1x32xf32>
    tpu.vector_store %arg15[%c0_85, %c416], %70 {strides = array<i32>} : memref<1x1024xf32, #tpu.memory_space<vmem>>, vector<1x32xf32>,
    %c76 = arith.constant 76 : index
    %c0_86 = arith.constant 0 : index
    %72 = vector.load %arg14[%c76, %c0_86] : memref<223x32xf32, #tpu.memory_space<vmem>>, vector<1x32xf32>
    %c0_87 = arith.constant 0 : index
    %c448 = arith.constant 448 : index
    %73 = vector.load %arg15[%c0_87, %c448] : memref<1x1024xf32, #tpu.memory_space<vmem>>, vector<1x32xf32>
    tpu.vector_store %arg15[%c0_87, %c448], %72 {strides = array<i32>} : memref<1x1024xf32, #tpu.memory_space<vmem>>, vector<1x32xf32>,
    %c78 = arith.constant 78 : index
    %c0_88 = arith.constant 0 : index
    %74 = vector.load %arg14[%c78, %c0_88] : memref<223x32xf32, #tpu.memory_space<vmem>>, vector<1x32xf32>
    %c0_89 = arith.constant 0 : index
    %c480 = arith.constant 480 : index
    %75 = vector.load %arg15[%c0_89, %c480] : memref<1x1024xf32, #tpu.memory_space<vmem>>, vector<1x32xf32>
    tpu.vector_store %arg15[%c0_89, %c480], %74 {strides = array<i32>} : memref<1x1024xf32, #tpu.memory_space<vmem>>, vector<1x32xf32>,
    %c144 = arith.constant 144 : index
    %c0_90 = arith.constant 0 : index
    %76 = vector.load %arg14[%c144, %c0_90] : memref<223x32xf32, #tpu.memory_space<vmem>>, vector<1x32xf32>
    %c0_91 = arith.constant 0 : index
    %c512 = arith.constant 512 : index
    %77 = vector.load %arg15[%c0_91, %c512] : memref<1x1024xf32, #tpu.memory_space<vmem>>, vector<1x32xf32>
    tpu.vector_store %arg15[%c0_91, %c512], %76 {strides = array<i32>} : memref<1x1024xf32, #tpu.memory_space<vmem>>, vector<1x32xf32>,
    %c146 = arith.constant 146 : index
    %c0_92 = arith.constant 0 : index
    %78 = vector.load %arg14[%c146, %c0_92] : memref<223x32xf32, #tpu.memory_space<vmem>>, vector<1x32xf32>
    %c0_93 = arith.constant 0 : index
    %c544 = arith.constant 544 : index
    %79 = vector.load %arg15[%c0_93, %c544] : memref<1x1024xf32, #tpu.memory_space<vmem>>, vector<1x32xf32>
    tpu.vector_store %arg15[%c0_93, %c544], %78 {strides = array<i32>} : memref<1x1024xf32, #tpu.memory_space<vmem>>, vector<1x32xf32>,
    %c148 = arith.constant 148 : index
    %c0_94 = arith.constant 0 : index
    %80 = vector.load %arg14[%c148, %c0_94] : memref<223x32xf32, #tpu.memory_space<vmem>>, vector<1x32xf32>
    %c0_95 = arith.constant 0 : index
    %c576 = arith.constant 576 : index
    %81 = vector.load %arg15[%c0_95, %c576] : memref<1x1024xf32, #tpu.memory_space<vmem>>, vector<1x32xf32>
    tpu.vector_store %arg15[%c0_95, %c576], %80 {strides = array<i32>} : memref<1x1024xf32, #tpu.memory_space<vmem>>, vector<1x32xf32>,
    %c150 = arith.constant 150 : index
    %c0_96 = arith.constant 0 : index
    %82 = vector.load %arg14[%c150, %c0_96] : memref<223x32xf32, #tpu.memory_space<vmem>>, vector<1x32xf32>
    %c0_97 = arith.constant 0 : index
    %c608 = arith.constant 608 : index
    %83 = vector.load %arg15[%c0_97, %c608] : memref<1x1024xf32, #tpu.memory_space<vmem>>, vector<1x32xf32>
    tpu.vector_store %arg15[%c0_97, %c608], %82 {strides = array<i32>} : memref<1x1024xf32, #tpu.memory_space<vmem>>, vector<1x32xf32>,
    %c168 = arith.constant 168 : index
    %c0_98 = arith.constant 0 : index
    %84 = vector.load %arg14[%c168, %c0_98] : memref<223x32xf32, #tpu.memory_space<vmem>>, vector<1x32xf32>
    %c0_99 = arith.constant 0 : index
    %c640 = arith.constant 640 : index
    %85 = vector.load %arg15[%c0_99, %c640] : memref<1x1024xf32, #tpu.memory_space<vmem>>, vector<1x32xf32>
    tpu.vector_store %arg15[%c0_99, %c640], %84 {strides = array<i32>} : memref<1x1024xf32, #tpu.memory_space<vmem>>, vector<1x32xf32>,
    %c170 = arith.constant 170 : index
    %c0_100 = arith.constant 0 : index
    %86 = vector.load %arg14[%c170, %c0_100] : memref<223x32xf32, #tpu.memory_space<vmem>>, vector<1x32xf32>
    %c0_101 = arith.constant 0 : index
    %c672 = arith.constant 672 : index
    %87 = vector.load %arg15[%c0_101, %c672] : memref<1x1024xf32, #tpu.memory_space<vmem>>, vector<1x32xf32>
    tpu.vector_store %arg15[%c0_101, %c672], %86 {strides = array<i32>} : memref<1x1024xf32, #tpu.memory_space<vmem>>, vector<1x32xf32>,
    %c172 = arith.constant 172 : index
    %c0_102 = arith.constant 0 : index
    %88 = vector.load %arg14[%c172, %c0_102] : memref<223x32xf32, #tpu.memory_space<vmem>>, vector<1x32xf32>
    %c0_103 = arith.constant 0 : index
    %c704 = arith.constant 704 : index
    %89 = vector.load %arg15[%c0_103, %c704] : memref<1x1024xf32, #tpu.memory_space<vmem>>, vector<1x32xf32>
    tpu.vector_store %arg15[%c0_103, %c704], %88 {strides = array<i32>} : memref<1x1024xf32, #tpu.memory_space<vmem>>, vector<1x32xf32>,
    %c174 = arith.constant 174 : index
    %c0_104 = arith.constant 0 : index
    %90 = vector.load %arg14[%c174, %c0_104] : memref<223x32xf32, #tpu.memory_space<vmem>>, vector<1x32xf32>
    %c0_105 = arith.constant 0 : index
    %c736 = arith.constant 736 : index
    %91 = vector.load %arg15[%c0_105, %c736] : memref<1x1024xf32, #tpu.memory_space<vmem>>, vector<1x32xf32>
    tpu.vector_store %arg15[%c0_105, %c736], %90 {strides = array<i32>} : memref<1x1024xf32, #tpu.memory_space<vmem>>, vector<1x32xf32>,
    %c192_106 = arith.constant 192 : index
    %c0_107 = arith.constant 0 : index
    %92 = vector.load %arg14[%c192_106, %c0_107] : memref<223x32xf32, #tpu.memory_space<vmem>>, vector<1x32xf32>
    %c0_108 = arith.constant 0 : index
    %c768 = arith.constant 768 : index
    %93 = vector.load %arg15[%c0_108, %c768] : memref<1x1024xf32, #tpu.memory_space<vmem>>, vector<1x32xf32>
    tpu.vector_store %arg15[%c0_108, %c768], %92 {strides = array<i32>} : memref<1x1024xf32, #tpu.memory_space<vmem>>, vector<1x32xf32>,
    %c194 = arith.constant 194 : index
    %c0_109 = arith.constant 0 : index
    %94 = vector.load %arg14[%c194, %c0_109] : memref<223x32xf32, #tpu.memory_space<vmem>>, vector<1x32xf32>
    %c0_110 = arith.constant 0 : index
    %c800 = arith.constant 800 : index
    %95 = vector.load %arg15[%c0_110, %c800] : memref<1x1024xf32, #tpu.memory_space<vmem>>, vector<1x32xf32>
    tpu.vector_store %arg15[%c0_110, %c800], %94 {strides = array<i32>} : memref<1x1024xf32, #tpu.memory_space<vmem>>, vector<1x32xf32>,
    %c196 = arith.constant 196 : index
    %c0_111 = arith.constant 0 : index
    %96 = vector.load %arg14[%c196, %c0_111] : memref<223x32xf32, #tpu.memory_space<vmem>>, vector<1x32xf32>
    %c0_112 = arith.constant 0 : index
    %c832 = arith.constant 832 : index
    %97 = vector.load %arg15[%c0_112, %c832] : memref<1x1024xf32, #tpu.memory_space<vmem>>, vector<1x32xf32>
    tpu.vector_store %arg15[%c0_112, %c832], %96 {strides = array<i32>} : memref<1x1024xf32, #tpu.memory_space<vmem>>, vector<1x32xf32>,
    %c198 = arith.constant 198 : index
    %c0_113 = arith.constant 0 : index
    %98 = vector.load %arg14[%c198, %c0_113] : memref<223x32xf32, #tpu.memory_space<vmem>>, vector<1x32xf32>
    %c0_114 = arith.constant 0 : index
    %c864 = arith.constant 864 : index
    %99 = vector.load %arg15[%c0_114, %c864] : memref<1x1024xf32, #tpu.memory_space<vmem>>, vector<1x32xf32>
    tpu.vector_store %arg15[%c0_114, %c864], %98 {strides = array<i32>} : memref<1x1024xf32, #tpu.memory_space<vmem>>, vector<1x32xf32>,
    %c216 = arith.constant 216 : index
    %c0_115 = arith.constant 0 : index
    %100 = vector.load %arg14[%c216, %c0_115] : memref<223x32xf32, #tpu.memory_space<vmem>>, vector<1x32xf32>
    %c0_116 = arith.constant 0 : index
    %c896 = arith.constant 896 : index
    %101 = vector.load %arg15[%c0_116, %c896] : memref<1x1024xf32, #tpu.memory_space<vmem>>, vector<1x32xf32>
    tpu.vector_store %arg15[%c0_116, %c896], %100 {strides = array<i32>} : memref<1x1024xf32, #tpu.memory_space<vmem>>, vector<1x32xf32>,
    %c218 = arith.constant 218 : index
    %c0_117 = arith.constant 0 : index
    %102 = vector.load %arg14[%c218, %c0_117] : memref<223x32xf32, #tpu.memory_space<vmem>>, vector<1x32xf32>
    %c0_118 = arith.constant 0 : index
    %c928 = arith.constant 928 : index
    %103 = vector.load %arg15[%c0_118, %c928] : memref<1x1024xf32, #tpu.memory_space<vmem>>, vector<1x32xf32>
    tpu.vector_store %arg15[%c0_118, %c928], %102 {strides = array<i32>} : memref<1x1024xf32, #tpu.memory_space<vmem>>, vector<1x32xf32>,
    %c220 = arith.constant 220 : index
    %c0_119 = arith.constant 0 : index
    %104 = vector.load %arg14[%c220, %c0_119] : memref<223x32xf32, #tpu.memory_space<vmem>>, vector<1x32xf32>
    %c0_120 = arith.constant 0 : index
    %c960 = arith.constant 960 : index
    %105 = vector.load %arg15[%c0_120, %c960] : memref<1x1024xf32, #tpu.memory_space<vmem>>, vector<1x32xf32>
    tpu.vector_store %arg15[%c0_120, %c960], %104 {strides = array<i32>} : memref<1x1024xf32, #tpu.memory_space<vmem>>, vector<1x32xf32>,
    %c222 = arith.constant 222 : index
    %c0_121 = arith.constant 0 : index
    %106 = vector.load %arg14[%c222, %c0_121] : memref<223x32xf32, #tpu.memory_space<vmem>>, vector<1x32xf32>
    %c0_122 = arith.constant 0 : index
    %c992 = arith.constant 992 : index
    %107 = vector.load %arg15[%c0_122, %c992] : memref<1x1024xf32, #tpu.memory_space<vmem>>, vector<1x32xf32>
    tpu.vector_store %arg15[%c0_122, %c992], %106 {strides = array<i32>} : memref<1x1024xf32, #tpu.memory_space<vmem>>, vector<1x32xf32>,
    %c0_123 = arith.constant 0 : index
    %c0_124 = arith.constant 0 : index
    %108 = vector.load %arg15[%c0_123, %c0_124] : memref<1x1024xf32, #tpu.memory_space<vmem>>, vector<1x1024xf32>
    %c0_125 = arith.constant 0 : index
    %c0_126 = arith.constant 0 : index
    %109 = vector.load %arg6[%c0_125, %c0_126] : memref<1024x128xf32, #tpu.memory_space<vmem>>, vector<1024x128xf32>
    %cst_127 = arith.constant dense<0.000000e+00> : vector<1x128xf32>
    %110 = tpu.matmul %108, %109, %cst_127 {dimension_numbers = #tpu.dot_dimension_numbers<[1], [0], [0], [1], [0, 0, 1, 1], [], []>} : vector<1x1024xf32>, vector<1024x128xf32>, vector<1x128xf32> -> vector<1x128xf32>
    %c0_128 = arith.constant 0 : index
    %c0_129 = arith.constant 0 : index
    %111 = vector.load %arg7[%c0_128, %c0_129] : memref<1x128xf32, #tpu.memory_space<vmem>>, vector<1x128xf32>
    %112 = arith.addf %110, %111 : vector<1x128xf32>
    %cst_130 = arith.constant 0.000000e+00 : f32
    %113 = vector.broadcast %cst_130 : f32 to vector<1x128xf32>
    %114 = arith.maximumf %112, %113 : vector<1x128xf32>
    %c0_131 = arith.constant 0 : index
    %c0_132 = arith.constant 0 : index
    %115 = vector.load %arg8[%c0_131, %c0_132] : memref<128x10xf32, #tpu.memory_space<vmem>>, vector<128x10xf32>
    %cst_133 = arith.constant dense<0.000000e+00> : vector<1x10xf32>
    %116 = tpu.matmul %114, %115, %cst_133 {dimension_numbers = #tpu.dot_dimension_numbers<[1], [0], [0], [1], [0, 0, 1, 1], [], []>} : vector<1x128xf32>, vector<128x10xf32>, vector<1x10xf32> -> vector<1x10xf32>
    %c0_134 = arith.constant 0 : index
    %c0_135 = arith.constant 0 : index
    %117 = vector.load %arg9[%c0_134, %c0_135] : memref<1x10xf32, #tpu.memory_space<vmem>>, vector<1x10xf32>
    %118 = arith.addf %116, %117 : vector<1x10xf32>
    %c0_136 = arith.constant 0 : index
    %c0_137 = arith.constant 0 : index
    %119 = vector.load %arg10[%c0_136, %c0_137] : memref<1x10xf32, #tpu.memory_space<vmem>>, vector<1x10xf32>
    tpu.vector_store %arg10[%c0_136, %c0_137], %118 {strides = array<i32>} : memref<1x10xf32, #tpu.memory_space<vmem>>, vector<1x10xf32>,
    return
  }
  func.func @transform_0(%arg0: i32) -> (i32, i32) {
    %c0_i32 = arith.constant 0 : i32
    %c0_i32_0 = arith.constant 0 : i32
    %c0_i32_1 = arith.constant 0 : i32
    return %c0_i32, %c0_i32_0 : i32, i32
  }
  func.func @transform_1(%arg0: i32) -> (i32, i32) {
    %c0_i32 = arith.constant 0 : i32
    %c0_i32_0 = arith.constant 0 : i32
    %c0_i32_1 = arith.constant 0 : i32
    return %c0_i32, %c0_i32_0 : i32, i32
  }
  func.func @transform_2(%arg0: i32) -> (i32, i32) {
    %c0_i32 = arith.constant 0 : i32
    %c0_i32_0 = arith.constant 0 : i32
    %c0_i32_1 = arith.constant 0 : i32
    return %c0_i32, %c0_i32_0 : i32, i32
  }
  func.func @transform_3(%arg0: i32) -> (i32, i32) {
    %c0_i32 = arith.constant 0 : i32
    %c0_i32_0 = arith.constant 0 : i32
    %c0_i32_1 = arith.constant 0 : i32
    return %c0_i32, %c0_i32_0 : i32, i32
  }
  func.func @transform_4(%arg0: i32) -> (i32, i32) {
    %c0_i32 = arith.constant 0 : i32
    %c0_i32_0 = arith.constant 0 : i32
    %c0_i32_1 = arith.constant 0 : i32
    return %c0_i32, %c0_i32_0 : i32, i32
  }
  func.func @transform_5(%arg0: i32) -> (i32, i32) {
    %c0_i32 = arith.constant 0 : i32
    %c0_i32_0 = arith.constant 0 : i32
    %c0_i32_1 = arith.constant 0 : i32
    return %c0_i32, %c0_i32_0 : i32, i32
  }
  func.func @transform_6(%arg0: i32) -> (i32, i32) {
    %c0_i32 = arith.constant 0 : i32
    %c0_i32_0 = arith.constant 0 : i32
    %c0_i32_1 = arith.constant 0 : i32
    return %c0_i32, %c0_i32_0 : i32, i32
  }
  func.func @transform_7(%arg0: i32) -> (i32, i32) {
    %c0_i32 = arith.constant 0 : i32
    %c0_i32_0 = arith.constant 0 : i32
    %c0_i32_1 = arith.constant 0 : i32
    return %c0_i32, %c0_i32_0 : i32, i32
  }
  func.func @transform_8(%arg0: i32) -> (i32, i32) {
    %c0_i32 = arith.constant 0 : i32
    %c0_i32_0 = arith.constant 0 : i32
    %c0_i32_1 = arith.constant 0 : i32
    return %c0_i32, %c0_i32_0 : i32, i32
  }
  func.func @transform_9(%arg0: i32) -> (i32, i32) {
    %c0_i32 = arith.constant 0 : i32
    %c0_i32_0 = arith.constant 0 : i32
    %c0_i32_1 = arith.constant 0 : i32
    return %c0_i32, %c0_i32_0 : i32, i32
  }
}

</mosaic_0001>

<llo_original>
// kernel: net_forward.1
$region0: #{net_forward.1}
  #allocation0 [shape = 'u32[]', space=smem, size = 0x4, offset = 0x4, fixed_abs, tag = 'smem constant byte address 0x4 - core index']
  #allocation1 [shape = 'u32[72,128]{1,0:T(1,128)}', space=vmem, size = 0x9000, scoped, tag = 'internal scratch']
  #allocation2 [shape = 'f32[262,16]{1,0:T(8,128)}', space=vmem, size = 0x21000, scoped, tag = 'scratch operand']
  #allocation3 [shape = 'f32[236,144]{1,0:T(8,128)}', space=vmem, size = 0x3c000, scoped, tag = 'scratch operand']
  #allocation4 [shape = 'f32[236,32]{1,0:T(8,128)}', space=vmem, size = 0x1e000, scoped, tag = 'scratch operand']
  #allocation5 [shape = 'f32[223,32]{1,0:T(8,128)}', space=vmem, size = 0x1c000, scoped, tag = 'scratch operand']
  #allocation6 [shape = 'f32[1,1024]{1,0:T(1,128)}', space=vmem, size = 0x1000, scoped, tag = 'scratch operand']
  %s0 = inlined_call_operand.vmem [shape: f32[262,27], index: 0, kind: input, shape index: {}]
  %s1 = inlined_call_operand.vmem [shape: f32[27,16], index: 1, kind: input, shape index: {}]
  %s2 = inlined_call_operand.vmem [shape: f32[1,16], index: 2, kind: input, shape index: {}]
  %s3 = inlined_call_operand.vmem [shape: f32[144,32], index: 3, kind: input, shape index: {}]
  %s4 = inlined_call_operand.vmem [shape: f32[1,32], index: 4, kind: input, shape index: {}]
  %s5 = inlined_call_operand.vmem [shape: f32[1024,128], index: 5, kind: input, shape index: {}]
  %s6 = inlined_call_operand.vmem [shape: f32[1,128], index: 6, kind: input, shape index: {}]
  %s7 = inlined_call_operand.vmem [shape: f32[128,10], index: 7, kind: input, shape index: {}]
  %s8 = inlined_call_operand.vmem [shape: f32[1,10], index: 8, kind: input, shape index: {}]
  %s9 = inlined_call_operand.hbm [shape: f32[1,10], index: 9, kind: output, shape index: {}]
  %s10 = sld [smem:[#allocation0]]
  $region46: #{net_forward.1} parent=0
    _
  %s12 = ssub.s32 1, %s10
  %s13 = scalar_select 0, %s12, %s10
  $region1: #{net_forward.1} parent=0
    #allocation7 [shape = 'u8[512]{0}', space=vmem, size = 0x400, scoped, tag = 'output window, operand 0, single buffered']
    #allocation8 [shape = 's32[1]{0}', space=sflag, size = 0x4, scoped, tag = 'scoped memory for net_forward.1']
    %14 = vsyncpa [#allocation8], 0
    // Predicated region
    $region2: #{net_forward.1} parent=1 // pred_check
      _
    $region3: #{net_forward.1} parent=1 // pred_check_branch
      %16 = sbr.rel (0) target = $region5
    $region4: #{net_forward.1} parent=1 // pred_region
      _
    $region5: #{net_forward.1} parent=1 // pred_fallthru
      _
    // Predicated region
    $region6: #{net_forward.1} parent=1 // pred_check
      _
    $region7: #{net_forward.1} parent=1 // pred_check_branch
      %18 = sbr.rel (0) target = $region9
    $region8: #{net_forward.1} parent=1 // pred_region
      _
    $region9: #{net_forward.1} parent=1 // pred_fallthru
      _
    // Predicated region
    $region10: #{net_forward.1} parent=1 // pred_check
      _
    $region11: #{net_forward.1} parent=1 // pred_check_branch
      %20 = sbr.rel (0) target = $region13
    $region12: #{net_forward.1} parent=1 // pred_region
      _
    $region13: #{net_forward.1} parent=1 // pred_fallthru
      _
    // Predicated region
    $region14: #{net_forward.1} parent=1 // pred_check
      _
    $region15: #{net_forward.1} parent=1 // pred_check_branch
      %22 = sbr.rel (0) target = $region17
    $region16: #{net_forward.1} parent=1 // pred_region
      _
    $region17: #{net_forward.1} parent=1 // pred_fallthru
      _
    // Predicated region
    $region18: #{net_forward.1} parent=1 // pred_check
      _
    $region19: #{net_forward.1} parent=1 // pred_check_branch
      %24 = sbr.rel (0) target = $region21
    $region20: #{net_forward.1} parent=1 // pred_region
      _
    $region21: #{net_forward.1} parent=1 // pred_fallthru
      _
    // Predicated region
    $region22: #{net_forward.1} parent=1 // pred_check
      _
    $region23: #{net_forward.1} parent=1 // pred_check_branch
      %26 = sbr.rel (0) target = $region25
    $region24: #{net_forward.1} parent=1 // pred_region
      _
    $region25: #{net_forward.1} parent=1 // pred_fallthru
      _
    // Predicated region
    $region26: #{net_forward.1} parent=1 // pred_check
      _
    $region27: #{net_forward.1} parent=1 // pred_check_branch
      %28 = sbr.rel (0) target = $region29
    $region28: #{net_forward.1} parent=1 // pred_region
      _
    $region29: #{net_forward.1} parent=1 // pred_fallthru
      _
    // Predicated region
    $region30: #{net_forward.1} parent=1 // pred_check
      _
    $region31: #{net_forward.1} parent=1 // pred_check_branch
      %30 = sbr.rel (0) target = $region33
    $region32: #{net_forward.1} parent=1 // pred_region
      _
    $region33: #{net_forward.1} parent=1 // pred_fallthru
      _
    // Predicated region
    $region34: #{net_forward.1} parent=1 // pred_check
      _
    $region35: #{net_forward.1} parent=1 // pred_check_branch
      %32 = sbr.rel (0) target = $region37
    $region36: #{net_forward.1} parent=1 // pred_region
      _
    $region37: #{net_forward.1} parent=1 // pred_fallthru
      _
    %v33 = vld [vmem:[%s0] sm:$0xff]
    %v34 = vld [vmem:[%s0 + $0x8] sm:$0xff]
    %v35 = vld [vmem:[%s0 + $0x10] sm:$0xff]
    %v36 = vld [vmem:[%s0 + $0x18] sm:$0xff]
    %v37 = vld [vmem:[%s0 + $0x20] sm:$0xff]
    %v38 = vld [vmem:[%s0 + $0x28] sm:$0xff]
    %v39 = vld [vmem:[%s0 + $0x30] sm:$0xff]
    %v40 = vld [vmem:[%s0 + $0x38] sm:$0xff]
    %v41 = vld [vmem:[%s0 + $0x40] sm:$0xff]
    %v42 = vld [vmem:[%s0 + $0x48] sm:$0xff]
    %v43 = vld [vmem:[%s0 + $0x50] sm:$0xff]
    %v44 = vld [vmem:[%s0 + $0x58] sm:$0xff]
    %v45 = vld [vmem:[%s0 + $0x60] sm:$0xff]
    %v46 = vld [vmem:[%s0 + $0x68] sm:$0xff]
    %v47 = vld [vmem:[%s0 + $0x70] sm:$0xff]
    %v48 = vld [vmem:[%s0 + $0x78] sm:$0xff]
    %v49 = vld [vmem:[%s0 + $0x80] sm:$0xff]
    %v50 = vld [vmem:[%s0 + $0x88] sm:$0xff]
    %v51 = vld [vmem:[%s0 + $0x90] sm:$0xff]
    %v52 = vld [vmem:[%s0 + $0x98] sm:$0xff]
    %v53 = vld [vmem:[%s0 + $0xa0] sm:$0xff]
    %v54 = vld [vmem:[%s0 + $0xa8] sm:$0xff]
    %v55 = vld [vmem:[%s0 + $0xb0] sm:$0xff]
    %v56 = vld [vmem:[%s0 + $0xb8] sm:$0xff]
    %v57 = vld [vmem:[%s0 + $0xc0] sm:$0xff]
    %v58 = vld [vmem:[%s0 + $0xc8] sm:$0xff]
    %v59 = vld [vmem:[%s0 + $0xd0] sm:$0xff]
    %v60 = vld [vmem:[%s0 + $0xd8] sm:$0xff]
    %v61 = vld [vmem:[%s0 + $0xe0] sm:$0xff]
    %v62 = vld [vmem:[%s0 + $0xe8] sm:$0xff]
    %v63 = vld [vmem:[%s0 + $0xf0] sm:$0xff]
    %v64 = vld [vmem:[%s0 + $0xf8] sm:$0xff]
    %v65 = vld [vmem:[%s0 + $0x100] sm:$0x3f]
    %v66 = vld [vmem:[%s1] sm:$0xff]
    %v67 = vld [vmem:[%s1 + $0x8] sm:$0xff]
    %v68 = vld [vmem:[%s1 + $0x10] sm:$0xff]
    %v69 = vld [vmem:[%s1 + $0x18] sm:$0x7]
    %v70 = vld [vmem:[%s2] sm:$0x1]
    %v72 = vperm.slane %v70, 0
    %vm74 = vcmask 220160
    %v76 = vsel %vm74, %v33, 0
    %v79 = vsel %vm74, %v34, 0
    %v82 = vsel %vm74, %v35, 0
    %v85 = vsel %vm74, %v36, 0
    %v88 = vsel %vm74, %v37, 0
    %v91 = vsel %vm74, %v38, 0
    %v94 = vsel %vm74, %v39, 0
    %v97 = vsel %vm74, %v40, 0
    %v100 = vsel %vm74, %v41, 0
    %v103 = vsel %vm74, %v42, 0
    %v106 = vsel %vm74, %v43, 0
    %v109 = vsel %vm74, %v44, 0
    %v112 = vsel %vm74, %v45, 0
    %v115 = vsel %vm74, %v46, 0
    %v118 = vsel %vm74, %v47, 0
    %v121 = vsel %vm74, %v48, 0
    %v124 = vsel %vm74, %v49, 0
    %v127 = vsel %vm74, %v50, 0
    %v130 = vsel %vm74, %v51, 0
    %v133 = vsel %vm74, %v52, 0
    %v136 = vsel %vm74, %v53, 0
    %v139 = vsel %vm74, %v54, 0
    %v142 = vsel %vm74, %v55, 0
    %v145 = vsel %vm74, %v56, 0
    %v148 = vsel %vm74, %v57, 0
    %v151 = vsel %vm74, %v58, 0
    %v154 = vsel %vm74, %v59, 0
    %v157 = vsel %vm74, %v60, 0
    %v160 = vsel %vm74, %v61, 0
    %v163 = vsel %vm74, %v62, 0
    %v166 = vsel %vm74, %v63, 0
    %v169 = vsel %vm74, %v64, 0
    %v172 = vsel %vm74, %v65, 0
    %vm174 = vcmask 1042432
    %v176 = vsel %vm174, %v69, 0
    %178 = vmatpush.msra.mxu0 0.0
    %179 = vmatpush.msra.mxu0 0.0
    %180 = vmatpush.msra.mxu0 0.0
    %181 = vmatpush.msra.mxu0 0.0
    %182 = vmatpush.msra.mxu0 0.0
    %183 = vmatpush.msra.mxu0 0.0
    %184 = vmatpush.msra.mxu0 0.0
    %185 = vmatpush.msra.mxu0 0.0
    %186 = vmatpush.msra.mxu0 0.0
    %187 = vmatpush.msra.mxu0 0.0
    %188 = vmatpush.msra.mxu0 0.0
    %189 = vmatpush.msra.mxu0 0.0
    %190 = vmatpush.msra.mxu0 %v176
    %191 = vmatpush.msra.mxu0 %v68
    %192 = vmatpush.msra.mxu0 %v67
    %193 = vmatpush.msra.mxu0 %v66
    %194 = vmatmul.f32.gmra.mxu0 %v76
    %v195 = vpop.f32.mrf.mxu0
    %v196 = vadd.f32 %v72, %v195
    %197 = vmatmul.f32.gmra.mxu0 %v79
    %v198 = vpop.f32.mrf.mxu0
    %v199 = vadd.f32 %v72, %v198
    %200 = vmatmul.f32.gmra.mxu0 %v82
    %v201 = vpop.f32.mrf.mxu0
    %v202 = vadd.f32 %v72, %v201
    %203 = vmatmul.f32.gmra.mxu0 %v85
    %v204 = vpop.f32.mrf.mxu0
    %v205 = vadd.f32 %v72, %v204
    %206 = vmatmul.f32.gmra.mxu0 %v88
    %v207 = vpop.f32.mrf.mxu0
    %v208 = vadd.f32 %v72, %v207
    %209 = vmatmul.f32.gmra.mxu0 %v91
    %v210 = vpop.f32.mrf.mxu0
    %v211 = vadd.f32 %v72, %v210
    %212 = vmatmul.f32.gmra.mxu0 %v94
    %v213 = vpop.f32.mrf.mxu0
    %v214 = vadd.f32 %v72, %v213
    %215 = vmatmul.f32.gmra.mxu0 %v97
    %v216 = vpop.f32.mrf.mxu0
    %v217 = vadd.f32 %v72, %v216
    %218 = vmatmul.f32.gmra.mxu0 %v100
    %v219 = vpop.f32.mrf.mxu0
    %v220 = vadd.f32 %v72, %v219
    %221 = vmatmul.f32.gmra.mxu0 %v103
    %v222 = vpop.f32.mrf.mxu0
    %v223 = vadd.f32 %v72, %v222
    %224 = vmatmul.f32.gmra.mxu0 %v106
    %v225 = vpop.f32.mrf.mxu0
    %v226 = vadd.f32 %v72, %v225
    %227 = vmatmul.f32.gmra.mxu0 %v109
    %v228 = vpop.f32.mrf.mxu0
    %v229 = vadd.f32 %v72, %v228
    %230 = vmatmul.f32.gmra.mxu0 %v112
    %v231 = vpop.f32.mrf.mxu0
    %v232 = vadd.f32 %v72, %v231
    %233 = vmatmul.f32.gmra.mxu0 %v115
    %v234 = vpop.f32.mrf.mxu0
    %v235 = vadd.f32 %v72, %v234
    %236 = vmatmul.f32.gmra.mxu0 %v118
    %v237 = vpop.f32.mrf.mxu0
    %v238 = vadd.f32 %v72, %v237
    %239 = vmatmul.f32.gmra.mxu0 %v121
    %v240 = vpop.f32.mrf.mxu0
    %v241 = vadd.f32 %v72, %v240
    %242 = vmatmul.f32.gmra.mxu0 %v124
    %v243 = vpop.f32.mrf.mxu0
    %v244 = vadd.f32 %v72, %v243
    %245 = vmatmul.f32.gmra.mxu0 %v127
    %v246 = vpop.f32.mrf.mxu0
    %v247 = vadd.f32 %v72, %v246
    %248 = vmatmul.f32.gmra.mxu0 %v130
    %v249 = vpop.f32.mrf.mxu0
    %v250 = vadd.f32 %v72, %v249
    %251 = vmatmul.f32.gmra.mxu0 %v133
    %v252 = vpop.f32.mrf.mxu0
    %v253 = vadd.f32 %v72, %v252
    %254 = vmatmul.f32.gmra.mxu0 %v136
    %v255 = vpop.f32.mrf.mxu0
    %v256 = vadd.f32 %v72, %v255
    %257 = vmatmul.f32.gmra.mxu0 %v139
    %v258 = vpop.f32.mrf.mxu0
    %v259 = vadd.f32 %v72, %v258
    %260 = vmatmul.f32.gmra.mxu0 %v142
    %v261 = vpop.f32.mrf.mxu0
    %v262 = vadd.f32 %v72, %v261
    %263 = vmatmul.f32.gmra.mxu0 %v145
    %v264 = vpop.f32.mrf.mxu0
    %v265 = vadd.f32 %v72, %v264
    %266 = vmatmul.f32.gmra.mxu0 %v148
    %v267 = vpop.f32.mrf.mxu0
    %v268 = vadd.f32 %v72, %v267
    %269 = vmatmul.f32.gmra.mxu0 %v151
    %v270 = vpop.f32.mrf.mxu0
    %v271 = vadd.f32 %v72, %v270
    %272 = vmatmul.f32.gmra.mxu0 %v154
    %v273 = vpop.f32.mrf.mxu0
    %v274 = vadd.f32 %v72, %v273
    %275 = vmatmul.f32.gmra.mxu0 %v157
    %v276 = vpop.f32.mrf.mxu0
    %v277 = vadd.f32 %v72, %v276
    %278 = vmatmul.f32.gmra.mxu0 %v160
    %v279 = vpop.f32.mrf.mxu0
    %v280 = vadd.f32 %v72, %v279
    %281 = vmatmul.f32.gmra.mxu0 %v163
    %v282 = vpop.f32.mrf.mxu0
    %v283 = vadd.f32 %v72, %v282
    %284 = vmatmul.f32.gmra.mxu0 %v166
    %v285 = vpop.f32.mrf.mxu0
    %v286 = vadd.f32 %v72, %v285
    %287 = vmatmul.f32.gmra.mxu0 %v169
    %v288 = vpop.f32.mrf.mxu0
    %v289 = vadd.f32 %v72, %v288
    %290 = vmatmul.f32.gmra.mxu0 %v172
    %v291 = vpop.f32.mrf.mxu0
    %v292 = vadd.f32 %v72, %v291
    %293 = vdwg.mxu0
    %v294 = vmax.f32 %v196, 0.0
    %v295 = vmax.f32 %v199, 0.0
    %v296 = vmax.f32 %v202, 0.0
    %v297 = vmax.f32 %v205, 0.0
    %v298 = vmax.f32 %v208, 0.0
    %v299 = vmax.f32 %v211, 0.0
    %v300 = vmax.f32 %v214, 0.0
    %v301 = vmax.f32 %v217, 0.0
    %v302 = vmax.f32 %v220, 0.0
    %v303 = vmax.f32 %v223, 0.0
    %v304 = vmax.f32 %v226, 0.0
    %v305 = vmax.f32 %v229, 0.0
    %v306 = vmax.f32 %v232, 0.0
    %v307 = vmax.f32 %v235, 0.0
    %v308 = vmax.f32 %v238, 0.0
    %v309 = vmax.f32 %v241, 0.0
    %v310 = vmax.f32 %v244, 0.0
    %v311 = vmax.f32 %v247, 0.0
    %v312 = vmax.f32 %v250, 0.0
    %v313 = vmax.f32 %v253, 0.0
    %v314 = vmax.f32 %v256, 0.0
    %v315 = vmax.f32 %v259, 0.0
    %v316 = vmax.f32 %v262, 0.0
    %v317 = vmax.f32 %v265, 0.0
    %v318 = vmax.f32 %v268, 0.0
    %v319 = vmax.f32 %v271, 0.0
    %v320 = vmax.f32 %v274, 0.0
    %v321 = vmax.f32 %v277, 0.0
    %v322 = vmax.f32 %v280, 0.0
    %v323 = vmax.f32 %v283, 0.0
    %v324 = vmax.f32 %v286, 0.0
    %v325 = vmax.f32 %v289, 0.0
    %v326 = vmax.f32 %v292, 0.0
    %vm327 = vcmask 130048
    %328 = vst.msk [vmem:[#allocation2] sm:$0xff] %vm327, %v294
    %329 = vst.msk [vmem:[#allocation2 + $0x8] sm:$0xff] %vm327, %v295
    %330 = vst.msk [vmem:[#allocation2 + $0x10] sm:$0xff] %vm327, %v296
    %331 = vst.msk [vmem:[#allocation2 + $0x18] sm:$0xff] %vm327, %v297
    %332 = vst.msk [vmem:[#allocation2 + $0x20] sm:$0xff] %vm327, %v298
    %333 = vst.msk [vmem:[#allocation2 + $0x28] sm:$0xff] %vm327, %v299
    %334 = vst.msk [vmem:[#allocation2 + $0x30] sm:$0xff] %vm327, %v300
    %335 = vst.msk [vmem:[#allocation2 + $0x38] sm:$0xff] %vm327, %v301
    %336 = vst.msk [vmem:[#allocation2 + $0x40] sm:$0xff] %vm327, %v302
    %337 = vst.msk [vmem:[#allocation2 + $0x48] sm:$0xff] %vm327, %v303
    %338 = vst.msk [vmem:[#allocation2 + $0x50] sm:$0xff] %vm327, %v304
    %339 = vst.msk [vmem:[#allocation2 + $0x58] sm:$0xff] %vm327, %v305
    %340 = vst.msk [vmem:[#allocation2 + $0x60] sm:$0xff] %vm327, %v306
    %341 = vst.msk [vmem:[#allocation2 + $0x68] sm:$0xff] %vm327, %v307
    %342 = vst.msk [vmem:[#allocation2 + $0x70] sm:$0xff] %vm327, %v308
    %343 = vst.msk [vmem:[#allocation2 + $0x78] sm:$0xff] %vm327, %v309
    %344 = vst.msk [vmem:[#allocation2 + $0x80] sm:$0xff] %vm327, %v310
    %345 = vst.msk [vmem:[#allocation2 + $0x88] sm:$0xff] %vm327, %v311
    %346 = vst.msk [vmem:[#allocation2 + $0x90] sm:$0xff] %vm327, %v312
    %347 = vst.msk [vmem:[#allocation2 + $0x98] sm:$0xff] %vm327, %v313
    %348 = vst.msk [vmem:[#allocation2 + $0xa0] sm:$0xff] %vm327, %v314
    %349 = vst.msk [vmem:[#allocation2 + $0xa8] sm:$0xff] %vm327, %v315
    %350 = vst.msk [vmem:[#allocation2 + $0xb0] sm:$0xff] %vm327, %v316
    %351 = vst.msk [vmem:[#allocation2 + $0xb8] sm:$0xff] %vm327, %v317
    %352 = vst.msk [vmem:[#allocation2 + $0xc0] sm:$0xff] %vm327, %v318
    %353 = vst.msk [vmem:[#allocation2 + $0xc8] sm:$0xff] %vm327, %v319
    %354 = vst.msk [vmem:[#allocation2 + $0xd0] sm:$0xff] %vm327, %v320
    %355 = vst.msk [vmem:[#allocation2 + $0xd8] sm:$0xff] %vm327, %v321
    %356 = vst.msk [vmem:[#allocation2 + $0xe0] sm:$0xff] %vm327, %v322
    %357 = vst.msk [vmem:[#allocation2 + $0xe8] sm:$0xff] %vm327, %v323
    %358 = vst.msk [vmem:[#allocation2 + $0xf0] sm:$0xff] %vm327, %v324
    %359 = vst.msk [vmem:[#allocation2 + $0xf8] sm:$0xff] %vm327, %v325
    %vm360 = vcmask 128000
    %361 = vst.msk [vmem:[#allocation2 + $0x100] sm:$0x3f] %vm360, %v326
    %v362 = vld [vmem:[#allocation2] sm:$0xff]
    %v363 = vld [vmem:[#allocation2 + $0x8] sm:$0xff]
    %v364 = vld [vmem:[#allocation2 + $0x10] sm:$0xff]
    %v365 = vld [vmem:[#allocation2 + $0x18] sm:$0xff]
    %v366 = vld [vmem:[#allocation2 + $0x20] sm:$0xff]
    %v367 = vld [vmem:[#allocation2 + $0x28] sm:$0xff]
    %v368 = vld [vmem:[#allocation2 + $0x30] sm:$0xff]
    %v369 = vld [vmem:[#allocation2 + $0x38] sm:$0xff]
    %v370 = vld [vmem:[#allocation2 + $0x40] sm:$0xff]
    %v371 = vld [vmem:[#allocation2 + $0x48] sm:$0xff]
    %v372 = vld [vmem:[#allocation2 + $0x50] sm:$0xff]
    %v373 = vld [vmem:[#allocation2 + $0x58] sm:$0xff]
    %v374 = vld [vmem:[#allocation2 + $0x60] sm:$0xff]
    %v375 = vld [vmem:[#allocation2 + $0x68] sm:$0xff]
    %v376 = vld [vmem:[#allocation2 + $0x70] sm:$0xff]
    %v377 = vld [vmem:[#allocation2 + $0x78] sm:$0xff]
    %v378 = vld [vmem:[#allocation2 + $0x80] sm:$0xff]
    %v379 = vld [vmem:[#allocation2 + $0x88] sm:$0xff]
    %v380 = vld [vmem:[#allocation2 + $0x90] sm:$0xff]
    %v381 = vld [vmem:[#allocation2 + $0x98] sm:$0xff]
    %v382 = vld [vmem:[#allocation2 + $0xa0] sm:$0xff]
    %v383 = vld [vmem:[#allocation2 + $0xa8] sm:$0xff]
    %v384 = vld [vmem:[#allocation2 + $0xb0] sm:$0xff]
    %v385 = vld [vmem:[#allocation2 + $0xb8] sm:$0xff]
    %v386 = vld [vmem:[#allocation2 + $0xc0] sm:$0xff]
    %v387 = vld [vmem:[#allocation2 + $0xc8] sm:$0xff]
    %v388 = vld [vmem:[#allocation2 + $0xd0] sm:$0xff]
    %v389 = vld [vmem:[#allocation2 + $0xd8] sm:$0xff]
    %v390 = vld [vmem:[#allocation2 + $0xe0] sm:$0xff]
    %v391 = vld [vmem:[#allocation2 + $0xe8] sm:$0xf]
    %392 = vst.msk [vmem:[#allocation3] sm:$0xff] %vm327, %v362
    %393 = vst.msk [vmem:[#allocation3 + $0x10] sm:$0xff] %vm327, %v363
    %394 = vst.msk [vmem:[#allocation3 + $0x20] sm:$0xff] %vm327, %v364
    %395 = vst.msk [vmem:[#allocation3 + $0x30] sm:$0xff] %vm327, %v365
    %396 = vst.msk [vmem:[#allocation3 + $0x40] sm:$0xff] %vm327, %v366
    %397 = vst.msk [vmem:[#allocation3 + $0x50] sm:$0xff] %vm327, %v367
    %398 = vst.msk [vmem:[#allocation3 + $0x60] sm:$0xff] %vm327, %v368
    %399 = vst.msk [vmem:[#allocation3 + $0x70] sm:$0xff] %vm327, %v369
    %400 = vst.msk [vmem:[#allocation3 + $0x80] sm:$0xff] %vm327, %v370
    %401 = vst.msk [vmem:[#allocation3 + $0x90] sm:$0xff] %vm327, %v371
    %402 = vst.msk [vmem:[#allocation3 + $0xa0] sm:$0xff] %vm327, %v372
    %403 = vst.msk [vmem:[#allocation3 + $0xb0] sm:$0xff] %vm327, %v373
    %404 = vst.msk [vmem:[#allocation3 + $0xc0] sm:$0xff] %vm327, %v374
    %405 = vst.msk [vmem:[#allocation3 + $0xd0] sm:$0xff] %vm327, %v375
    %406 = vst.msk [vmem:[#allocation3 + $0xe0] sm:$0xff] %vm327, %v376
    %407 = vst.msk [vmem:[#allocation3 + $0xf0] sm:$0xff] %vm327, %v377
    %408 = vst.msk [vmem:[#allocation3 + $0x100] sm:$0xff] %vm327, %v378
    %409 = vst.msk [vmem:[#allocation3 + $0x110] sm:$0xff] %vm327, %v379
    %410 = vst.msk [vmem:[#allocation3 + $0x120] sm:$0xff] %vm327, %v380
    %411 = vst.msk [vmem:[#allocation3 + $0x130] sm:$0xff] %vm327, %v381
    %412 = vst.msk [vmem:[#allocation3 + $0x140] sm:$0xff] %vm327, %v382
    %413 = vst.msk [vmem:[#allocation3 + $0x150] sm:$0xff] %vm327, %v383
    %414 = vst.msk [vmem:[#allocation3 + $0x160] sm:$0xff] %vm327, %v384
    %415 = vst.msk [vmem:[#allocation3 + $0x170] sm:$0xff] %vm327, %v385
    %416 = vst.msk [vmem:[#allocation3 + $0x180] sm:$0xff] %vm327, %v386
    %417 = vst.msk [vmem:[#allocation3 + $0x190] sm:$0xff] %vm327, %v387
    %418 = vst.msk [vmem:[#allocation3 + $0x1a0] sm:$0xff] %vm327, %v388
    %419 = vst.msk [vmem:[#allocation3 + $0x1b0] sm:$0xff] %vm327, %v389
    %420 = vst.msk [vmem:[#allocation3 + $0x1c0] sm:$0xff] %vm327, %v390
    %vm421 = vcmask 125952
    %422 = vst.msk [vmem:[#allocation3 + $0x1d0] sm:$0xf] %vm421, %v391
    %v423 = vld [vmem:[#allocation2 + $0x1] sm:$0xff]
    %v424 = vld [vmem:[#allocation2 + $0x9] sm:$0xff]
    %v425 = vld [vmem:[#allocation2 + $0x11] sm:$0xff]
    %v426 = vld [vmem:[#allocation2 + $0x19] sm:$0xff]
    %v427 = vld [vmem:[#allocation2 + $0x21] sm:$0xff]
    %v428 = vld [vmem:[#allocation2 + $0x29] sm:$0xff]
    %v429 = vld [vmem:[#allocation2 + $0x31] sm:$0xff]
    %v430 = vld [vmem:[#allocation2 + $0x39] sm:$0xff]
    %v431 = vld [vmem:[#allocation2 + $0x41] sm:$0xff]
    %v432 = vld [vmem:[#allocation2 + $0x49] sm:$0xff]
    %v433 = vld [vmem:[#allocation2 + $0x51] sm:$0xff]
    %v434 = vld [vmem:[#allocation2 + $0x59] sm:$0xff]
    %v435 = vld [vmem:[#allocation2 + $0x61] sm:$0xff]
    %v436 = vld [vmem:[#allocation2 + $0x69] sm:$0xff]
    %v437 = vld [vmem:[#allocation2 + $0x71] sm:$0xff]
    %v438 = vld [vmem:[#allocation2 + $0x79] sm:$0xff]
    %v439 = vld [vmem:[#allocation2 + $0x81] sm:$0xff]
    %v440 = vld [vmem:[#allocation2 + $0x89] sm:$0xff]
    %v441 = vld [vmem:[#allocation2 + $0x91] sm:$0xff]
    %v442 = vld [vmem:[#allocation2 + $0x99] sm:$0xff]
    %v443 = vld [vmem:[#allocation2 + $0xa1] sm:$0xff]
    %v444 = vld [vmem:[#allocation2 + $0xa9] sm:$0xff]
    %v445 = vld [vmem:[#allocation2 + $0xb1] sm:$0xff]
    %v446 = vld [vmem:[#allocation2 + $0xb9] sm:$0xff]
    %v447 = vld [vmem:[#allocation2 + $0xc1] sm:$0xff]
    %v448 = vld [vmem:[#allocation2 + $0xc9] sm:$0xff]
    %v449 = vld [vmem:[#allocation2 + $0xd1] sm:$0xff]
    %v450 = vld [vmem:[#allocation2 + $0xd9] sm:$0xff]
    %v451 = vld [vmem:[#allocation2 + $0xe1] sm:$0xff]
    %v452 = vld [vmem:[#allocation2 + $0xe9] sm:$0xf]
    %483 = vrot.lane.b32.xlu0 %v423, 16
    %v484 = vpop.permute.xlu0 %483
    %485 = vrot.lane.b32.xlu0 %v424, 16
    %v486 = vpop.permute.xlu0 %485
    %487 = vrot.lane.b32.xlu0 %v425, 16
    %v488 = vpop.permute.xlu0 %487
    %489 = vrot.lane.b32.xlu0 %v426, 16
    %v490 = vpop.permute.xlu0 %489
    %491 = vrot.lane.b32.xlu0 %v427, 16
    %v492 = vpop.permute.xlu0 %491
    %493 = vrot.lane.b32.xlu0 %v428, 16
    %v494 = vpop.permute.xlu0 %493
    %495 = vrot.lane.b32.xlu0 %v429, 16
    %v496 = vpop.permute.xlu0 %495
    %497 = vrot.lane.b32.xlu0 %v430, 16
    %v498 = vpop.permute.xlu0 %497
    %499 = vrot.lane.b32.xlu0 %v431, 16
    %v500 = vpop.permute.xlu0 %499
    %501 = vrot.lane.b32.xlu0 %v432, 16
    %v502 = vpop.permute.xlu0 %501
    %503 = vrot.lane.b32.xlu0 %v433, 16
    %v504 = vpop.permute.xlu0 %503
    %505 = vrot.lane.b32.xlu0 %v434, 16
    %v506 = vpop.permute.xlu0 %505
    %507 = vrot.lane.b32.xlu0 %v435, 16
    %v508 = vpop.permute.xlu0 %507
    %509 = vrot.lane.b32.xlu0 %v436, 16
    %v510 = vpop.permute.xlu0 %509
    %511 = vrot.lane.b32.xlu0 %v437, 16
    %v512 = vpop.permute.xlu0 %511
    %513 = vrot.lane.b32.xlu0 %v438, 16
    %v514 = vpop.permute.xlu0 %513
    %515 = vrot.lane.b32.xlu0 %v439, 16
    %v516 = vpop.permute.xlu0 %515
    %517 = vrot.lane.b32.xlu0 %v440, 16
    %v518 = vpop.permute.xlu0 %517
    %519 = vrot.lane.b32.xlu0 %v441, 16
    %v520 = vpop.permute.xlu0 %519
    %521 = vrot.lane.b32.xlu0 %v442, 16
    %v522 = vpop.permute.xlu0 %521
    %523 = vrot.lane.b32.xlu0 %v443, 16
    %v524 = vpop.permute.xlu0 %523
    %525 = vrot.lane.b32.xlu0 %v444, 16
    %v526 = vpop.permute.xlu0 %525
    %527 = vrot.lane.b32.xlu0 %v445, 16
    %v528 = vpop.permute.xlu0 %527
    %529 = vrot.lane.b32.xlu0 %v446, 16
    %v530 = vpop.permute.xlu0 %529
    %531 = vrot.lane.b32.xlu0 %v447, 16
    %v532 = vpop.permute.xlu0 %531
    %533 = vrot.lane.b32.xlu0 %v448, 16
    %v534 = vpop.permute.xlu0 %533
    %535 = vrot.lane.b32.xlu0 %v449, 16
    %v536 = vpop.permute.xlu0 %535
    %537 = vrot.lane.b32.xlu0 %v450, 16
    %v538 = vpop.permute.xlu0 %537
    %539 = vrot.lane.b32.xlu0 %v451, 16
    %v540 = vpop.permute.xlu0 %539
    %541 = vrot.lane.b32.xlu0 %v452, 16
    %v542 = vpop.permute.xlu0 %541
    %vm573 = vcmask 261248
    %574 = vst.msk [vmem:[#allocation3] sm:$0xff] %vm573, %v484
    %575 = vst.msk [vmem:[#allocation3 + $0x10] sm:$0xff] %vm573, %v486
    %576 = vst.msk [vmem:[#allocation3 + $0x20] sm:$0xff] %vm573, %v488
    %577 = vst.msk [vmem:[#allocation3 + $0x30] sm:$0xff] %vm573, %v490
    %578 = vst.msk [vmem:[#allocation3 + $0x40] sm:$0xff] %vm573, %v492
    %579 = vst.msk [vmem:[#allocation3 + $0x50] sm:$0xff] %vm573, %v494
    %580 = vst.msk [vmem:[#allocation3 + $0x60] sm:$0xff] %vm573, %v496
    %581 = vst.msk [vmem:[#allocation3 + $0x70] sm:$0xff] %vm573, %v498
    %582 = vst.msk [vmem:[#allocation3 + $0x80] sm:$0xff] %vm573, %v500
    %583 = vst.msk [vmem:[#allocation3 + $0x90] sm:$0xff] %vm573, %v502
    %584 = vst.msk [vmem:[#allocation3 + $0xa0] sm:$0xff] %vm573, %v504
    %585 = vst.msk [vmem:[#allocation3 + $0xb0] sm:$0xff] %vm573, %v506
    %586 = vst.msk [vmem:[#allocation3 + $0xc0] sm:$0xff] %vm573, %v508
    %587 = vst.msk [vmem:[#allocation3 + $0xd0] sm:$0xff] %vm573, %v510
    %588 = vst.msk [vmem:[#allocation3 + $0xe0] sm:$0xff] %vm573, %v512
    %589 = vst.msk [vmem:[#allocation3 + $0xf0] sm:$0xff] %vm573, %v514
    %590 = vst.msk [vmem:[#allocation3 + $0x100] sm:$0xff] %vm573, %v516
    %591 = vst.msk [vmem:[#allocation3 + $0x110] sm:$0xff] %vm573, %v518
    %592 = vst.msk [vmem:[#allocation3 + $0x120] sm:$0xff] %vm573, %v520
    %593 = vst.msk [vmem:[#allocation3 + $0x130] sm:$0xff] %vm573, %v522
    %594 = vst.msk [vmem:[#allocation3 + $0x140] sm:$0xff] %vm573, %v524
    %595 = vst.msk [vmem:[#allocation3 + $0x150] sm:$0xff] %vm573, %v526
    %596 = vst.msk [vmem:[#allocation3 + $0x160] sm:$0xff] %vm573, %v528
    %597 = vst.msk [vmem:[#allocation3 + $0x170] sm:$0xff] %vm573, %v530
    %598 = vst.msk [vmem:[#allocation3 + $0x180] sm:$0xff] %vm573, %v532
    %599 = vst.msk [vmem:[#allocation3 + $0x190] sm:$0xff] %vm573, %v534
    %600 = vst.msk [vmem:[#allocation3 + $0x1a0] sm:$0xff] %vm573, %v536
    %601 = vst.msk [vmem:[#allocation3 + $0x1b0] sm:$0xff] %vm573, %v538
    %602 = vst.msk [vmem:[#allocation3 + $0x1c0] sm:$0xff] %vm573, %v540
    %vm603 = vcmask 257152
    %604 = vst.msk [vmem:[#allocation3 + $0x1d0] sm:$0xf] %vm603, %v542
    %v605 = vld [vmem:[#allocation2 + $0x2] sm:$0xff]
    %v606 = vld [vmem:[#allocation2 + $0xa] sm:$0xff]
    %v607 = vld [vmem:[#allocation2 + $0x12] sm:$0xff]
    %v608 = vld [vmem:[#allocation2 + $0x1a] sm:$0xff]
    %v609 = vld [vmem:[#allocation2 + $0x22] sm:$0xff]
    %v610 = vld [vmem:[#allocation2 + $0x2a] sm:$0xff]
    %v611 = vld [vmem:[#allocation2 + $0x32] sm:$0xff]
    %v612 = vld [vmem:[#allocation2 + $0x3a] sm:$0xff]
    %v613 = vld [vmem:[#allocation2 + $0x42] sm:$0xff]
    %v614 = vld [vmem:[#allocation2 + $0x4a] sm:$0xff]
    %v615 = vld [vmem:[#allocation2 + $0x52] sm:$0xff]
    %v616 = vld [vmem:[#allocation2 + $0x5a] sm:$0xff]
    %v617 = vld [vmem:[#allocation2 + $0x62] sm:$0xff]
    %v618 = vld [vmem:[#allocation2 + $0x6a] sm:$0xff]
    %v619 = vld [vmem:[#allocation2 + $0x72] sm:$0xff]
    %v620 = vld [vmem:[#allocation2 + $0x7a] sm:$0xff]
    %v621 = vld [vmem:[#allocation2 + $0x82] sm:$0xff]
    %v622 = vld [vmem:[#allocation2 + $0x8a] sm:$0xff]
    %v623 = vld [vmem:[#allocation2 + $0x92] sm:$0xff]
    %v624 = vld [vmem:[#allocation2 + $0x9a] sm:$0xff]
    %v625 = vld [vmem:[#allocation2 + $0xa2] sm:$0xff]
    %v626 = vld [vmem:[#allocation2 + $0xaa] sm:$0xff]
    %v627 = vld [vmem:[#allocation2 + $0xb2] sm:$0xff]
    %v628 = vld [vmem:[#allocation2 + $0xba] sm:$0xff]
    %v629 = vld [vmem:[#allocation2 + $0xc2] sm:$0xff]
    %v630 = vld [vmem:[#allocation2 + $0xca] sm:$0xff]
    %v631 = vld [vmem:[#allocation2 + $0xd2] sm:$0xff]
    %v632 = vld [vmem:[#allocation2 + $0xda] sm:$0xff]
    %v633 = vld [vmem:[#allocation2 + $0xe2] sm:$0xff]
    %v634 = vld [vmem:[#allocation2 + $0xea] sm:$0xf]
    %665 = vrot.lane.b32.xlu0 %v605, 32
    %v666 = vpop.permute.xlu0 %665
    %667 = vrot.lane.b32.xlu0 %v606, 32
    %v668 = vpop.permute.xlu0 %667
    %669 = vrot.lane.b32.xlu0 %v607, 32
    %v670 = vpop.permute.xlu0 %669
    %671 = vrot.lane.b32.xlu0 %v608, 32
    %v672 = vpop.permute.xlu0 %671
    %673 = vrot.lane.b32.xlu0 %v609, 32
    %v674 = vpop.permute.xlu0 %673
    %675 = vrot.lane.b32.xlu0 %v610, 32
    %v676 = vpop.permute.xlu0 %675
    %677 = vrot.lane.b32.xlu0 %v611, 32
    %v678 = vpop.permute.xlu0 %677
    %679 = vrot.lane.b32.xlu0 %v612, 32
    %v680 = vpop.permute.xlu0 %679
    %681 = vrot.lane.b32.xlu0 %v613, 32
    %v682 = vpop.permute.xlu0 %681
    %683 = vrot.lane.b32.xlu0 %v614, 32
    %v684 = vpop.permute.xlu0 %683
    %685 = vrot.lane.b32.xlu0 %v615, 32
    %v686 = vpop.permute.xlu0 %685
    %687 = vrot.lane.b32.xlu0 %v616, 32
    %v688 = vpop.permute.xlu0 %687
    %689 = vrot.lane.b32.xlu0 %v617, 32
    %v690 = vpop.permute.xlu0 %689
    %691 = vrot.lane.b32.xlu0 %v618, 32
    %v692 = vpop.permute.xlu0 %691
    %693 = vrot.lane.b32.xlu0 %v619, 32
    %v694 = vpop.permute.xlu0 %693
    %695 = vrot.lane.b32.xlu0 %v620, 32
    %v696 = vpop.permute.xlu0 %695
    %697 = vrot.lane.b32.xlu0 %v621, 32
    %v698 = vpop.permute.xlu0 %697
    %699 = vrot.lane.b32.xlu0 %v622, 32
    %v700 = vpop.permute.xlu0 %699
    %701 = vrot.lane.b32.xlu0 %v623, 32
    %v702 = vpop.permute.xlu0 %701
    %703 = vrot.lane.b32.xlu0 %v624, 32
    %v704 = vpop.permute.xlu0 %703
    %705 = vrot.lane.b32.xlu0 %v625, 32
    %v706 = vpop.permute.xlu0 %705
    %707 = vrot.lane.b32.xlu0 %v626, 32
    %v708 = vpop.permute.xlu0 %707
    %709 = vrot.lane.b32.xlu0 %v627, 32
    %v710 = vpop.permute.xlu0 %709
    %711 = vrot.lane.b32.xlu0 %v628, 32
    %v712 = vpop.permute.xlu0 %711
    %713 = vrot.lane.b32.xlu0 %v629, 32
    %v714 = vpop.permute.xlu0 %713
    %715 = vrot.lane.b32.xlu0 %v630, 32
    %v716 = vpop.permute.xlu0 %715
    %717 = vrot.lane.b32.xlu0 %v631, 32
    %v718 = vpop.permute.xlu0 %717
    %719 = vrot.lane.b32.xlu0 %v632, 32
    %v720 = vpop.permute.xlu0 %719
    %721 = vrot.lane.b32.xlu0 %v633, 32
    %v722 = vpop.permute.xlu0 %721
    %723 = vrot.lane.b32.xlu0 %v634, 32
    %v724 = vpop.permute.xlu0 %723
    %vm755 = vcmask 392448
    %756 = vst.msk [vmem:[#allocation3] sm:$0xff] %vm755, %v666
    %757 = vst.msk [vmem:[#allocation3 + $0x10] sm:$0xff] %vm755, %v668
    %758 = vst.msk [vmem:[#allocation3 + $0x20] sm:$0xff] %vm755, %v670
    %759 = vst.msk [vmem:[#allocation3 + $0x30] sm:$0xff] %vm755, %v672
    %760 = vst.msk [vmem:[#allocation3 + $0x40] sm:$0xff] %vm755, %v674
    %761 = vst.msk [vmem:[#allocation3 + $0x50] sm:$0xff] %vm755, %v676
    %762 = vst.msk [vmem:[#allocation3 + $0x60] sm:$0xff] %vm755, %v678
    %763 = vst.msk [vmem:[#allocation3 + $0x70] sm:$0xff] %vm755, %v680
    %764 = vst.msk [vmem:[#allocation3 + $0x80] sm:$0xff] %vm755, %v682
    %765 = vst.msk [vmem:[#allocation3 + $0x90] sm:$0xff] %vm755, %v684
    %766 = vst.msk [vmem:[#allocation3 + $0xa0] sm:$0xff] %vm755, %v686
    %767 = vst.msk [vmem:[#allocation3 + $0xb0] sm:$0xff] %vm755, %v688
    %768 = vst.msk [vmem:[#allocation3 + $0xc0] sm:$0xff] %vm755, %v690
    %769 = vst.msk [vmem:[#allocation3 + $0xd0] sm:$0xff] %vm755, %v692
    %770 = vst.msk [vmem:[#allocation3 + $0xe0] sm:$0xff] %vm755, %v694
    %771 = vst.msk [vmem:[#allocation3 + $0xf0] sm:$0xff] %vm755, %v696
    %772 = vst.msk [vmem:[#allocation3 + $0x100] sm:$0xff] %vm755, %v698
    %773 = vst.msk [vmem:[#allocation3 + $0x110] sm:$0xff] %vm755, %v700
    %774 = vst.msk [vmem:[#allocation3 + $0x120] sm:$0xff] %vm755, %v702
    %775 = vst.msk [vmem:[#allocation3 + $0x130] sm:$0xff] %vm755, %v704
    %776 = vst.msk [vmem:[#allocation3 + $0x140] sm:$0xff] %vm755, %v706
    %777 = vst.msk [vmem:[#allocation3 + $0x150] sm:$0xff] %vm755, %v708
    %778 = vst.msk [vmem:[#allocation3 + $0x160] sm:$0xff] %vm755, %v710
    %779 = vst.msk [vmem:[#allocation3 + $0x170] sm:$0xff] %vm755, %v712
    %780 = vst.msk [vmem:[#allocation3 + $0x180] sm:$0xff] %vm755, %v714
    %781 = vst.msk [vmem:[#allocation3 + $0x190] sm:$0xff] %vm755, %v716
    %782 = vst.msk [vmem:[#allocation3 + $0x1a0] sm:$0xff] %vm755, %v718
    %783 = vst.msk [vmem:[#allocation3 + $0x1b0] sm:$0xff] %vm755, %v720
    %784 = vst.msk [vmem:[#allocation3 + $0x1c0] sm:$0xff] %vm755, %v722
    %vm785 = vcmask 388352
    %786 = vst.msk [vmem:[#allocation3 + $0x1d0] sm:$0xf] %vm785, %v724
    %v787 = vld [vmem:[#allocation2 + $0xc] sm:$0xff]
    %v788 = vld [vmem:[#allocation2 + $0x14] sm:$0xff]
    %v789 = vld [vmem:[#allocation2 + $0x1c] sm:$0xff]
    %v790 = vld [vmem:[#allocation2 + $0x24] sm:$0xff]
    %v791 = vld [vmem:[#allocation2 + $0x2c] sm:$0xff]
    %v792 = vld [vmem:[#allocation2 + $0x34] sm:$0xff]
    %v793 = vld [vmem:[#allocation2 + $0x3c] sm:$0xff]
    %v794 = vld [vmem:[#allocation2 + $0x44] sm:$0xff]
    %v795 = vld [vmem:[#allocation2 + $0x4c] sm:$0xff]
    %v796 = vld [vmem:[#allocation2 + $0x54] sm:$0xff]
    %v797 = vld [vmem:[#allocation2 + $0x5c] sm:$0xff]
    %v798 = vld [vmem:[#allocation2 + $0x64] sm:$0xff]
    %v799 = vld [vmem:[#allocation2 + $0x6c] sm:$0xff]
    %v800 = vld [vmem:[#allocation2 + $0x74] sm:$0xff]
    %v801 = vld [vmem:[#allocation2 + $0x7c] sm:$0xff]
    %v802 = vld [vmem:[#allocation2 + $0x84] sm:$0xff]
    %v803 = vld [vmem:[#allocation2 + $0x8c] sm:$0xff]
    %v804 = vld [vmem:[#allocation2 + $0x94] sm:$0xff]
    %v805 = vld [vmem:[#allocation2 + $0x9c] sm:$0xff]
    %v806 = vld [vmem:[#allocation2 + $0xa4] sm:$0xff]
    %v807 = vld [vmem:[#allocation2 + $0xac] sm:$0xff]
    %v808 = vld [vmem:[#allocation2 + $0xb4] sm:$0xff]
    %v809 = vld [vmem:[#allocation2 + $0xbc] sm:$0xff]
    %v810 = vld [vmem:[#allocation2 + $0xc4] sm:$0xff]
    %v811 = vld [vmem:[#allocation2 + $0xcc] sm:$0xff]
    %v812 = vld [vmem:[#allocation2 + $0xd4] sm:$0xff]
    %v813 = vld [vmem:[#allocation2 + $0xdc] sm:$0xff]
    %v814 = vld [vmem:[#allocation2 + $0xe4] sm:$0xff]
    %v815 = vld [vmem:[#allocation2 + $0xec] sm:$0xff]
    %v816 = vld [vmem:[#allocation2 + $0xf4] sm:$0xf]
    %847 = vrot.lane.b32.xlu0 %v787, 48
    %v848 = vpop.permute.xlu0 %847
    %849 = vrot.lane.b32.xlu0 %v788, 48
    %v850 = vpop.permute.xlu0 %849
    %851 = vrot.lane.b32.xlu0 %v789, 48
    %v852 = vpop.permute.xlu0 %851
    %853 = vrot.lane.b32.xlu0 %v790, 48
    %v854 = vpop.permute.xlu0 %853
    %855 = vrot.lane.b32.xlu0 %v791, 48
    %v856 = vpop.permute.xlu0 %855
    %857 = vrot.lane.b32.xlu0 %v792, 48
    %v858 = vpop.permute.xlu0 %857
    %859 = vrot.lane.b32.xlu0 %v793, 48
    %v860 = vpop.permute.xlu0 %859
    %861 = vrot.lane.b32.xlu0 %v794, 48
    %v862 = vpop.permute.xlu0 %861
    %863 = vrot.lane.b32.xlu0 %v795, 48
    %v864 = vpop.permute.xlu0 %863
    %865 = vrot.lane.b32.xlu0 %v796, 48
    %v866 = vpop.permute.xlu0 %865
    %867 = vrot.lane.b32.xlu0 %v797, 48
    %v868 = vpop.permute.xlu0 %867
    %869 = vrot.lane.b32.xlu0 %v798, 48
    %v870 = vpop.permute.xlu0 %869
    %871 = vrot.lane.b32.xlu0 %v799, 48
    %v872 = vpop.permute.xlu0 %871
    %873 = vrot.lane.b32.xlu0 %v800, 48
    %v874 = vpop.permute.xlu0 %873
    %875 = vrot.lane.b32.xlu0 %v801, 48
    %v876 = vpop.permute.xlu0 %875
    %877 = vrot.lane.b32.xlu0 %v802, 48
    %v878 = vpop.permute.xlu0 %877
    %879 = vrot.lane.b32.xlu0 %v803, 48
    %v880 = vpop.permute.xlu0 %879
    %881 = vrot.lane.b32.xlu0 %v804, 48
    %v882 = vpop.permute.xlu0 %881
    %883 = vrot.lane.b32.xlu0 %v805, 48
    %v884 = vpop.permute.xlu0 %883
    %885 = vrot.lane.b32.xlu0 %v806, 48
    %v886 = vpop.permute.xlu0 %885
    %887 = vrot.lane.b32.xlu0 %v807, 48
    %v888 = vpop.permute.xlu0 %887
    %889 = vrot.lane.b32.xlu0 %v808, 48
    %v890 = vpop.permute.xlu0 %889
    %891 = vrot.lane.b32.xlu0 %v809, 48
    %v892 = vpop.permute.xlu0 %891
    %893 = vrot.lane.b32.xlu0 %v810, 48
    %v894 = vpop.permute.xlu0 %893
    %895 = vrot.lane.b32.xlu0 %v811, 48
    %v896 = vpop.permute.xlu0 %895
    %897 = vrot.lane.b32.xlu0 %v812, 48
    %v898 = vpop.permute.xlu0 %897
    %899 = vrot.lane.b32.xlu0 %v813, 48
    %v900 = vpop.permute.xlu0 %899
    %901 = vrot.lane.b32.xlu0 %v814, 48
    %v902 = vpop.permute.xlu0 %901
    %903 = vrot.lane.b32.xlu0 %v815, 48
    %v904 = vpop.permute.xlu0 %903
    %905 = vrot.lane.b32.xlu0 %v816, 48
    %v906 = vpop.permute.xlu0 %905
    %vm937 = vcmask 523648
    %938 = vst.msk [vmem:[#allocation3] sm:$0xff] %vm937, %v848
    %939 = vst.msk [vmem:[#allocation3 + $0x10] sm:$0xff] %vm937, %v850
    %940 = vst.msk [vmem:[#allocation3 + $0x20] sm:$0xff] %vm937, %v852
    %941 = vst.msk [vmem:[#allocation3 + $0x30] sm:$0xff] %vm937, %v854
    %942 = vst.msk [vmem:[#allocation3 + $0x40] sm:$0xff] %vm937, %v856
    %943 = vst.msk [vmem:[#allocation3 + $0x50] sm:$0xff] %vm937, %v858
    %944 = vst.msk [vmem:[#allocation3 + $0x60] sm:$0xff] %vm937, %v860
    %945 = vst.msk [vmem:[#allocation3 + $0x70] sm:$0xff] %vm937, %v862
    %946 = vst.msk [vmem:[#allocation3 + $0x80] sm:$0xff] %vm937, %v864
    %947 = vst.msk [vmem:[#allocation3 + $0x90] sm:$0xff] %vm937, %v866
    %948 = vst.msk [vmem:[#allocation3 + $0xa0] sm:$0xff] %vm937, %v868
    %949 = vst.msk [vmem:[#allocation3 + $0xb0] sm:$0xff] %vm937, %v870
    %950 = vst.msk [vmem:[#allocation3 + $0xc0] sm:$0xff] %vm937, %v872
    %951 = vst.msk [vmem:[#allocation3 + $0xd0] sm:$0xff] %vm937, %v874
    %952 = vst.msk [vmem:[#allocation3 + $0xe0] sm:$0xff] %vm937, %v876
    %953 = vst.msk [vmem:[#allocation3 + $0xf0] sm:$0xff] %vm937, %v878
    %954 = vst.msk [vmem:[#allocation3 + $0x100] sm:$0xff] %vm937, %v880
    %955 = vst.msk [vmem:[#allocation3 + $0x110] sm:$0xff] %vm937, %v882
    %956 = vst.msk [vmem:[#allocation3 + $0x120] sm:$0xff] %vm937, %v884
    %957 = vst.msk [vmem:[#allocation3 + $0x130] sm:$0xff] %vm937, %v886
    %958 = vst.msk [vmem:[#allocation3 + $0x140] sm:$0xff] %vm937, %v888
    %959 = vst.msk [vmem:[#allocation3 + $0x150] sm:$0xff] %vm937, %v890
    %960 = vst.msk [vmem:[#allocation3 + $0x160] sm:$0xff] %vm937, %v892
    %961 = vst.msk [vmem:[#allocation3 + $0x170] sm:$0xff] %vm937, %v894
    %962 = vst.msk [vmem:[#allocation3 + $0x180] sm:$0xff] %vm937, %v896
    %963 = vst.msk [vmem:[#allocation3 + $0x190] sm:$0xff] %vm937, %v898
    %964 = vst.msk [vmem:[#allocation3 + $0x1a0] sm:$0xff] %vm937, %v900
    %965 = vst.msk [vmem:[#allocation3 + $0x1b0] sm:$0xff] %vm937, %v902
    %966 = vst.msk [vmem:[#allocation3 + $0x1c0] sm:$0xff] %vm937, %v904
    %vm967 = vcmask 519552
    %968 = vst.msk [vmem:[#allocation3 + $0x1d0] sm:$0xf] %vm967, %v906
    %v969 = vld [vmem:[#allocation2 + $0xd] sm:$0xff]
    %v970 = vld [vmem:[#allocation2 + $0x15] sm:$0xff]
    %v971 = vld [vmem:[#allocation2 + $0x1d] sm:$0xff]
    %v972 = vld [vmem:[#allocation2 + $0x25] sm:$0xff]
    %v973 = vld [vmem:[#allocation2 + $0x2d] sm:$0xff]
    %v974 = vld [vmem:[#allocation2 + $0x35] sm:$0xff]
    %v975 = vld [vmem:[#allocation2 + $0x3d] sm:$0xff]
    %v976 = vld [vmem:[#allocation2 + $0x45] sm:$0xff]
    %v977 = vld [vmem:[#allocation2 + $0x4d] sm:$0xff]
    %v978 = vld [vmem:[#allocation2 + $0x55] sm:$0xff]
    %v979 = vld [vmem:[#allocation2 + $0x5d] sm:$0xff]
    %v980 = vld [vmem:[#allocation2 + $0x65] sm:$0xff]
    %v981 = vld [vmem:[#allocation2 + $0x6d] sm:$0xff]
    %v982 = vld [vmem:[#allocation2 + $0x75] sm:$0xff]
    %v983 = vld [vmem:[#allocation2 + $0x7d] sm:$0xff]
    %v984 = vld [vmem:[#allocation2 + $0x85] sm:$0xff]
    %v985 = vld [vmem:[#allocation2 + $0x8d] sm:$0xff]
    %v986 = vld [vmem:[#allocation2 + $0x95] sm:$0xff]
    %v987 = vld [vmem:[#allocation2 + $0x9d] sm:$0xff]
    %v988 = vld [vmem:[#allocation2 + $0xa5] sm:$0xff]
    %v989 = vld [vmem:[#allocation2 + $0xad] sm:$0xff]
    %v990 = vld [vmem:[#allocation2 + $0xb5] sm:$0xff]
    %v991 = vld [vmem:[#allocation2 + $0xbd] sm:$0xff]
    %v992 = vld [vmem:[#allocation2 + $0xc5] sm:$0xff]
    %v993 = vld [vmem:[#allocation2 + $0xcd] sm:$0xff]
    %v994 = vld [vmem:[#allocation2 + $0xd5] sm:$0xff]
    %v995 = vld [vmem:[#allocation2 + $0xdd] sm:$0xff]
    %v996 = vld [vmem:[#allocation2 + $0xe5] sm:$0xff]
    %v997 = vld [vmem:[#allocation2 + $0xed] sm:$0xff]
    %v998 = vld [vmem:[#allocation2 + $0xf5] sm:$0xf]
    %1029 = vrot.lane.b32.xlu0 %v969, 64
    %v1030 = vpop.permute.xlu0 %1029
    %1031 = vrot.lane.b32.xlu0 %v970, 64
    %v1032 = vpop.permute.xlu0 %1031
    %1033 = vrot.lane.b32.xlu0 %v971, 64
    %v1034 = vpop.permute.xlu0 %1033
    %1035 = vrot.lane.b32.xlu0 %v972, 64
    %v1036 = vpop.permute.xlu0 %1035
    %1037 = vrot.lane.b32.xlu0 %v973, 64
    %v1038 = vpop.permute.xlu0 %1037
    %1039 = vrot.lane.b32.xlu0 %v974, 64
    %v1040 = vpop.permute.xlu0 %1039
    %1041 = vrot.lane.b32.xlu0 %v975, 64
    %v1042 = vpop.permute.xlu0 %1041
    %1043 = vrot.lane.b32.xlu0 %v976, 64
    %v1044 = vpop.permute.xlu0 %1043
    %1045 = vrot.lane.b32.xlu0 %v977, 64
    %v1046 = vpop.permute.xlu0 %1045
    %1047 = vrot.lane.b32.xlu0 %v978, 64
    %v1048 = vpop.permute.xlu0 %1047
    %1049 = vrot.lane.b32.xlu0 %v979, 64
    %v1050 = vpop.permute.xlu0 %1049
    %1051 = vrot.lane.b32.xlu0 %v980, 64
    %v1052 = vpop.permute.xlu0 %1051
    %1053 = vrot.lane.b32.xlu0 %v981, 64
    %v1054 = vpop.permute.xlu0 %1053
    %1055 = vrot.lane.b32.xlu0 %v982, 64
    %v1056 = vpop.permute.xlu0 %1055
    %1057 = vrot.lane.b32.xlu0 %v983, 64
    %v1058 = vpop.permute.xlu0 %1057
    %1059 = vrot.lane.b32.xlu0 %v984, 64
    %v1060 = vpop.permute.xlu0 %1059
    %1061 = vrot.lane.b32.xlu0 %v985, 64
    %v1062 = vpop.permute.xlu0 %1061
    %1063 = vrot.lane.b32.xlu0 %v986, 64
    %v1064 = vpop.permute.xlu0 %1063
    %1065 = vrot.lane.b32.xlu0 %v987, 64
    %v1066 = vpop.permute.xlu0 %1065
    %1067 = vrot.lane.b32.xlu0 %v988, 64
    %v1068 = vpop.permute.xlu0 %1067
    %1069 = vrot.lane.b32.xlu0 %v989, 64
    %v1070 = vpop.permute.xlu0 %1069
    %1071 = vrot.lane.b32.xlu0 %v990, 64
    %v1072 = vpop.permute.xlu0 %1071
    %1073 = vrot.lane.b32.xlu0 %v991, 64
    %v1074 = vpop.permute.xlu0 %1073
    %1075 = vrot.lane.b32.xlu0 %v992, 64
    %v1076 = vpop.permute.xlu0 %1075
    %1077 = vrot.lane.b32.xlu0 %v993, 64
    %v1078 = vpop.permute.xlu0 %1077
    %1079 = vrot.lane.b32.xlu0 %v994, 64
    %v1080 = vpop.permute.xlu0 %1079
    %1081 = vrot.lane.b32.xlu0 %v995, 64
    %v1082 = vpop.permute.xlu0 %1081
    %1083 = vrot.lane.b32.xlu0 %v996, 64
    %v1084 = vpop.permute.xlu0 %1083
    %1085 = vrot.lane.b32.xlu0 %v997, 64
    %v1086 = vpop.permute.xlu0 %1085
    %1087 = vrot.lane.b32.xlu0 %v998, 64
    %v1088 = vpop.permute.xlu0 %1087
    %vm1119 = vcmask 654848
    %1120 = vst.msk [vmem:[#allocation3] sm:$0xff] %vm1119, %v1030
    %1121 = vst.msk [vmem:[#allocation3 + $0x10] sm:$0xff] %vm1119, %v1032
    %1122 = vst.msk [vmem:[#allocation3 + $0x20] sm:$0xff] %vm1119, %v1034
    %1123 = vst.msk [vmem:[#allocation3 + $0x30] sm:$0xff] %vm1119, %v1036
    %1124 = vst.msk [vmem:[#allocation3 + $0x40] sm:$0xff] %vm1119, %v1038
    %1125 = vst.msk [vmem:[#allocation3 + $0x50] sm:$0xff] %vm1119, %v1040
    %1126 = vst.msk [vmem:[#allocation3 + $0x60] sm:$0xff] %vm1119, %v1042
    %1127 = vst.msk [vmem:[#allocation3 + $0x70] sm:$0xff] %vm1119, %v1044
    %1128 = vst.msk [vmem:[#allocation3 + $0x80] sm:$0xff] %vm1119, %v1046
    %1129 = vst.msk [vmem:[#allocation3 + $0x90] sm:$0xff] %vm1119, %v1048
    %1130 = vst.msk [vmem:[#allocation3 + $0xa0] sm:$0xff] %vm1119, %v1050
    %1131 = vst.msk [vmem:[#allocation3 + $0xb0] sm:$0xff] %vm1119, %v1052
    %1132 = vst.msk [vmem:[#allocation3 + $0xc0] sm:$0xff] %vm1119, %v1054
    %1133 = vst.msk [vmem:[#allocation3 + $0xd0] sm:$0xff] %vm1119, %v1056
    %1134 = vst.msk [vmem:[#allocation3 + $0xe0] sm:$0xff] %vm1119, %v1058
    %1135 = vst.msk [vmem:[#allocation3 + $0xf0] sm:$0xff] %vm1119, %v1060
    %1136 = vst.msk [vmem:[#allocation3 + $0x100] sm:$0xff] %vm1119, %v1062
    %1137 = vst.msk [vmem:[#allocation3 + $0x110] sm:$0xff] %vm1119, %v1064
    %1138 = vst.msk [vmem:[#allocation3 + $0x120] sm:$0xff] %vm1119, %v1066
    %1139 = vst.msk [vmem:[#allocation3 + $0x130] sm:$0xff] %vm1119, %v1068
    %1140 = vst.msk [vmem:[#allocation3 + $0x140] sm:$0xff] %vm1119, %v1070
    %1141 = vst.msk [vmem:[#allocation3 + $0x150] sm:$0xff] %vm1119, %v1072
    %1142 = vst.msk [vmem:[#allocation3 + $0x160] sm:$0xff] %vm1119, %v1074
    %1143 = vst.msk [vmem:[#allocation3 + $0x170] sm:$0xff] %vm1119, %v1076
    %1144 = vst.msk [vmem:[#allocation3 + $0x180] sm:$0xff] %vm1119, %v1078
    %1145 = vst.msk [vmem:[#allocation3 + $0x190] sm:$0xff] %vm1119, %v1080
    %1146 = vst.msk [vmem:[#allocation3 + $0x1a0] sm:$0xff] %vm1119, %v1082
    %1147 = vst.msk [vmem:[#allocation3 + $0x1b0] sm:$0xff] %vm1119, %v1084
    %1148 = vst.msk [vmem:[#allocation3 + $0x1c0] sm:$0xff] %vm1119, %v1086
    %vm1149 = vcmask 650752
    %1150 = vst.msk [vmem:[#allocation3 + $0x1d0] sm:$0xf] %vm1149, %v1088
    %v1151 = vld [vmem:[#allocation2 + $0xe] sm:$0xff]
    %v1152 = vld [vmem:[#allocation2 + $0x16] sm:$0xff]
    %v1153 = vld [vmem:[#allocation2 + $0x1e] sm:$0xff]
    %v1154 = vld [vmem:[#allocation2 + $0x26] sm:$0xff]
    %v1155 = vld [vmem:[#allocation2 + $0x2e] sm:$0xff]
    %v1156 = vld [vmem:[#allocation2 + $0x36] sm:$0xff]
    %v1157 = vld [vmem:[#allocation2 + $0x3e] sm:$0xff]
    %v1158 = vld [vmem:[#allocation2 + $0x46] sm:$0xff]
    %v1159 = vld [vmem:[#allocation2 + $0x4e] sm:$0xff]
    %v1160 = vld [vmem:[#allocation2 + $0x56] sm:$0xff]
    %v1161 = vld [vmem:[#allocation2 + $0x5e] sm:$0xff]
    %v1162 = vld [vmem:[#allocation2 + $0x66] sm:$0xff]
    %v1163 = vld [vmem:[#allocation2 + $0x6e] sm:$0xff]
    %v1164 = vld [vmem:[#allocation2 + $0x76] sm:$0xff]
    %v1165 = vld [vmem:[#allocation2 + $0x7e] sm:$0xff]
    %v1166 = vld [vmem:[#allocation2 + $0x86] sm:$0xff]
    %v1167 = vld [vmem:[#allocation2 + $0x8e] sm:$0xff]
    %v1168 = vld [vmem:[#allocation2 + $0x96] sm:$0xff]
    %v1169 = vld [vmem:[#allocation2 + $0x9e] sm:$0xff]
    %v1170 = vld [vmem:[#allocation2 + $0xa6] sm:$0xff]
    %v1171 = vld [vmem:[#allocation2 + $0xae] sm:$0xff]
    %v1172 = vld [vmem:[#allocation2 + $0xb6] sm:$0xff]
    %v1173 = vld [vmem:[#allocation2 + $0xbe] sm:$0xff]
    %v1174 = vld [vmem:[#allocation2 + $0xc6] sm:$0xff]
    %v1175 = vld [vmem:[#allocation2 + $0xce] sm:$0xff]
    %v1176 = vld [vmem:[#allocation2 + $0xd6] sm:$0xff]
    %v1177 = vld [vmem:[#allocation2 + $0xde] sm:$0xff]
    %v1178 = vld [vmem:[#allocation2 + $0xe6] sm:$0xff]
    %v1179 = vld [vmem:[#allocation2 + $0xee] sm:$0xff]
    %v1180 = vld [vmem:[#allocation2 + $0xf6] sm:$0xf]
    %1211 = vrot.lane.b32.xlu0 %v1151, 80
    %v1212 = vpop.permute.xlu0 %1211
    %1213 = vrot.lane.b32.xlu0 %v1152, 80
    %v1214 = vpop.permute.xlu0 %1213
    %1215 = vrot.lane.b32.xlu0 %v1153, 80
    %v1216 = vpop.permute.xlu0 %1215
    %1217 = vrot.lane.b32.xlu0 %v1154, 80
    %v1218 = vpop.permute.xlu0 %1217
    %1219 = vrot.lane.b32.xlu0 %v1155, 80
    %v1220 = vpop.permute.xlu0 %1219
    %1221 = vrot.lane.b32.xlu0 %v1156, 80
    %v1222 = vpop.permute.xlu0 %1221
    %1223 = vrot.lane.b32.xlu0 %v1157, 80
    %v1224 = vpop.permute.xlu0 %1223
    %1225 = vrot.lane.b32.xlu0 %v1158, 80
    %v1226 = vpop.permute.xlu0 %1225
    %1227 = vrot.lane.b32.xlu0 %v1159, 80
    %v1228 = vpop.permute.xlu0 %1227
    %1229 = vrot.lane.b32.xlu0 %v1160, 80
    %v1230 = vpop.permute.xlu0 %1229
    %1231 = vrot.lane.b32.xlu0 %v1161, 80
    %v1232 = vpop.permute.xlu0 %1231
    %1233 = vrot.lane.b32.xlu0 %v1162, 80
    %v1234 = vpop.permute.xlu0 %1233
    %1235 = vrot.lane.b32.xlu0 %v1163, 80
    %v1236 = vpop.permute.xlu0 %1235
    %1237 = vrot.lane.b32.xlu0 %v1164, 80
    %v1238 = vpop.permute.xlu0 %1237
    %1239 = vrot.lane.b32.xlu0 %v1165, 80
    %v1240 = vpop.permute.xlu0 %1239
    %1241 = vrot.lane.b32.xlu0 %v1166, 80
    %v1242 = vpop.permute.xlu0 %1241
    %1243 = vrot.lane.b32.xlu0 %v1167, 80
    %v1244 = vpop.permute.xlu0 %1243
    %1245 = vrot.lane.b32.xlu0 %v1168, 80
    %v1246 = vpop.permute.xlu0 %1245
    %1247 = vrot.lane.b32.xlu0 %v1169, 80
    %v1248 = vpop.permute.xlu0 %1247
    %1249 = vrot.lane.b32.xlu0 %v1170, 80
    %v1250 = vpop.permute.xlu0 %1249
    %1251 = vrot.lane.b32.xlu0 %v1171, 80
    %v1252 = vpop.permute.xlu0 %1251
    %1253 = vrot.lane.b32.xlu0 %v1172, 80
    %v1254 = vpop.permute.xlu0 %1253
    %1255 = vrot.lane.b32.xlu0 %v1173, 80
    %v1256 = vpop.permute.xlu0 %1255
    %1257 = vrot.lane.b32.xlu0 %v1174, 80
    %v1258 = vpop.permute.xlu0 %1257
    %1259 = vrot.lane.b32.xlu0 %v1175, 80
    %v1260 = vpop.permute.xlu0 %1259
    %1261 = vrot.lane.b32.xlu0 %v1176, 80
    %v1262 = vpop.permute.xlu0 %1261
    %1263 = vrot.lane.b32.xlu0 %v1177, 80
    %v1264 = vpop.permute.xlu0 %1263
    %1265 = vrot.lane.b32.xlu0 %v1178, 80
    %v1266 = vpop.permute.xlu0 %1265
    %1267 = vrot.lane.b32.xlu0 %v1179, 80
    %v1268 = vpop.permute.xlu0 %1267
    %1269 = vrot.lane.b32.xlu0 %v1180, 80
    %v1270 = vpop.permute.xlu0 %1269
    %vm1301 = vcmask 786048
    %1302 = vst.msk [vmem:[#allocation3] sm:$0xff] %vm1301, %v1212
    %1303 = vst.msk [vmem:[#allocation3 + $0x10] sm:$0xff] %vm1301, %v1214
    %1304 = vst.msk [vmem:[#allocation3 + $0x20] sm:$0xff] %vm1301, %v1216
    %1305 = vst.msk [vmem:[#allocation3 + $0x30] sm:$0xff] %vm1301, %v1218
    %1306 = vst.msk [vmem:[#allocation3 + $0x40] sm:$0xff] %vm1301, %v1220
    %1307 = vst.msk [vmem:[#allocation3 + $0x50] sm:$0xff] %vm1301, %v1222
    %1308 = vst.msk [vmem:[#allocation3 + $0x60] sm:$0xff] %vm1301, %v1224
    %1309 = vst.msk [vmem:[#allocation3 + $0x70] sm:$0xff] %vm1301, %v1226
    %1310 = vst.msk [vmem:[#allocation3 + $0x80] sm:$0xff] %vm1301, %v1228
    %1311 = vst.msk [vmem:[#allocation3 + $0x90] sm:$0xff] %vm1301, %v1230
    %1312 = vst.msk [vmem:[#allocation3 + $0xa0] sm:$0xff] %vm1301, %v1232
    %1313 = vst.msk [vmem:[#allocation3 + $0xb0] sm:$0xff] %vm1301, %v1234
    %1314 = vst.msk [vmem:[#allocation3 + $0xc0] sm:$0xff] %vm1301, %v1236
    %1315 = vst.msk [vmem:[#allocation3 + $0xd0] sm:$0xff] %vm1301, %v1238
    %1316 = vst.msk [vmem:[#allocation3 + $0xe0] sm:$0xff] %vm1301, %v1240
    %1317 = vst.msk [vmem:[#allocation3 + $0xf0] sm:$0xff] %vm1301, %v1242
    %1318 = vst.msk [vmem:[#allocation3 + $0x100] sm:$0xff] %vm1301, %v1244
    %1319 = vst.msk [vmem:[#allocation3 + $0x110] sm:$0xff] %vm1301, %v1246
    %1320 = vst.msk [vmem:[#allocation3 + $0x120] sm:$0xff] %vm1301, %v1248
    %1321 = vst.msk [vmem:[#allocation3 + $0x130] sm:$0xff] %vm1301, %v1250
    %1322 = vst.msk [vmem:[#allocation3 + $0x140] sm:$0xff] %vm1301, %v1252
    %1323 = vst.msk [vmem:[#allocation3 + $0x150] sm:$0xff] %vm1301, %v1254
    %1324 = vst.msk [vmem:[#allocation3 + $0x160] sm:$0xff] %vm1301, %v1256
    %1325 = vst.msk [vmem:[#allocation3 + $0x170] sm:$0xff] %vm1301, %v1258
    %1326 = vst.msk [vmem:[#allocation3 + $0x180] sm:$0xff] %vm1301, %v1260
    %1327 = vst.msk [vmem:[#allocation3 + $0x190] sm:$0xff] %vm1301, %v1262
    %1328 = vst.msk [vmem:[#allocation3 + $0x1a0] sm:$0xff] %vm1301, %v1264
    %1329 = vst.msk [vmem:[#allocation3 + $0x1b0] sm:$0xff] %vm1301, %v1266
    %1330 = vst.msk [vmem:[#allocation3 + $0x1c0] sm:$0xff] %vm1301, %v1268
    %vm1331 = vcmask 781952
    %1332 = vst.msk [vmem:[#allocation3 + $0x1d0] sm:$0xf] %vm1331, %v1270
    %v1333 = vld [vmem:[#allocation2 + $0x18] sm:$0xff]
    %v1334 = vld [vmem:[#allocation2 + $0x20] sm:$0xff]
    %v1335 = vld [vmem:[#allocation2 + $0x28] sm:$0xff]
    %v1336 = vld [vmem:[#allocation2 + $0x30] sm:$0xff]
    %v1337 = vld [vmem:[#allocation2 + $0x38] sm:$0xff]
    %v1338 = vld [vmem:[#allocation2 + $0x40] sm:$0xff]
    %v1339 = vld [vmem:[#allocation2 + $0x48] sm:$0xff]
    %v1340 = vld [vmem:[#allocation2 + $0x50] sm:$0xff]
    %v1341 = vld [vmem:[#allocation2 + $0x58] sm:$0xff]
    %v1342 = vld [vmem:[#allocation2 + $0x60] sm:$0xff]
    %v1343 = vld [vmem:[#allocation2 + $0x68] sm:$0xff]
    %v1344 = vld [vmem:[#allocation2 + $0x70] sm:$0xff]
    %v1345 = vld [vmem:[#allocation2 + $0x78] sm:$0xff]
    %v1346 = vld [vmem:[#allocation2 + $0x80] sm:$0xff]
    %v1347 = vld [vmem:[#allocation2 + $0x88] sm:$0xff]
    %v1348 = vld [vmem:[#allocation2 + $0x90] sm:$0xff]
    %v1349 = vld [vmem:[#allocation2 + $0x98] sm:$0xff]
    %v1350 = vld [vmem:[#allocation2 + $0xa0] sm:$0xff]
    %v1351 = vld [vmem:[#allocation2 + $0xa8] sm:$0xff]
    %v1352 = vld [vmem:[#allocation2 + $0xb0] sm:$0xff]
    %v1353 = vld [vmem:[#allocation2 + $0xb8] sm:$0xff]
    %v1354 = vld [vmem:[#allocation2 + $0xc0] sm:$0xff]
    %v1355 = vld [vmem:[#allocation2 + $0xc8] sm:$0xff]
    %v1356 = vld [vmem:[#allocation2 + $0xd0] sm:$0xff]
    %v1357 = vld [vmem:[#allocation2 + $0xd8] sm:$0xff]
    %v1358 = vld [vmem:[#allocation2 + $0xe0] sm:$0xff]
    %v1359 = vld [vmem:[#allocation2 + $0xe8] sm:$0xff]
    %v1360 = vld [vmem:[#allocation2 + $0xf0] sm:$0xff]
    %v1361 = vld [vmem:[#allocation2 + $0xf8] sm:$0xff]
    %v1362 = vld [vmem:[#allocation2 + $0x100] sm:$0xf]
    %1393 = vrot.lane.b32.xlu0 %v1333, 96
    %v1394 = vpop.permute.xlu0 %1393
    %1395 = vrot.lane.b32.xlu0 %v1334, 96
    %v1396 = vpop.permute.xlu0 %1395
    %1397 = vrot.lane.b32.xlu0 %v1335, 96
    %v1398 = vpop.permute.xlu0 %1397
    %1399 = vrot.lane.b32.xlu0 %v1336, 96
    %v1400 = vpop.permute.xlu0 %1399
    %1401 = vrot.lane.b32.xlu0 %v1337, 96
    %v1402 = vpop.permute.xlu0 %1401
    %1403 = vrot.lane.b32.xlu0 %v1338, 96
    %v1404 = vpop.permute.xlu0 %1403
    %1405 = vrot.lane.b32.xlu0 %v1339, 96
    %v1406 = vpop.permute.xlu0 %1405
    %1407 = vrot.lane.b32.xlu0 %v1340, 96
    %v1408 = vpop.permute.xlu0 %1407
    %1409 = vrot.lane.b32.xlu0 %v1341, 96
    %v1410 = vpop.permute.xlu0 %1409
    %1411 = vrot.lane.b32.xlu0 %v1342, 96
    %v1412 = vpop.permute.xlu0 %1411
    %1413 = vrot.lane.b32.xlu0 %v1343, 96
    %v1414 = vpop.permute.xlu0 %1413
    %1415 = vrot.lane.b32.xlu0 %v1344, 96
    %v1416 = vpop.permute.xlu0 %1415
    %1417 = vrot.lane.b32.xlu0 %v1345, 96
    %v1418 = vpop.permute.xlu0 %1417
    %1419 = vrot.lane.b32.xlu0 %v1346, 96
    %v1420 = vpop.permute.xlu0 %1419
    %1421 = vrot.lane.b32.xlu0 %v1347, 96
    %v1422 = vpop.permute.xlu0 %1421
    %1423 = vrot.lane.b32.xlu0 %v1348, 96
    %v1424 = vpop.permute.xlu0 %1423
    %1425 = vrot.lane.b32.xlu0 %v1349, 96
    %v1426 = vpop.permute.xlu0 %1425
    %1427 = vrot.lane.b32.xlu0 %v1350, 96
    %v1428 = vpop.permute.xlu0 %1427
    %1429 = vrot.lane.b32.xlu0 %v1351, 96
    %v1430 = vpop.permute.xlu0 %1429
    %1431 = vrot.lane.b32.xlu0 %v1352, 96
    %v1432 = vpop.permute.xlu0 %1431
    %1433 = vrot.lane.b32.xlu0 %v1353, 96
    %v1434 = vpop.permute.xlu0 %1433
    %1435 = vrot.lane.b32.xlu0 %v1354, 96
    %v1436 = vpop.permute.xlu0 %1435
    %1437 = vrot.lane.b32.xlu0 %v1355, 96
    %v1438 = vpop.permute.xlu0 %1437
    %1439 = vrot.lane.b32.xlu0 %v1356, 96
    %v1440 = vpop.permute.xlu0 %1439
    %1441 = vrot.lane.b32.xlu0 %v1357, 96
    %v1442 = vpop.permute.xlu0 %1441
    %1443 = vrot.lane.b32.xlu0 %v1358, 96
    %v1444 = vpop.permute.xlu0 %1443
    %1445 = vrot.lane.b32.xlu0 %v1359, 96
    %v1446 = vpop.permute.xlu0 %1445
    %1447 = vrot.lane.b32.xlu0 %v1360, 96
    %v1448 = vpop.permute.xlu0 %1447
    %1449 = vrot.lane.b32.xlu0 %v1361, 96
    %v1450 = vpop.permute.xlu0 %1449
    %1451 = vrot.lane.b32.xlu0 %v1362, 96
    %v1452 = vpop.permute.xlu0 %1451
    %vm1483 = vcmask 917248
    %1484 = vst.msk [vmem:[#allocation3] sm:$0xff] %vm1483, %v1394
    %1485 = vst.msk [vmem:[#allocation3 + $0x10] sm:$0xff] %vm1483, %v1396
    %1486 = vst.msk [vmem:[#allocation3 + $0x20] sm:$0xff] %vm1483, %v1398
    %1487 = vst.msk [vmem:[#allocation3 + $0x30] sm:$0xff] %vm1483, %v1400
    %1488 = vst.msk [vmem:[#allocation3 + $0x40] sm:$0xff] %vm1483, %v1402
    %1489 = vst.msk [vmem:[#allocation3 + $0x50] sm:$0xff] %vm1483, %v1404
    %1490 = vst.msk [vmem:[#allocation3 + $0x60] sm:$0xff] %vm1483, %v1406
    %1491 = vst.msk [vmem:[#allocation3 + $0x70] sm:$0xff] %vm1483, %v1408
    %1492 = vst.msk [vmem:[#allocation3 + $0x80] sm:$0xff] %vm1483, %v1410
    %1493 = vst.msk [vmem:[#allocation3 + $0x90] sm:$0xff] %vm1483, %v1412
    %1494 = vst.msk [vmem:[#allocation3 + $0xa0] sm:$0xff] %vm1483, %v1414
    %1495 = vst.msk [vmem:[#allocation3 + $0xb0] sm:$0xff] %vm1483, %v1416
    %1496 = vst.msk [vmem:[#allocation3 + $0xc0] sm:$0xff] %vm1483, %v1418
    %1497 = vst.msk [vmem:[#allocation3 + $0xd0] sm:$0xff] %vm1483, %v1420
    %1498 = vst.msk [vmem:[#allocation3 + $0xe0] sm:$0xff] %vm1483, %v1422
    %1499 = vst.msk [vmem:[#allocation3 + $0xf0] sm:$0xff] %vm1483, %v1424
    %1500 = vst.msk [vmem:[#allocation3 + $0x100] sm:$0xff] %vm1483, %v1426
    %1501 = vst.msk [vmem:[#allocation3 + $0x110] sm:$0xff] %vm1483, %v1428
    %1502 = vst.msk [vmem:[#allocation3 + $0x120] sm:$0xff] %vm1483, %v1430
    %1503 = vst.msk [vmem:[#allocation3 + $0x130] sm:$0xff] %vm1483, %v1432
    %1504 = vst.msk [vmem:[#allocation3 + $0x140] sm:$0xff] %vm1483, %v1434
    %1505 = vst.msk [vmem:[#allocation3 + $0x150] sm:$0xff] %vm1483, %v1436
    %1506 = vst.msk [vmem:[#allocation3 + $0x160] sm:$0xff] %vm1483, %v1438
    %1507 = vst.msk [vmem:[#allocation3 + $0x170] sm:$0xff] %vm1483, %v1440
    %1508 = vst.msk [vmem:[#allocation3 + $0x180] sm:$0xff] %vm1483, %v1442
    %1509 = vst.msk [vmem:[#allocation3 + $0x190] sm:$0xff] %vm1483, %v1444
    %1510 = vst.msk [vmem:[#allocation3 + $0x1a0] sm:$0xff] %vm1483, %v1446
    %1511 = vst.msk [vmem:[#allocation3 + $0x1b0] sm:$0xff] %vm1483, %v1448
    %1512 = vst.msk [vmem:[#allocation3 + $0x1c0] sm:$0xff] %vm1483, %v1450
    %vm1513 = vcmask 913152
    %1514 = vst.msk [vmem:[#allocation3 + $0x1d0] sm:$0xf] %vm1513, %v1452
    %v1515 = vld [vmem:[#allocation2 + $0x19] sm:$0xff]
    %v1516 = vld [vmem:[#allocation2 + $0x21] sm:$0xff]
    %v1517 = vld [vmem:[#allocation2 + $0x29] sm:$0xff]
    %v1518 = vld [vmem:[#allocation2 + $0x31] sm:$0xff]
    %v1519 = vld [vmem:[#allocation2 + $0x39] sm:$0xff]
    %v1520 = vld [vmem:[#allocation2 + $0x41] sm:$0xff]
    %v1521 = vld [vmem:[#allocation2 + $0x49] sm:$0xff]
    %v1522 = vld [vmem:[#allocation2 + $0x51] sm:$0xff]
    %v1523 = vld [vmem:[#allocation2 + $0x59] sm:$0xff]
    %v1524 = vld [vmem:[#allocation2 + $0x61] sm:$0xff]
    %v1525 = vld [vmem:[#allocation2 + $0x69] sm:$0xff]
    %v1526 = vld [vmem:[#allocation2 + $0x71] sm:$0xff]
    %v1527 = vld [vmem:[#allocation2 + $0x79] sm:$0xff]
    %v1528 = vld [vmem:[#allocation2 + $0x81] sm:$0xff]
    %v1529 = vld [vmem:[#allocation2 + $0x89] sm:$0xff]
    %v1530 = vld [vmem:[#allocation2 + $0x91] sm:$0xff]
    %v1531 = vld [vmem:[#allocation2 + $0x99] sm:$0xff]
    %v1532 = vld [vmem:[#allocation2 + $0xa1] sm:$0xff]
    %v1533 = vld [vmem:[#allocation2 + $0xa9] sm:$0xff]
    %v1534 = vld [vmem:[#allocation2 + $0xb1] sm:$0xff]
    %v1535 = vld [vmem:[#allocation2 + $0xb9] sm:$0xff]
    %v1536 = vld [vmem:[#allocation2 + $0xc1] sm:$0xff]
    %v1537 = vld [vmem:[#allocation2 + $0xc9] sm:$0xff]
    %v1538 = vld [vmem:[#allocation2 + $0xd1] sm:$0xff]
    %v1539 = vld [vmem:[#allocation2 + $0xd9] sm:$0xff]
    %v1540 = vld [vmem:[#allocation2 + $0xe1] sm:$0xff]
    %v1541 = vld [vmem:[#allocation2 + $0xe9] sm:$0xff]
    %v1542 = vld [vmem:[#allocation2 + $0xf1] sm:$0xff]
    %v1543 = vld [vmem:[#allocation2 + $0xf9] sm:$0xff]
    %v1544 = vld [vmem:[#allocation2 + $0x101] sm:$0xf]
    %1575 = vrot.lane.b32.xlu0 %v1515, 112
    %v1576 = vpop.permute.xlu0 %1575
    %1577 = vrot.lane.b32.xlu0 %v1516, 112
    %v1578 = vpop.permute.xlu0 %1577
    %1579 = vrot.lane.b32.xlu0 %v1517, 112
    %v1580 = vpop.permute.xlu0 %1579
    %1581 = vrot.lane.b32.xlu0 %v1518, 112
    %v1582 = vpop.permute.xlu0 %1581
    %1583 = vrot.lane.b32.xlu0 %v1519, 112
    %v1584 = vpop.permute.xlu0 %1583
    %1585 = vrot.lane.b32.xlu0 %v1520, 112
    %v1586 = vpop.permute.xlu0 %1585
    %1587 = vrot.lane.b32.xlu0 %v1521, 112
    %v1588 = vpop.permute.xlu0 %1587
    %1589 = vrot.lane.b32.xlu0 %v1522, 112
    %v1590 = vpop.permute.xlu0 %1589
    %1591 = vrot.lane.b32.xlu0 %v1523, 112
    %v1592 = vpop.permute.xlu0 %1591
    %1593 = vrot.lane.b32.xlu0 %v1524, 112
    %v1594 = vpop.permute.xlu0 %1593
    %1595 = vrot.lane.b32.xlu0 %v1525, 112
    %v1596 = vpop.permute.xlu0 %1595
    %1597 = vrot.lane.b32.xlu0 %v1526, 112
    %v1598 = vpop.permute.xlu0 %1597
    %1599 = vrot.lane.b32.xlu0 %v1527, 112
    %v1600 = vpop.permute.xlu0 %1599
    %1601 = vrot.lane.b32.xlu0 %v1528, 112
    %v1602 = vpop.permute.xlu0 %1601
    %1603 = vrot.lane.b32.xlu0 %v1529, 112
    %v1604 = vpop.permute.xlu0 %1603
    %1605 = vrot.lane.b32.xlu0 %v1530, 112
    %v1606 = vpop.permute.xlu0 %1605
    %1607 = vrot.lane.b32.xlu0 %v1531, 112
    %v1608 = vpop.permute.xlu0 %1607
    %1609 = vrot.lane.b32.xlu0 %v1532, 112
    %v1610 = vpop.permute.xlu0 %1609
    %1611 = vrot.lane.b32.xlu0 %v1533, 112
    %v1612 = vpop.permute.xlu0 %1611
    %1613 = vrot.lane.b32.xlu0 %v1534, 112
    %v1614 = vpop.permute.xlu0 %1613
    %1615 = vrot.lane.b32.xlu0 %v1535, 112
    %v1616 = vpop.permute.xlu0 %1615
    %1617 = vrot.lane.b32.xlu0 %v1536, 112
    %v1618 = vpop.permute.xlu0 %1617
    %1619 = vrot.lane.b32.xlu0 %v1537, 112
    %v1620 = vpop.permute.xlu0 %1619
    %1621 = vrot.lane.b32.xlu0 %v1538, 112
    %v1622 = vpop.permute.xlu0 %1621
    %1623 = vrot.lane.b32.xlu0 %v1539, 112
    %v1624 = vpop.permute.xlu0 %1623
    %1625 = vrot.lane.b32.xlu0 %v1540, 112
    %v1626 = vpop.permute.xlu0 %1625
    %1627 = vrot.lane.b32.xlu0 %v1541, 112
    %v1628 = vpop.permute.xlu0 %1627
    %1629 = vrot.lane.b32.xlu0 %v1542, 112
    %v1630 = vpop.permute.xlu0 %1629
    %1631 = vrot.lane.b32.xlu0 %v1543, 112
    %v1632 = vpop.permute.xlu0 %1631
    %1633 = vrot.lane.b32.xlu0 %v1544, 112
    %v1634 = vpop.permute.xlu0 %1633
    %vm1665 = vcmask 1048448
    %1666 = vst.msk [vmem:[#allocation3] sm:$0xff] %vm1665, %v1576
    %1667 = vst.msk [vmem:[#allocation3 + $0x10] sm:$0xff] %vm1665, %v1578
    %1668 = vst.msk [vmem:[#allocation3 + $0x20] sm:$0xff] %vm1665, %v1580
    %1669 = vst.msk [vmem:[#allocation3 + $0x30] sm:$0xff] %vm1665, %v1582
    %1670 = vst.msk [vmem:[#allocation3 + $0x40] sm:$0xff] %vm1665, %v1584
    %1671 = vst.msk [vmem:[#allocation3 + $0x50] sm:$0xff] %vm1665, %v1586
    %1672 = vst.msk [vmem:[#allocation3 + $0x60] sm:$0xff] %vm1665, %v1588
    %1673 = vst.msk [vmem:[#allocation3 + $0x70] sm:$0xff] %vm1665, %v1590
    %1674 = vst.msk [vmem:[#allocation3 + $0x80] sm:$0xff] %vm1665, %v1592
    %1675 = vst.msk [vmem:[#allocation3 + $0x90] sm:$0xff] %vm1665, %v1594
    %1676 = vst.msk [vmem:[#allocation3 + $0xa0] sm:$0xff] %vm1665, %v1596
    %1677 = vst.msk [vmem:[#allocation3 + $0xb0] sm:$0xff] %vm1665, %v1598
    %1678 = vst.msk [vmem:[#allocation3 + $0xc0] sm:$0xff] %vm1665, %v1600
    %1679 = vst.msk [vmem:[#allocation3 + $0xd0] sm:$0xff] %vm1665, %v1602
    %1680 = vst.msk [vmem:[#allocation3 + $0xe0] sm:$0xff] %vm1665, %v1604
    %1681 = vst.msk [vmem:[#allocation3 + $0xf0] sm:$0xff] %vm1665, %v1606
    %1682 = vst.msk [vmem:[#allocation3 + $0x100] sm:$0xff] %vm1665, %v1608
    %1683 = vst.msk [vmem:[#allocation3 + $0x110] sm:$0xff] %vm1665, %v1610
    %1684 = vst.msk [vmem:[#allocation3 + $0x120] sm:$0xff] %vm1665, %v1612
    %1685 = vst.msk [vmem:[#allocation3 + $0x130] sm:$0xff] %vm1665, %v1614
    %1686 = vst.msk [vmem:[#allocation3 + $0x140] sm:$0xff] %vm1665, %v1616
    %1687 = vst.msk [vmem:[#allocation3 + $0x150] sm:$0xff] %vm1665, %v1618
    %1688 = vst.msk [vmem:[#allocation3 + $0x160] sm:$0xff] %vm1665, %v1620
    %1689 = vst.msk [vmem:[#allocation3 + $0x170] sm:$0xff] %vm1665, %v1622
    %1690 = vst.msk [vmem:[#allocation3 + $0x180] sm:$0xff] %vm1665, %v1624
    %1691 = vst.msk [vmem:[#allocation3 + $0x190] sm:$0xff] %vm1665, %v1626
    %1692 = vst.msk [vmem:[#allocation3 + $0x1a0] sm:$0xff] %vm1665, %v1628
    %1693 = vst.msk [vmem:[#allocation3 + $0x1b0] sm:$0xff] %vm1665, %v1630
    %1694 = vst.msk [vmem:[#allocation3 + $0x1c0] sm:$0xff] %vm1665, %v1632
    %vm1695 = vcmask 1044352
    %1696 = vst.msk [vmem:[#allocation3 + $0x1d0] sm:$0xf] %vm1695, %v1634
    %v1697 = vld [vmem:[#allocation2 + $0x1a] sm:$0xff]
    %v1698 = vld [vmem:[#allocation2 + $0x22] sm:$0xff]
    %v1699 = vld [vmem:[#allocation2 + $0x2a] sm:$0xff]
    %v1700 = vld [vmem:[#allocation2 + $0x32] sm:$0xff]
    %v1701 = vld [vmem:[#allocation2 + $0x3a] sm:$0xff]
    %v1702 = vld [vmem:[#allocation2 + $0x42] sm:$0xff]
    %v1703 = vld [vmem:[#allocation2 + $0x4a] sm:$0xff]
    %v1704 = vld [vmem:[#allocation2 + $0x52] sm:$0xff]
    %v1705 = vld [vmem:[#allocation2 + $0x5a] sm:$0xff]
    %v1706 = vld [vmem:[#allocation2 + $0x62] sm:$0xff]
    %v1707 = vld [vmem:[#allocation2 + $0x6a] sm:$0xff]
    %v1708 = vld [vmem:[#allocation2 + $0x72] sm:$0xff]
    %v1709 = vld [vmem:[#allocation2 + $0x7a] sm:$0xff]
    %v1710 = vld [vmem:[#allocation2 + $0x82] sm:$0xff]
    %v1711 = vld [vmem:[#allocation2 + $0x8a] sm:$0xff]
    %v1712 = vld [vmem:[#allocation2 + $0x92] sm:$0xff]
    %v1713 = vld [vmem:[#allocation2 + $0x9a] sm:$0xff]
    %v1714 = vld [vmem:[#allocation2 + $0xa2] sm:$0xff]
    %v1715 = vld [vmem:[#allocation2 + $0xaa] sm:$0xff]
    %v1716 = vld [vmem:[#allocation2 + $0xb2] sm:$0xff]
    %v1717 = vld [vmem:[#allocation2 + $0xba] sm:$0xff]
    %v1718 = vld [vmem:[#allocation2 + $0xc2] sm:$0xff]
    %v1719 = vld [vmem:[#allocation2 + $0xca] sm:$0xff]
    %v1720 = vld [vmem:[#allocation2 + $0xd2] sm:$0xff]
    %v1721 = vld [vmem:[#allocation2 + $0xda] sm:$0xff]
    %v1722 = vld [vmem:[#allocation2 + $0xe2] sm:$0xff]
    %v1723 = vld [vmem:[#allocation2 + $0xea] sm:$0xff]
    %v1724 = vld [vmem:[#allocation2 + $0xf2] sm:$0xff]
    %v1725 = vld [vmem:[#allocation2 + $0xfa] sm:$0xff]
    %v1726 = vld [vmem:[#allocation2 + $0x102] sm:$0xf]
    %1727 = vst.msk [vmem:[#allocation3 + $0x8] sm:$0xff] %vm327, %v1697
    %1728 = vst.msk [vmem:[#allocation3 + $0x18] sm:$0xff] %vm327, %v1698
    %1729 = vst.msk [vmem:[#allocation3 + $0x28] sm:$0xff] %vm327, %v1699
    %1730 = vst.msk [vmem:[#allocation3 + $0x38] sm:$0xff] %vm327, %v1700
    %1731 = vst.msk [vmem:[#allocation3 + $0x48] sm:$0xff] %vm327, %v1701
    %1732 = vst.msk [vmem:[#allocation3 + $0x58] sm:$0xff] %vm327, %v1702
    %1733 = vst.msk [vmem:[#allocation3 + $0x68] sm:$0xff] %vm327, %v1703
    %1734 = vst.msk [vmem:[#allocation3 + $0x78] sm:$0xff] %vm327, %v1704
    %1735 = vst.msk [vmem:[#allocation3 + $0x88] sm:$0xff] %vm327, %v1705
    %1736 = vst.msk [vmem:[#allocation3 + $0x98] sm:$0xff] %vm327, %v1706
    %1737 = vst.msk [vmem:[#allocation3 + $0xa8] sm:$0xff] %vm327, %v1707
    %1738 = vst.msk [vmem:[#allocation3 + $0xb8] sm:$0xff] %vm327, %v1708
    %1739 = vst.msk [vmem:[#allocation3 + $0xc8] sm:$0xff] %vm327, %v1709
    %1740 = vst.msk [vmem:[#allocation3 + $0xd8] sm:$0xff] %vm327, %v1710
    %1741 = vst.msk [vmem:[#allocation3 + $0xe8] sm:$0xff] %vm327, %v1711
    %1742 = vst.msk [vmem:[#allocation3 + $0xf8] sm:$0xff] %vm327, %v1712
    %1743 = vst.msk [vmem:[#allocation3 + $0x108] sm:$0xff] %vm327, %v1713
    %1744 = vst.msk [vmem:[#allocation3 + $0x118] sm:$0xff] %vm327, %v1714
    %1745 = vst.msk [vmem:[#allocation3 + $0x128] sm:$0xff] %vm327, %v1715
    %1746 = vst.msk [vmem:[#allocation3 + $0x138] sm:$0xff] %vm327, %v1716
    %1747 = vst.msk [vmem:[#allocation3 + $0x148] sm:$0xff] %vm327, %v1717
    %1748 = vst.msk [vmem:[#allocation3 + $0x158] sm:$0xff] %vm327, %v1718
    %1749 = vst.msk [vmem:[#allocation3 + $0x168] sm:$0xff] %vm327, %v1719
    %1750 = vst.msk [vmem:[#allocation3 + $0x178] sm:$0xff] %vm327, %v1720
    %1751 = vst.msk [vmem:[#allocation3 + $0x188] sm:$0xff] %vm327, %v1721
    %1752 = vst.msk [vmem:[#allocation3 + $0x198] sm:$0xff] %vm327, %v1722
    %1753 = vst.msk [vmem:[#allocation3 + $0x1a8] sm:$0xff] %vm327, %v1723
    %1754 = vst.msk [vmem:[#allocation3 + $0x1b8] sm:$0xff] %vm327, %v1724
    %1755 = vst.msk [vmem:[#allocation3 + $0x1c8] sm:$0xff] %vm327, %v1725
    %1756 = vst.msk [vmem:[#allocation3 + $0x1d8] sm:$0xf] %vm421, %v1726
    %v1757 = vld [vmem:[#allocation3] sm:$0xff]
    %v1758 = vld [vmem:[#allocation3 + $0x8] sm:$0xff]
    %v1759 = vld [vmem:[#allocation3 + $0x10] sm:$0xff]
    %v1760 = vld [vmem:[#allocation3 + $0x18] sm:$0xff]
    %v1761 = vld [vmem:[#allocation3 + $0x20] sm:$0xff]
    %v1762 = vld [vmem:[#allocation3 + $0x28] sm:$0xff]
    %v1763 = vld [vmem:[#allocation3 + $0x30] sm:$0xff]
    %v1764 = vld [vmem:[#allocation3 + $0x38] sm:$0xff]
    %v1765 = vld [vmem:[#allocation3 + $0x40] sm:$0xff]
    %v1766 = vld [vmem:[#allocation3 + $0x48] sm:$0xff]
    %v1767 = vld [vmem:[#allocation3 + $0x50] sm:$0xff]
    %v1768 = vld [vmem:[#allocation3 + $0x58] sm:$0xff]
    %v1769 = vld [vmem:[#allocation3 + $0x60] sm:$0xff]
    %v1770 = vld [vmem:[#allocation3 + $0x68] sm:$0xff]
    %v1771 = vld [vmem:[#allocation3 + $0x70] sm:$0xff]
    %v1772 = vld [vmem:[#allocation3 + $0x78] sm:$0xff]
    %v1773 = vld [vmem:[#allocation3 + $0x80] sm:$0xff]
    %v1774 = vld [vmem:[#allocation3 + $0x88] sm:$0xff]
    %v1775 = vld [vmem:[#allocation3 + $0x90] sm:$0xff]
    %v1776 = vld [vmem:[#allocation3 + $0x98] sm:$0xff]
    %v1777 = vld [vmem:[#allocation3 + $0xa0] sm:$0xff]
    %v1778 = vld [vmem:[#allocation3 + $0xa8] sm:$0xff]
    %v1779 = vld [vmem:[#allocation3 + $0xb0] sm:$0xff]
    %v1780 = vld [vmem:[#allocation3 + $0xb8] sm:$0xff]
    %v1781 = vld [vmem:[#allocation3 + $0xc0] sm:$0xff]
    %v1782 = vld [vmem:[#allocation3 + $0xc8] sm:$0xff]
    %v1783 = vld [vmem:[#allocation3 + $0xd0] sm:$0xff]
    %v1784 = vld [vmem:[#allocation3 + $0xd8] sm:$0xff]
    %v1785 = vld [vmem:[#allocation3 + $0xe0] sm:$0xff]
    %v1786 = vld [vmem:[#allocation3 + $0xe8] sm:$0xff]
    %v1787 = vld [vmem:[#allocation3 + $0xf0] sm:$0xff]
    %v1788 = vld [vmem:[#allocation3 + $0xf8] sm:$0xff]
    %v1789 = vld [vmem:[#allocation3 + $0x100] sm:$0xff]
    %v1790 = vld [vmem:[#allocation3 + $0x108] sm:$0xff]
    %v1791 = vld [vmem:[#allocation3 + $0x110] sm:$0xff]
    %v1792 = vld [vmem:[#allocation3 + $0x118] sm:$0xff]
    %v1793 = vld [vmem:[#allocation3 + $0x120] sm:$0xff]
    %v1794 = vld [vmem:[#allocation3 + $0x128] sm:$0xff]
    %v1795 = vld [vmem:[#allocation3 + $0x130] sm:$0xff]
    %v1796 = vld [vmem:[#allocation3 + $0x138] sm:$0xff]
    %v1797 = vld [vmem:[#allocation3 + $0x140] sm:$0xff]
    %v1798 = vld [vmem:[#allocation3 + $0x148] sm:$0xff]
    %v1799 = vld [vmem:[#allocation3 + $0x150] sm:$0xff]
    %v1800 = vld [vmem:[#allocation3 + $0x158] sm:$0xff]
    %v1801 = vld [vmem:[#allocation3 + $0x160] sm:$0xff]
    %v1802 = vld [vmem:[#allocation3 + $0x168] sm:$0xff]
    %v1803 = vld [vmem:[#allocation3 + $0x170] sm:$0xff]
    %v1804 = vld [vmem:[#allocation3 + $0x178] sm:$0xff]
    %v1805 = vld [vmem:[#allocation3 + $0x180] sm:$0xff]
    %v1806 = vld [vmem:[#allocation3 + $0x188] sm:$0xff]
    %v1807 = vld [vmem:[#allocation3 + $0x190] sm:$0xff]
    %v1808 = vld [vmem:[#allocation3 + $0x198] sm:$0xff]
    %v1809 = vld [vmem:[#allocation3 + $0x1a0] sm:$0xff]
    %v1810 = vld [vmem:[#allocation3 + $0x1a8] sm:$0xff]
    %v1811 = vld [vmem:[#allocation3 + $0x1b0] sm:$0xff]
    %v1812 = vld [vmem:[#allocation3 + $0x1b8] sm:$0xff]
    %v1813 = vld [vmem:[#allocation3 + $0x1c0] sm:$0xff]
    %v1814 = vld [vmem:[#allocation3 + $0x1c8] sm:$0xff]
    %v1815 = vld [vmem:[#allocation3 + $0x1d0] sm:$0xf]
    %v1816 = vld [vmem:[#allocation3 + $0x1d8] sm:$0xf]
    %v1817 = vld [vmem:[%s3] sm:$0xff]
    %v1818 = vld [vmem:[%s3 + $0x8] sm:$0xff]
    %v1819 = vld [vmem:[%s3 + $0x10] sm:$0xff]
    %v1820 = vld [vmem:[%s3 + $0x18] sm:$0xff]
    %v1821 = vld [vmem:[%s3 + $0x20] sm:$0xff]
    %v1822 = vld [vmem:[%s3 + $0x28] sm:$0xff]
    %v1823 = vld [vmem:[%s3 + $0x30] sm:$0xff]
    %v1824 = vld [vmem:[%s3 + $0x38] sm:$0xff]
    %v1825 = vld [vmem:[%s3 + $0x40] sm:$0xff]
    %v1826 = vld [vmem:[%s3 + $0x48] sm:$0xff]
    %v1827 = vld [vmem:[%s3 + $0x50] sm:$0xff]
    %v1828 = vld [vmem:[%s3 + $0x58] sm:$0xff]
    %v1829 = vld [vmem:[%s3 + $0x60] sm:$0xff]
    %v1830 = vld [vmem:[%s3 + $0x68] sm:$0xff]
    %v1831 = vld [vmem:[%s3 + $0x70] sm:$0xff]
    %v1832 = vld [vmem:[%s3 + $0x78] sm:$0xff]
    %v1833 = vld [vmem:[%s3 + $0x80] sm:$0xff]
    %v1834 = vld [vmem:[%s3 + $0x88] sm:$0xff]
    %v1835 = vld [vmem:[%s4] sm:$0x1]
    %v1837 = vperm.slane %v1835, 0
    %v1840 = vsel %vm327, %v1758, 0
    %v1843 = vsel %vm327, %v1760, 0
    %v1846 = vsel %vm327, %v1762, 0
    %v1849 = vsel %vm327, %v1764, 0
    %v1852 = vsel %vm327, %v1766, 0
    %v1855 = vsel %vm327, %v1768, 0
    %v1858 = vsel %vm327, %v1770, 0
    %v1861 = vsel %vm327, %v1772, 0
    %v1864 = vsel %vm327, %v1774, 0
    %v1867 = vsel %vm327, %v1776, 0
    %v1870 = vsel %vm327, %v1778, 0
    %v1873 = vsel %vm327, %v1780, 0
    %v1876 = vsel %vm327, %v1782, 0
    %v1879 = vsel %vm327, %v1784, 0
    %v1882 = vsel %vm327, %v1786, 0
    %v1885 = vsel %vm327, %v1788, 0
    %v1888 = vsel %vm327, %v1790, 0
    %v1891 = vsel %vm327, %v1792, 0
    %v1894 = vsel %vm327, %v1794, 0
    %v1897 = vsel %vm327, %v1796, 0
    %v1900 = vsel %vm327, %v1798, 0
    %v1903 = vsel %vm327, %v1800, 0
    %v1906 = vsel %vm327, %v1802, 0
    %v1909 = vsel %vm327, %v1804, 0
    %v1912 = vsel %vm327, %v1806, 0
    %v1915 = vsel %vm327, %v1808, 0
    %v1918 = vsel %vm327, %v1810, 0
    %v1921 = vsel %vm327, %v1812, 0
    %v1924 = vsel %vm327, %v1814, 0
    %v1927 = vsel %vm327, %v1816, 0
    %1929 = vmatpush.msra.mxu0 %v1832
    %1930 = vmatpush.msra.mxu0 %v1831
    %1931 = vmatpush.msra.mxu0 %v1830
    %1932 = vmatpush.msra.mxu0 %v1829
    %1933 = vmatpush.msra.mxu0 %v1828
    %1934 = vmatpush.msra.mxu0 %v1827
    %1935 = vmatpush.msra.mxu0 %v1826
    %1936 = vmatpush.msra.mxu0 %v1825
    %1937 = vmatpush.msra.mxu0 %v1824
    %1938 = vmatpush.msra.mxu0 %v1823
    %1939 = vmatpush.msra.mxu0 %v1822
    %1940 = vmatpush.msra.mxu0 %v1821
    %1941 = vmatpush.msra.mxu0 %v1820
    %1942 = vmatpush.msra.mxu0 %v1819
    %1943 = vmatpush.msra.mxu0 %v1818
    %1944 = vmatpush.msra.mxu0 %v1817
    %1945 = vmatmul.f32.gmra.mxu0 %v1757
    %v1946 = vpop.f32.mrf.mxu0
    %v1947 = vadd.f32 %v1837, %v1946
    %1948 = vmatmul.f32.gmra.mxu0 %v1759
    %v1949 = vpop.f32.mrf.mxu0
    %v1950 = vadd.f32 %v1837, %v1949
    %1951 = vmatmul.f32.gmra.mxu0 %v1761
    %v1952 = vpop.f32.mrf.mxu0
    %v1953 = vadd.f32 %v1837, %v1952
    %1954 = vmatmul.f32.gmra.mxu0 %v1763
    %v1955 = vpop.f32.mrf.mxu0
    %v1956 = vadd.f32 %v1837, %v1955
    %1957 = vmatmul.f32.gmra.mxu0 %v1765
    %v1958 = vpop.f32.mrf.mxu0
    %v1959 = vadd.f32 %v1837, %v1958
    %1960 = vmatmul.f32.gmra.mxu0 %v1767
    %v1961 = vpop.f32.mrf.mxu0
    %v1962 = vadd.f32 %v1837, %v1961
    %1963 = vmatmul.f32.gmra.mxu0 %v1769
    %v1964 = vpop.f32.mrf.mxu0
    %v1965 = vadd.f32 %v1837, %v1964
    %1966 = vmatmul.f32.gmra.mxu0 %v1771
    %v1967 = vpop.f32.mrf.mxu0
    %v1968 = vadd.f32 %v1837, %v1967
    %1969 = vmatmul.f32.gmra.mxu0 %v1773
    %v1970 = vpop.f32.mrf.mxu0
    %v1971 = vadd.f32 %v1837, %v1970
    %1972 = vmatmul.f32.gmra.mxu0 %v1775
    %v1973 = vpop.f32.mrf.mxu0
    %v1974 = vadd.f32 %v1837, %v1973
    %1975 = vmatmul.f32.gmra.mxu0 %v1777
    %v1976 = vpop.f32.mrf.mxu0
    %v1977 = vadd.f32 %v1837, %v1976
    %1978 = vmatmul.f32.gmra.mxu0 %v1779
    %v1979 = vpop.f32.mrf.mxu0
    %v1980 = vadd.f32 %v1837, %v1979
    %1981 = vmatmul.f32.gmra.mxu0 %v1781
    %v1982 = vpop.f32.mrf.mxu0
    %v1983 = vadd.f32 %v1837, %v1982
    %1984 = vmatmul.f32.gmra.mxu0 %v1783
    %v1985 = vpop.f32.mrf.mxu0
    %v1986 = vadd.f32 %v1837, %v1985
    %1987 = vmatmul.f32.gmra.mxu0 %v1785
    %v1988 = vpop.f32.mrf.mxu0
    %v1989 = vadd.f32 %v1837, %v1988
    %1990 = vmatmul.f32.gmra.mxu0 %v1787
    %v1991 = vpop.f32.mrf.mxu0
    %v1992 = vadd.f32 %v1837, %v1991
    %1993 = vmatmul.f32.gmra.mxu0 %v1789
    %v1994 = vpop.f32.mrf.mxu0
    %v1995 = vadd.f32 %v1837, %v1994
    %1996 = vmatmul.f32.gmra.mxu0 %v1791
    %v1997 = vpop.f32.mrf.mxu0
    %v1998 = vadd.f32 %v1837, %v1997
    %1999 = vmatmul.f32.gmra.mxu0 %v1793
    %v2000 = vpop.f32.mrf.mxu0
    %v2001 = vadd.f32 %v1837, %v2000
    %2002 = vmatmul.f32.gmra.mxu0 %v1795
    %v2003 = vpop.f32.mrf.mxu0
    %v2004 = vadd.f32 %v1837, %v2003
    %2005 = vmatmul.f32.gmra.mxu0 %v1797
    %v2006 = vpop.f32.mrf.mxu0
    %v2007 = vadd.f32 %v1837, %v2006
    %2008 = vmatmul.f32.gmra.mxu0 %v1799
    %v2009 = vpop.f32.mrf.mxu0
    %v2010 = vadd.f32 %v1837, %v2009
    %2011 = vmatmul.f32.gmra.mxu0 %v1801
    %v2012 = vpop.f32.mrf.mxu0
    %v2013 = vadd.f32 %v1837, %v2012
    %2014 = vmatmul.f32.gmra.mxu0 %v1803
    %v2015 = vpop.f32.mrf.mxu0
    %v2016 = vadd.f32 %v1837, %v2015
    %2017 = vmatmul.f32.gmra.mxu0 %v1805
    %v2018 = vpop.f32.mrf.mxu0
    %v2019 = vadd.f32 %v1837, %v2018
    %2020 = vmatmul.f32.gmra.mxu0 %v1807
    %v2021 = vpop.f32.mrf.mxu0
    %v2022 = vadd.f32 %v1837, %v2021
    %2023 = vmatmul.f32.gmra.mxu0 %v1809
    %v2024 = vpop.f32.mrf.mxu0
    %v2025 = vadd.f32 %v1837, %v2024
    %2026 = vmatmul.f32.gmra.mxu0 %v1811
    %v2027 = vpop.f32.mrf.mxu0
    %v2028 = vadd.f32 %v1837, %v2027
    %2029 = vmatmul.f32.gmra.mxu0 %v1813
    %v2030 = vpop.f32.mrf.mxu0
    %v2031 = vadd.f32 %v1837, %v2030
    %2032 = vmatmul.f32.gmra.mxu0 %v1815
    %v2033 = vpop.f32.mrf.mxu0
    %v2034 = vadd.f32 %v1837, %v2033
    %2035 = vdwg.mxu0
    %2036 = vmatpush.msra.mxu0 0.0
    %2037 = vmatpush.msra.mxu0 0.0
    %2038 = vmatpush.msra.mxu0 0.0
    %2039 = vmatpush.msra.mxu0 0.0
    %2040 = vmatpush.msra.mxu0 0.0
    %2041 = vmatpush.msra.mxu0 0.0
    %2042 = vmatpush.msra.mxu0 0.0
    %2043 = vmatpush.msra.mxu0 0.0
    %2044 = vmatpush.msra.mxu0 0.0
    %2045 = vmatpush.msra.mxu0 0.0
    %2046 = vmatpush.msra.mxu0 0.0
    %2047 = vmatpush.msra.mxu0 0.0
    %2048 = vmatpush.msra.mxu0 0.0
    %2049 = vmatpush.msra.mxu0 0.0
    %2050 = vmatpush.msra.mxu0 %v1834
    %2051 = vmatpush.msra.mxu0 %v1833
    %2052 = vmatmul.f32.gmra.mxu0 %v1840
    %v2053 = vpop.f32.mrf.mxu0
    %v2054 = vadd.f32 %v1947, %v2053
    %2055 = vmatmul.f32.gmra.mxu0 %v1843
    %v2056 = vpop.f32.mrf.mxu0
    %v2057 = vadd.f32 %v1950, %v2056
    %2058 = vmatmul.f32.gmra.mxu0 %v1846
    %v2059 = vpop.f32.mrf.mxu0
    %v2060 = vadd.f32 %v1953, %v2059
    %2061 = vmatmul.f32.gmra.mxu0 %v1849
    %v2062 = vpop.f32.mrf.mxu0
    %v2063 = vadd.f32 %v1956, %v2062
    %2064 = vmatmul.f32.gmra.mxu0 %v1852
    %v2065 = vpop.f32.mrf.mxu0
    %v2066 = vadd.f32 %v1959, %v2065
    %2067 = vmatmul.f32.gmra.mxu0 %v1855
    %v2068 = vpop.f32.mrf.mxu0
    %v2069 = vadd.f32 %v1962, %v2068
    %2070 = vmatmul.f32.gmra.mxu0 %v1858
    %v2071 = vpop.f32.mrf.mxu0
    %v2072 = vadd.f32 %v1965, %v2071
    %2073 = vmatmul.f32.gmra.mxu0 %v1861
    %v2074 = vpop.f32.mrf.mxu0
    %v2075 = vadd.f32 %v1968, %v2074
    %2076 = vmatmul.f32.gmra.mxu0 %v1864
    %v2077 = vpop.f32.mrf.mxu0
    %v2078 = vadd.f32 %v1971, %v2077
    %2079 = vmatmul.f32.gmra.mxu0 %v1867
    %v2080 = vpop.f32.mrf.mxu0
    %v2081 = vadd.f32 %v1974, %v2080
    %2082 = vmatmul.f32.gmra.mxu0 %v1870
    %v2083 = vpop.f32.mrf.mxu0
    %v2084 = vadd.f32 %v1977, %v2083
    %2085 = vmatmul.f32.gmra.mxu0 %v1873
    %v2086 = vpop.f32.mrf.mxu0
    %v2087 = vadd.f32 %v1980, %v2086
    %2088 = vmatmul.f32.gmra.mxu0 %v1876
    %v2089 = vpop.f32.mrf.mxu0
    %v2090 = vadd.f32 %v1983, %v2089
    %2091 = vmatmul.f32.gmra.mxu0 %v1879
    %v2092 = vpop.f32.mrf.mxu0
    %v2093 = vadd.f32 %v1986, %v2092
    %2094 = vmatmul.f32.gmra.mxu0 %v1882
    %v2095 = vpop.f32.mrf.mxu0
    %v2096 = vadd.f32 %v1989, %v2095
    %2097 = vmatmul.f32.gmra.mxu0 %v1885
    %v2098 = vpop.f32.mrf.mxu0
    %v2099 = vadd.f32 %v1992, %v2098
    %2100 = vmatmul.f32.gmra.mxu0 %v1888
    %v2101 = vpop.f32.mrf.mxu0
    %v2102 = vadd.f32 %v1995, %v2101
    %2103 = vmatmul.f32.gmra.mxu0 %v1891
    %v2104 = vpop.f32.mrf.mxu0
    %v2105 = vadd.f32 %v1998, %v2104
    %2106 = vmatmul.f32.gmra.mxu0 %v1894
    %v2107 = vpop.f32.mrf.mxu0
    %v2108 = vadd.f32 %v2001, %v2107
    %2109 = vmatmul.f32.gmra.mxu0 %v1897
    %v2110 = vpop.f32.mrf.mxu0
    %v2111 = vadd.f32 %v2004, %v2110
    %2112 = vmatmul.f32.gmra.mxu0 %v1900
    %v2113 = vpop.f32.mrf.mxu0
    %v2114 = vadd.f32 %v2007, %v2113
    %2115 = vmatmul.f32.gmra.mxu0 %v1903
    %v2116 = vpop.f32.mrf.mxu0
    %v2117 = vadd.f32 %v2010, %v2116
    %2118 = vmatmul.f32.gmra.mxu0 %v1906
    %v2119 = vpop.f32.mrf.mxu0
    %v2120 = vadd.f32 %v2013, %v2119
    %2121 = vmatmul.f32.gmra.mxu0 %v1909
    %v2122 = vpop.f32.mrf.mxu0
    %v2123 = vadd.f32 %v2016, %v2122
    %2124 = vmatmul.f32.gmra.mxu0 %v1912
    %v2125 = vpop.f32.mrf.mxu0
    %v2126 = vadd.f32 %v2019, %v2125
    %2127 = vmatmul.f32.gmra.mxu0 %v1915
    %v2128 = vpop.f32.mrf.mxu0
    %v2129 = vadd.f32 %v2022, %v2128
    %2130 = vmatmul.f32.gmra.mxu0 %v1918
    %v2131 = vpop.f32.mrf.mxu0
    %v2132 = vadd.f32 %v2025, %v2131
    %2133 = vmatmul.f32.gmra.mxu0 %v1921
    %v2134 = vpop.f32.mrf.mxu0
    %v2135 = vadd.f32 %v2028, %v2134
    %2136 = vmatmul.f32.gmra.mxu0 %v1924
    %v2137 = vpop.f32.mrf.mxu0
    %v2138 = vadd.f32 %v2031, %v2137
    %2139 = vmatmul.f32.gmra.mxu0 %v1927
    %v2140 = vpop.f32.mrf.mxu0
    %v2141 = vadd.f32 %v2034, %v2140
    %2142 = vdwg.mxu0
    %v2143 = vmax.f32 %v2054, 0.0
    %v2144 = vmax.f32 %v2057, 0.0
    %v2145 = vmax.f32 %v2060, 0.0
    %v2146 = vmax.f32 %v2063, 0.0
    %v2147 = vmax.f32 %v2066, 0.0
    %v2148 = vmax.f32 %v2069, 0.0
    %v2149 = vmax.f32 %v2072, 0.0
    %v2150 = vmax.f32 %v2075, 0.0
    %v2151 = vmax.f32 %v2078, 0.0
    %v2152 = vmax.f32 %v2081, 0.0
    %v2153 = vmax.f32 %v2084, 0.0
    %v2154 = vmax.f32 %v2087, 0.0
    %v2155 = vmax.f32 %v2090, 0.0
    %v2156 = vmax.f32 %v2093, 0.0
    %v2157 = vmax.f32 %v2096, 0.0
    %v2158 = vmax.f32 %v2099, 0.0
    %v2159 = vmax.f32 %v2102, 0.0
    %v2160 = vmax.f32 %v2105, 0.0
    %v2161 = vmax.f32 %v2108, 0.0
    %v2162 = vmax.f32 %v2111, 0.0
    %v2163 = vmax.f32 %v2114, 0.0
    %v2164 = vmax.f32 %v2117, 0.0
    %v2165 = vmax.f32 %v2120, 0.0
    %v2166 = vmax.f32 %v2123, 0.0
    %v2167 = vmax.f32 %v2126, 0.0
    %v2168 = vmax.f32 %v2129, 0.0
    %v2169 = vmax.f32 %v2132, 0.0
    %v2170 = vmax.f32 %v2135, 0.0
    %v2171 = vmax.f32 %v2138, 0.0
    %v2172 = vmax.f32 %v2141, 0.0
    %vm2173 = vcmask 261120
    %2174 = vst.msk [vmem:[#allocation4] sm:$0xff] %vm2173, %v2143
    %2175 = vst.msk [vmem:[#allocation4 + $0x8] sm:$0xff] %vm2173, %v2144
    %2176 = vst.msk [vmem:[#allocation4 + $0x10] sm:$0xff] %vm2173, %v2145
    %2177 = vst.msk [vmem:[#allocation4 + $0x18] sm:$0xff] %vm2173, %v2146
    %2178 = vst.msk [vmem:[#allocation4 + $0x20] sm:$0xff] %vm2173, %v2147
    %2179 = vst.msk [vmem:[#allocation4 + $0x28] sm:$0xff] %vm2173, %v2148
    %2180 = vst.msk [vmem:[#allocation4 + $0x30] sm:$0xff] %vm2173, %v2149
    %2181 = vst.msk [vmem:[#allocation4 + $0x38] sm:$0xff] %vm2173, %v2150
    %2182 = vst.msk [vmem:[#allocation4 + $0x40] sm:$0xff] %vm2173, %v2151
    %2183 = vst.msk [vmem:[#allocation4 + $0x48] sm:$0xff] %vm2173, %v2152
    %2184 = vst.msk [vmem:[#allocation4 + $0x50] sm:$0xff] %vm2173, %v2153
    %2185 = vst.msk [vmem:[#allocation4 + $0x58] sm:$0xff] %vm2173, %v2154
    %2186 = vst.msk [vmem:[#allocation4 + $0x60] sm:$0xff] %vm2173, %v2155
    %2187 = vst.msk [vmem:[#allocation4 + $0x68] sm:$0xff] %vm2173, %v2156
    %2188 = vst.msk [vmem:[#allocation4 + $0x70] sm:$0xff] %vm2173, %v2157
    %2189 = vst.msk [vmem:[#allocation4 + $0x78] sm:$0xff] %vm2173, %v2158
    %2190 = vst.msk [vmem:[#allocation4 + $0x80] sm:$0xff] %vm2173, %v2159
    %2191 = vst.msk [vmem:[#allocation4 + $0x88] sm:$0xff] %vm2173, %v2160
    %2192 = vst.msk [vmem:[#allocation4 + $0x90] sm:$0xff] %vm2173, %v2161
    %2193 = vst.msk [vmem:[#allocation4 + $0x98] sm:$0xff] %vm2173, %v2162
    %2194 = vst.msk [vmem:[#allocation4 + $0xa0] sm:$0xff] %vm2173, %v2163
    %2195 = vst.msk [vmem:[#allocation4 + $0xa8] sm:$0xff] %vm2173, %v2164
    %2196 = vst.msk [vmem:[#allocation4 + $0xb0] sm:$0xff] %vm2173, %v2165
    %2197 = vst.msk [vmem:[#allocation4 + $0xb8] sm:$0xff] %vm2173, %v2166
    %2198 = vst.msk [vmem:[#allocation4 + $0xc0] sm:$0xff] %vm2173, %v2167
    %2199 = vst.msk [vmem:[#allocation4 + $0xc8] sm:$0xff] %vm2173, %v2168
    %2200 = vst.msk [vmem:[#allocation4 + $0xd0] sm:$0xff] %vm2173, %v2169
    %2201 = vst.msk [vmem:[#allocation4 + $0xd8] sm:$0xff] %vm2173, %v2170
    %2202 = vst.msk [vmem:[#allocation4 + $0xe0] sm:$0xff] %vm2173, %v2171
    %vm2203 = vcmask 257024
    %2204 = vst.msk [vmem:[#allocation4 + $0xe8] sm:$0xf] %vm2203, %v2172
    %v2205 = vld [vmem:[#allocation4] sm:$0xff]
    %v2206 = vld [vmem:[#allocation4 + $0x8] sm:$0xff]
    %v2207 = vld [vmem:[#allocation4 + $0x10] sm:$0xff]
    %v2208 = vld [vmem:[#allocation4 + $0x18] sm:$0xff]
    %v2209 = vld [vmem:[#allocation4 + $0x20] sm:$0xff]
    %v2210 = vld [vmem:[#allocation4 + $0x28] sm:$0xff]
    %v2211 = vld [vmem:[#allocation4 + $0x30] sm:$0xff]
    %v2212 = vld [vmem:[#allocation4 + $0x38] sm:$0xff]
    %v2213 = vld [vmem:[#allocation4 + $0x40] sm:$0xff]
    %v2214 = vld [vmem:[#allocation4 + $0x48] sm:$0xff]
    %v2215 = vld [vmem:[#allocation4 + $0x50] sm:$0xff]
    %v2216 = vld [vmem:[#allocation4 + $0x58] sm:$0xff]
    %v2217 = vld [vmem:[#allocation4 + $0x60] sm:$0xff]
    %v2218 = vld [vmem:[#allocation4 + $0x68] sm:$0xff]
    %v2219 = vld [vmem:[#allocation4 + $0x70] sm:$0xff]
    %v2220 = vld [vmem:[#allocation4 + $0x78] sm:$0xff]
    %v2221 = vld [vmem:[#allocation4 + $0x80] sm:$0xff]
    %v2222 = vld [vmem:[#allocation4 + $0x88] sm:$0xff]
    %v2223 = vld [vmem:[#allocation4 + $0x90] sm:$0xff]
    %v2224 = vld [vmem:[#allocation4 + $0x98] sm:$0xff]
    %v2225 = vld [vmem:[#allocation4 + $0xa0] sm:$0xff]
    %v2226 = vld [vmem:[#allocation4 + $0xa8] sm:$0xff]
    %v2227 = vld [vmem:[#allocation4 + $0xb0] sm:$0xff]
    %v2228 = vld [vmem:[#allocation4 + $0xb8] sm:$0xff]
    %v2229 = vld [vmem:[#allocation4 + $0xc0] sm:$0xff]
    %v2230 = vld [vmem:[#allocation4 + $0xc8] sm:$0xff]
    %v2231 = vld [vmem:[#allocation4 + $0xd0] sm:$0xff]
    %v2232 = vld [vmem:[#allocation4 + $0xd8] sm:$0x7f]
    %v2233 = vld [vmem:[#allocation4 + $0x1] sm:$0xff]
    %v2234 = vld [vmem:[#allocation4 + $0x9] sm:$0xff]
    %v2235 = vld [vmem:[#allocation4 + $0x11] sm:$0xff]
    %v2236 = vld [vmem:[#allocation4 + $0x19] sm:$0xff]
    %v2237 = vld [vmem:[#allocation4 + $0x21] sm:$0xff]
    %v2238 = vld [vmem:[#allocation4 + $0x29] sm:$0xff]
    %v2239 = vld [vmem:[#allocation4 + $0x31] sm:$0xff]
    %v2240 = vld [vmem:[#allocation4 + $0x39] sm:$0xff]
    %v2241 = vld [vmem:[#allocation4 + $0x41] sm:$0xff]
    %v2242 = vld [vmem:[#allocation4 + $0x49] sm:$0xff]
    %v2243 = vld [vmem:[#allocation4 + $0x51] sm:$0xff]
    %v2244 = vld [vmem:[#allocation4 + $0x59] sm:$0xff]
    %v2245 = vld [vmem:[#allocation4 + $0x61] sm:$0xff]
    %v2246 = vld [vmem:[#allocation4 + $0x69] sm:$0xff]
    %v2247 = vld [vmem:[#allocation4 + $0x71] sm:$0xff]
    %v2248 = vld [vmem:[#allocation4 + $0x79] sm:$0xff]
    %v2249 = vld [vmem:[#allocation4 + $0x81] sm:$0xff]
    %v2250 = vld [vmem:[#allocation4 + $0x89] sm:$0xff]
    %v2251 = vld [vmem:[#allocation4 + $0x91] sm:$0xff]
    %v2252 = vld [vmem:[#allocation4 + $0x99] sm:$0xff]
    %v2253 = vld [vmem:[#allocation4 + $0xa1] sm:$0xff]
    %v2254 = vld [vmem:[#allocation4 + $0xa9] sm:$0xff]
    %v2255 = vld [vmem:[#allocation4 + $0xb1] sm:$0xff]
    %v2256 = vld [vmem:[#allocation4 + $0xb9] sm:$0xff]
    %v2257 = vld [vmem:[#allocation4 + $0xc1] sm:$0xff]
    %v2258 = vld [vmem:[#allocation4 + $0xc9] sm:$0xff]
    %v2259 = vld [vmem:[#allocation4 + $0xd1] sm:$0xff]
    %v2260 = vld [vmem:[#allocation4 + $0xd9] sm:$0x7f]
    %v2261 = vmax.f32 %v2205, %v2233
    %v2262 = vmax.f32 %v2206, %v2234
    %v2263 = vmax.f32 %v2207, %v2235
    %v2264 = vmax.f32 %v2208, %v2236
    %v2265 = vmax.f32 %v2209, %v2237
    %v2266 = vmax.f32 %v2210, %v2238
    %v2267 = vmax.f32 %v2211, %v2239
    %v2268 = vmax.f32 %v2212, %v2240
    %v2269 = vmax.f32 %v2213, %v2241
    %v2270 = vmax.f32 %v2214, %v2242
    %v2271 = vmax.f32 %v2215, %v2243
    %v2272 = vmax.f32 %v2216, %v2244
    %v2273 = vmax.f32 %v2217, %v2245
    %v2274 = vmax.f32 %v2218, %v2246
    %v2275 = vmax.f32 %v2219, %v2247
    %v2276 = vmax.f32 %v2220, %v2248
    %v2277 = vmax.f32 %v2221, %v2249
    %v2278 = vmax.f32 %v2222, %v2250
    %v2279 = vmax.f32 %v2223, %v2251
    %v2280 = vmax.f32 %v2224, %v2252
    %v2281 = vmax.f32 %v2225, %v2253
    %v2282 = vmax.f32 %v2226, %v2254
    %v2283 = vmax.f32 %v2227, %v2255
    %v2284 = vmax.f32 %v2228, %v2256
    %v2285 = vmax.f32 %v2229, %v2257
    %v2286 = vmax.f32 %v2230, %v2258
    %v2287 = vmax.f32 %v2231, %v2259
    %v2288 = vmax.f32 %v2232, %v2260
    %v2289 = vld [vmem:[#allocation4 + $0xc] sm:$0xff]
    %v2290 = vld [vmem:[#allocation4 + $0x14] sm:$0xff]
    %v2291 = vld [vmem:[#allocation4 + $0x1c] sm:$0xff]
    %v2292 = vld [vmem:[#allocation4 + $0x24] sm:$0xff]
    %v2293 = vld [vmem:[#allocation4 + $0x2c] sm:$0xff]
    %v2294 = vld [vmem:[#allocation4 + $0x34] sm:$0xff]
    %v2295 = vld [vmem:[#allocation4 + $0x3c] sm:$0xff]
    %v2296 = vld [vmem:[#allocation4 + $0x44] sm:$0xff]
    %v2297 = vld [vmem:[#allocation4 + $0x4c] sm:$0xff]
    %v2298 = vld [vmem:[#allocation4 + $0x54] sm:$0xff]
    %v2299 = vld [vmem:[#allocation4 + $0x5c] sm:$0xff]
    %v2300 = vld [vmem:[#allocation4 + $0x64] sm:$0xff]
    %v2301 = vld [vmem:[#allocation4 + $0x6c] sm:$0xff]
    %v2302 = vld [vmem:[#allocation4 + $0x74] sm:$0xff]
    %v2303 = vld [vmem:[#allocation4 + $0x7c] sm:$0xff]
    %v2304 = vld [vmem:[#allocation4 + $0x84] sm:$0xff]
    %v2305 = vld [vmem:[#allocation4 + $0x8c] sm:$0xff]
    %v2306 = vld [vmem:[#allocation4 + $0x94] sm:$0xff]
    %v2307 = vld [vmem:[#allocation4 + $0x9c] sm:$0xff]
    %v2308 = vld [vmem:[#allocation4 + $0xa4] sm:$0xff]
    %v2309 = vld [vmem:[#allocation4 + $0xac] sm:$0xff]
    %v2310 = vld [vmem:[#allocation4 + $0xb4] sm:$0xff]
    %v2311 = vld [vmem:[#allocation4 + $0xbc] sm:$0xff]
    %v2312 = vld [vmem:[#allocation4 + $0xc4] sm:$0xff]
    %v2313 = vld [vmem:[#allocation4 + $0xcc] sm:$0xff]
    %v2314 = vld [vmem:[#allocation4 + $0xd4] sm:$0xff]
    %v2315 = vld [vmem:[#allocation4 + $0xdc] sm:$0xff]
    %v2316 = vld [vmem:[#allocation4 + $0xe4] sm:$0x7f]
    %v2317 = vld [vmem:[#allocation4 + $0xd] sm:$0xff]
    %v2318 = vld [vmem:[#allocation4 + $0x15] sm:$0xff]
    %v2319 = vld [vmem:[#allocation4 + $0x1d] sm:$0xff]
    %v2320 = vld [vmem:[#allocation4 + $0x25] sm:$0xff]
    %v2321 = vld [vmem:[#allocation4 + $0x2d] sm:$0xff]
    %v2322 = vld [vmem:[#allocation4 + $0x35] sm:$0xff]
    %v2323 = vld [vmem:[#allocation4 + $0x3d] sm:$0xff]
    %v2324 = vld [vmem:[#allocation4 + $0x45] sm:$0xff]
    %v2325 = vld [vmem:[#allocation4 + $0x4d] sm:$0xff]
    %v2326 = vld [vmem:[#allocation4 + $0x55] sm:$0xff]
    %v2327 = vld [vmem:[#allocation4 + $0x5d] sm:$0xff]
    %v2328 = vld [vmem:[#allocation4 + $0x65] sm:$0xff]
    %v2329 = vld [vmem:[#allocation4 + $0x6d] sm:$0xff]
    %v2330 = vld [vmem:[#allocation4 + $0x75] sm:$0xff]
    %v2331 = vld [vmem:[#allocation4 + $0x7d] sm:$0xff]
    %v2332 = vld [vmem:[#allocation4 + $0x85] sm:$0xff]
    %v2333 = vld [vmem:[#allocation4 + $0x8d] sm:$0xff]
    %v2334 = vld [vmem:[#allocation4 + $0x95] sm:$0xff]
    %v2335 = vld [vmem:[#allocation4 + $0x9d] sm:$0xff]
    %v2336 = vld [vmem:[#allocation4 + $0xa5] sm:$0xff]
    %v2337 = vld [vmem:[#allocation4 + $0xad] sm:$0xff]
    %v2338 = vld [vmem:[#allocation4 + $0xb5] sm:$0xff]
    %v2339 = vld [vmem:[#allocation4 + $0xbd] sm:$0xff]
    %v2340 = vld [vmem:[#allocation4 + $0xc5] sm:$0xff]
    %v2341 = vld [vmem:[#allocation4 + $0xcd] sm:$0xff]
    %v2342 = vld [vmem:[#allocation4 + $0xd5] sm:$0xff]
    %v2343 = vld [vmem:[#allocation4 + $0xdd] sm:$0xff]
    %v2344 = vld [vmem:[#allocation4 + $0xe5] sm:$0x7f]
    %v2345 = vmax.f32 %v2289, %v2317
    %v2346 = vmax.f32 %v2290, %v2318
    %v2347 = vmax.f32 %v2291, %v2319
    %v2348 = vmax.f32 %v2292, %v2320
    %v2349 = vmax.f32 %v2293, %v2321
    %v2350 = vmax.f32 %v2294, %v2322
    %v2351 = vmax.f32 %v2295, %v2323
    %v2352 = vmax.f32 %v2296, %v2324
    %v2353 = vmax.f32 %v2297, %v2325
    %v2354 = vmax.f32 %v2298, %v2326
    %v2355 = vmax.f32 %v2299, %v2327
    %v2356 = vmax.f32 %v2300, %v2328
    %v2357 = vmax.f32 %v2301, %v2329
    %v2358 = vmax.f32 %v2302, %v2330
    %v2359 = vmax.f32 %v2303, %v2331
    %v2360 = vmax.f32 %v2304, %v2332
    %v2361 = vmax.f32 %v2305, %v2333
    %v2362 = vmax.f32 %v2306, %v2334
    %v2363 = vmax.f32 %v2307, %v2335
    %v2364 = vmax.f32 %v2308, %v2336
    %v2365 = vmax.f32 %v2309, %v2337
    %v2366 = vmax.f32 %v2310, %v2338
    %v2367 = vmax.f32 %v2311, %v2339
    %v2368 = vmax.f32 %v2312, %v2340
    %v2369 = vmax.f32 %v2313, %v2341
    %v2370 = vmax.f32 %v2314, %v2342
    %v2371 = vmax.f32 %v2315, %v2343
    %v2372 = vmax.f32 %v2316, %v2344
    %v2373 = vmax.f32 %v2261, %v2345
    %v2374 = vmax.f32 %v2262, %v2346
    %v2375 = vmax.f32 %v2263, %v2347
    %v2376 = vmax.f32 %v2264, %v2348
    %v2377 = vmax.f32 %v2265, %v2349
    %v2378 = vmax.f32 %v2266, %v2350
    %v2379 = vmax.f32 %v2267, %v2351
    %v2380 = vmax.f32 %v2268, %v2352
    %v2381 = vmax.f32 %v2269, %v2353
    %v2382 = vmax.f32 %v2270, %v2354
    %v2383 = vmax.f32 %v2271, %v2355
    %v2384 = vmax.f32 %v2272, %v2356
    %v2385 = vmax.f32 %v2273, %v2357
    %v2386 = vmax.f32 %v2274, %v2358
    %v2387 = vmax.f32 %v2275, %v2359
    %v2388 = vmax.f32 %v2276, %v2360
    %v2389 = vmax.f32 %v2277, %v2361
    %v2390 = vmax.f32 %v2278, %v2362
    %v2391 = vmax.f32 %v2279, %v2363
    %v2392 = vmax.f32 %v2280, %v2364
    %v2393 = vmax.f32 %v2281, %v2365
    %v2394 = vmax.f32 %v2282, %v2366
    %v2395 = vmax.f32 %v2283, %v2367
    %v2396 = vmax.f32 %v2284, %v2368
    %v2397 = vmax.f32 %v2285, %v2369
    %v2398 = vmax.f32 %v2286, %v2370
    %v2399 = vmax.f32 %v2287, %v2371
    %v2400 = vmax.f32 %v2288, %v2372
    %2401 = vst.msk [vmem:[#allocation5] sm:$0xff] %vm2173, %v2373
    %2402 = vst.msk [vmem:[#allocation5 + $0x8] sm:$0xff] %vm2173, %v2374
    %2403 = vst.msk [vmem:[#allocation5 + $0x10] sm:$0xff] %vm2173, %v2375
    %2404 = vst.msk [vmem:[#allocation5 + $0x18] sm:$0xff] %vm2173, %v2376
    %2405 = vst.msk [vmem:[#allocation5 + $0x20] sm:$0xff] %vm2173, %v2377
    %2406 = vst.msk [vmem:[#allocation5 + $0x28] sm:$0xff] %vm2173, %v2378
    %2407 = vst.msk [vmem:[#allocation5 + $0x30] sm:$0xff] %vm2173, %v2379
    %2408 = vst.msk [vmem:[#allocation5 + $0x38] sm:$0xff] %vm2173, %v2380
    %2409 = vst.msk [vmem:[#allocation5 + $0x40] sm:$0xff] %vm2173, %v2381
    %2410 = vst.msk [vmem:[#allocation5 + $0x48] sm:$0xff] %vm2173, %v2382
    %2411 = vst.msk [vmem:[#allocation5 + $0x50] sm:$0xff] %vm2173, %v2383
    %2412 = vst.msk [vmem:[#allocation5 + $0x58] sm:$0xff] %vm2173, %v2384
    %2413 = vst.msk [vmem:[#allocation5 + $0x60] sm:$0xff] %vm2173, %v2385
    %2414 = vst.msk [vmem:[#allocation5 + $0x68] sm:$0xff] %vm2173, %v2386
    %2415 = vst.msk [vmem:[#allocation5 + $0x70] sm:$0xff] %vm2173, %v2387
    %2416 = vst.msk [vmem:[#allocation5 + $0x78] sm:$0xff] %vm2173, %v2388
    %2417 = vst.msk [vmem:[#allocation5 + $0x80] sm:$0xff] %vm2173, %v2389
    %2418 = vst.msk [vmem:[#allocation5 + $0x88] sm:$0xff] %vm2173, %v2390
    %2419 = vst.msk [vmem:[#allocation5 + $0x90] sm:$0xff] %vm2173, %v2391
    %2420 = vst.msk [vmem:[#allocation5 + $0x98] sm:$0xff] %vm2173, %v2392
    %2421 = vst.msk [vmem:[#allocation5 + $0xa0] sm:$0xff] %vm2173, %v2393
    %2422 = vst.msk [vmem:[#allocation5 + $0xa8] sm:$0xff] %vm2173, %v2394
    %2423 = vst.msk [vmem:[#allocation5 + $0xb0] sm:$0xff] %vm2173, %v2395
    %2424 = vst.msk [vmem:[#allocation5 + $0xb8] sm:$0xff] %vm2173, %v2396
    %2425 = vst.msk [vmem:[#allocation5 + $0xc0] sm:$0xff] %vm2173, %v2397
    %2426 = vst.msk [vmem:[#allocation5 + $0xc8] sm:$0xff] %vm2173, %v2398
    %2427 = vst.msk [vmem:[#allocation5 + $0xd0] sm:$0xff] %vm2173, %v2399
    %vm2428 = vcmask 260096
    %2429 = vst.msk [vmem:[#allocation5 + $0xd8] sm:$0x7f] %vm2428, %v2400
    %v2430 = vld [vmem:[#allocation5] sm:$0x1]
    %v2431 = vlaneseq
    %vm2432 = vcmp.ge.s32.totalorder %v2431, 0
    %vm2433 = vcmp.lt.s32.totalorder %v2431, 32
    %vm2434 = vmand %vm2432, %vm2433
    %2435 = vst.msk [vmem:[#allocation6] sm:$0x1] %vm2434, %v2430
    %v2436 = vld [vmem:[#allocation5 + $0x2] sm:$0x1]
    %2438 = vrot.lane.b32.xlu0 %v2436, 32
    %v2439 = vpop.permute.xlu0 %2438
    %vm2441 = vcmp.ge.s32.totalorder %v2431, 32
    %vm2442 = vcmp.lt.s32.totalorder %v2431, 64
    %vm2443 = vmand %vm2441, %vm2442
    %2444 = vst.msk [vmem:[#allocation6] sm:$0x1] %vm2443, %v2439
    %v2445 = vld [vmem:[#allocation5 + $0x4] sm:$0x1]
    %2447 = vrot.lane.b32.xlu0 %v2445, 64
    %v2448 = vpop.permute.xlu0 %2447
    %vm2450 = vcmp.ge.s32.totalorder %v2431, 64
    %vm2451 = vcmp.lt.s32.totalorder %v2431, 96
    %vm2452 = vmand %vm2450, %vm2451
    %2453 = vst.msk [vmem:[#allocation6] sm:$0x1] %vm2452, %v2448
    %v2454 = vld [vmem:[#allocation5 + $0x6] sm:$0x1]
    %2456 = vrot.lane.b32.xlu0 %v2454, 96
    %v2457 = vpop.permute.xlu0 %2456
    %vm2459 = vcmp.ge.s32.totalorder %v2431, 96
    %vm2460 = vcmp.lt.s32.totalorder %v2431, 128
    %vm2461 = vmand %vm2459, %vm2460
    %2462 = vst.msk [vmem:[#allocation6] sm:$0x1] %vm2461, %v2457
    %v2463 = vld [vmem:[#allocation5 + $0x18] sm:$0x1]
    %2464 = vst.msk [vmem:[#allocation6 + $0x1] sm:$0x1] %vm2434, %v2463
    %v2465 = vld [vmem:[#allocation5 + $0x1a] sm:$0x1]
    %2467 = vrot.lane.b32.xlu0 %v2465, 32
    %v2468 = vpop.permute.xlu0 %2467
    %2470 = vst.msk [vmem:[#allocation6 + $0x1] sm:$0x1] %vm2443, %v2468
    %v2471 = vld [vmem:[#allocation5 + $0x1c] sm:$0x1]
    %2473 = vrot.lane.b32.xlu0 %v2471, 64
    %v2474 = vpop.permute.xlu0 %2473
    %2476 = vst.msk [vmem:[#allocation6 + $0x1] sm:$0x1] %vm2452, %v2474
    %v2477 = vld [vmem:[#allocation5 + $0x1e] sm:$0x1]
    %2479 = vrot.lane.b32.xlu0 %v2477, 96
    %v2480 = vpop.permute.xlu0 %2479
    %2482 = vst.msk [vmem:[#allocation6 + $0x1] sm:$0x1] %vm2461, %v2480
    %v2483 = vld [vmem:[#allocation5 + $0x30] sm:$0x1]
    %2484 = vst.msk [vmem:[#allocation6 + $0x2] sm:$0x1] %vm2434, %v2483
    %v2485 = vld [vmem:[#allocation5 + $0x32] sm:$0x1]
    %2487 = vrot.lane.b32.xlu0 %v2485, 32
    %v2488 = vpop.permute.xlu0 %2487
    %2490 = vst.msk [vmem:[#allocation6 + $0x2] sm:$0x1] %vm2443, %v2488
    %v2491 = vld [vmem:[#allocation5 + $0x34] sm:$0x1]
    %2493 = vrot.lane.b32.xlu0 %v2491, 64
    %v2494 = vpop.permute.xlu0 %2493
    %2496 = vst.msk [vmem:[#allocation6 + $0x2] sm:$0x1] %vm2452, %v2494
    %v2497 = vld [vmem:[#allocation5 + $0x36] sm:$0x1]
    %2499 = vrot.lane.b32.xlu0 %v2497, 96
    %v2500 = vpop.permute.xlu0 %2499
    %2502 = vst.msk [vmem:[#allocation6 + $0x2] sm:$0x1] %vm2461, %v2500
    %v2503 = vld [vmem:[#allocation5 + $0x48] sm:$0x1]
    %2504 = vst.msk [vmem:[#allocation6 + $0x3] sm:$0x1] %vm2434, %v2503
    %v2505 = vld [vmem:[#allocation5 + $0x4a] sm:$0x1]
    %2507 = vrot.lane.b32.xlu0 %v2505, 32
    %v2508 = vpop.permute.xlu0 %2507
    %2510 = vst.msk [vmem:[#allocation6 + $0x3] sm:$0x1] %vm2443, %v2508
    %v2511 = vld [vmem:[#allocation5 + $0x4c] sm:$0x1]
    %2513 = vrot.lane.b32.xlu0 %v2511, 64
    %v2514 = vpop.permute.xlu0 %2513
    %2516 = vst.msk [vmem:[#allocation6 + $0x3] sm:$0x1] %vm2452, %v2514
    %v2517 = vld [vmem:[#allocation5 + $0x4e] sm:$0x1]
    %2519 = vrot.lane.b32.xlu0 %v2517, 96
    %v2520 = vpop.permute.xlu0 %2519
    %2522 = vst.msk [vmem:[#allocation6 + $0x3] sm:$0x1] %vm2461, %v2520
    %v2523 = vld [vmem:[#allocation5 + $0x90] sm:$0x1]
    %2524 = vst.msk [vmem:[#allocation6 + $0x4] sm:$0x1] %vm2434, %v2523
    %v2525 = vld [vmem:[#allocation5 + $0x92] sm:$0x1]
    %2527 = vrot.lane.b32.xlu0 %v2525, 32
    %v2528 = vpop.permute.xlu0 %2527
    %2530 = vst.msk [vmem:[#allocation6 + $0x4] sm:$0x1] %vm2443, %v2528
    %v2531 = vld [vmem:[#allocation5 + $0x94] sm:$0x1]
    %2533 = vrot.lane.b32.xlu0 %v2531, 64
    %v2534 = vpop.permute.xlu0 %2533
    %2536 = vst.msk [vmem:[#allocation6 + $0x4] sm:$0x1] %vm2452, %v2534
    %v2537 = vld [vmem:[#allocation5 + $0x96] sm:$0x1]
    %2539 = vrot.lane.b32.xlu0 %v2537, 96
    %v2540 = vpop.permute.xlu0 %2539
    %2542 = vst.msk [vmem:[#allocation6 + $0x4] sm:$0x1] %vm2461, %v2540
    %v2543 = vld [vmem:[#allocation5 + $0xa8] sm:$0x1]
    %2544 = vst.msk [vmem:[#allocation6 + $0x5] sm:$0x1] %vm2434, %v2543
    %v2545 = vld [vmem:[#allocation5 + $0xaa] sm:$0x1]
    %2547 = vrot.lane.b32.xlu0 %v2545, 32
    %v2548 = vpop.permute.xlu0 %2547
    %2550 = vst.msk [vmem:[#allocation6 + $0x5] sm:$0x1] %vm2443, %v2548
    %v2551 = vld [vmem:[#allocation5 + $0xac] sm:$0x1]
    %2553 = vrot.lane.b32.xlu0 %v2551, 64
    %v2554 = vpop.permute.xlu0 %2553
    %2556 = vst.msk [vmem:[#allocation6 + $0x5] sm:$0x1] %vm2452, %v2554
    %v2557 = vld [vmem:[#allocation5 + $0xae] sm:$0x1]
    %2559 = vrot.lane.b32.xlu0 %v2557, 96
    %v2560 = vpop.permute.xlu0 %2559
    %2562 = vst.msk [vmem:[#allocation6 + $0x5] sm:$0x1] %vm2461, %v2560
    %v2563 = vld [vmem:[#allocation5 + $0xc0] sm:$0x1]
    %2564 = vst.msk [vmem:[#allocation6 + $0x6] sm:$0x1] %vm2434, %v2563
    %v2565 = vld [vmem:[#allocation5 + $0xc2] sm:$0x1]
    %2567 = vrot.lane.b32.xlu0 %v2565, 32
    %v2568 = vpop.permute.xlu0 %2567
    %2570 = vst.msk [vmem:[#allocation6 + $0x6] sm:$0x1] %vm2443, %v2568
    %v2571 = vld [vmem:[#allocation5 + $0xc4] sm:$0x1]
    %2573 = vrot.lane.b32.xlu0 %v2571, 64
    %v2574 = vpop.permute.xlu0 %2573
    %2576 = vst.msk [vmem:[#allocation6 + $0x6] sm:$0x1] %vm2452, %v2574
    %v2577 = vld [vmem:[#allocation5 + $0xc6] sm:$0x1]
    %2579 = vrot.lane.b32.xlu0 %v2577, 96
    %v2580 = vpop.permute.xlu0 %2579
    %2582 = vst.msk [vmem:[#allocation6 + $0x6] sm:$0x1] %vm2461, %v2580
    %v2583 = vld [vmem:[#allocation5 + $0xd8] sm:$0x1]
    %2584 = vst.msk [vmem:[#allocation6 + $0x7] sm:$0x1] %vm2434, %v2583
    %v2585 = vld [vmem:[#allocation5 + $0xda] sm:$0x1]
    %2587 = vrot.lane.b32.xlu0 %v2585, 32
    %v2588 = vpop.permute.xlu0 %2587
    %2590 = vst.msk [vmem:[#allocation6 + $0x7] sm:$0x1] %vm2443, %v2588
    %v2591 = vld [vmem:[#allocation5 + $0xdc] sm:$0x1]
    %2593 = vrot.lane.b32.xlu0 %v2591, 64
    %v2594 = vpop.permute.xlu0 %2593
    %2596 = vst.msk [vmem:[#allocation6 + $0x7] sm:$0x1] %vm2452, %v2594
    %v2597 = vld [vmem:[#allocation5 + $0xde] sm:$0x1]
    %2599 = vrot.lane.b32.xlu0 %v2597, 96
    %v2600 = vpop.permute.xlu0 %2599
    %2602 = vst.msk [vmem:[#allocation6 + $0x7] sm:$0x1] %vm2461, %v2600
    %v2603 = vld [vmem:[#allocation6] sm:$0xff]
    %v2604 = vld [vmem:[%s5] sm:$0xff]
    %v2605 = vld [vmem:[%s5 + $0x8] sm:$0xff]
    %v2606 = vld [vmem:[%s5 + $0x10] sm:$0xff]
    %v2607 = vld [vmem:[%s5 + $0x18] sm:$0xff]
    %v2608 = vld [vmem:[%s5 + $0x20] sm:$0xff]
    %v2609 = vld [vmem:[%s5 + $0x28] sm:$0xff]
    %v2610 = vld [vmem:[%s5 + $0x30] sm:$0xff]
    %v2611 = vld [vmem:[%s5 + $0x38] sm:$0xff]
    %v2612 = vld [vmem:[%s5 + $0x40] sm:$0xff]
    %v2613 = vld [vmem:[%s5 + $0x48] sm:$0xff]
    %v2614 = vld [vmem:[%s5 + $0x50] sm:$0xff]
    %v2615 = vld [vmem:[%s5 + $0x58] sm:$0xff]
    %v2616 = vld [vmem:[%s5 + $0x60] sm:$0xff]
    %v2617 = vld [vmem:[%s5 + $0x68] sm:$0xff]
    %v2618 = vld [vmem:[%s5 + $0x70] sm:$0xff]
    %v2619 = vld [vmem:[%s5 + $0x78] sm:$0xff]
    %v2620 = vld [vmem:[%s5 + $0x80] sm:$0xff]
    %v2621 = vld [vmem:[%s5 + $0x88] sm:$0xff]
    %v2622 = vld [vmem:[%s5 + $0x90] sm:$0xff]
    %v2623 = vld [vmem:[%s5 + $0x98] sm:$0xff]
    %v2624 = vld [vmem:[%s5 + $0xa0] sm:$0xff]
    %v2625 = vld [vmem:[%s5 + $0xa8] sm:$0xff]
    %v2626 = vld [vmem:[%s5 + $0xb0] sm:$0xff]
    %v2627 = vld [vmem:[%s5 + $0xb8] sm:$0xff]
    %v2628 = vld [vmem:[%s5 + $0xc0] sm:$0xff]
    %v2629 = vld [vmem:[%s5 + $0xc8] sm:$0xff]
    %v2630 = vld [vmem:[%s5 + $0xd0] sm:$0xff]
    %v2631 = vld [vmem:[%s5 + $0xd8] sm:$0xff]
    %v2632 = vld [vmem:[%s5 + $0xe0] sm:$0xff]
    %v2633 = vld [vmem:[%s5 + $0xe8] sm:$0xff]
    %v2634 = vld [vmem:[%s5 + $0xf0] sm:$0xff]
    %v2635 = vld [vmem:[%s5 + $0xf8] sm:$0xff]
    %v2636 = vld [vmem:[%s5 + $0x100] sm:$0xff]
    %v2637 = vld [vmem:[%s5 + $0x108] sm:$0xff]
    %v2638 = vld [vmem:[%s5 + $0x110] sm:$0xff]
    %v2639 = vld [vmem:[%s5 + $0x118] sm:$0xff]
    %v2640 = vld [vmem:[%s5 + $0x120] sm:$0xff]
    %v2641 = vld [vmem:[%s5 + $0x128] sm:$0xff]
    %v2642 = vld [vmem:[%s5 + $0x130] sm:$0xff]
    %v2643 = vld [vmem:[%s5 + $0x138] sm:$0xff]
    %v2644 = vld [vmem:[%s5 + $0x140] sm:$0xff]
    %v2645 = vld [vmem:[%s5 + $0x148] sm:$0xff]
    %v2646 = vld [vmem:[%s5 + $0x150] sm:$0xff]
    %v2647 = vld [vmem:[%s5 + $0x158] sm:$0xff]
    %v2648 = vld [vmem:[%s5 + $0x160] sm:$0xff]
    %v2649 = vld [vmem:[%s5 + $0x168] sm:$0xff]
    %v2650 = vld [vmem:[%s5 + $0x170] sm:$0xff]
    %v2651 = vld [vmem:[%s5 + $0x178] sm:$0xff]
    %v2652 = vld [vmem:[%s5 + $0x180] sm:$0xff]
    %v2653 = vld [vmem:[%s5 + $0x188] sm:$0xff]
    %v2654 = vld [vmem:[%s5 + $0x190] sm:$0xff]
    %v2655 = vld [vmem:[%s5 + $0x198] sm:$0xff]
    %v2656 = vld [vmem:[%s5 + $0x1a0] sm:$0xff]
    %v2657 = vld [vmem:[%s5 + $0x1a8] sm:$0xff]
    %v2658 = vld [vmem:[%s5 + $0x1b0] sm:$0xff]
    %v2659 = vld [vmem:[%s5 + $0x1b8] sm:$0xff]
    %v2660 = vld [vmem:[%s5 + $0x1c0] sm:$0xff]
    %v2661 = vld [vmem:[%s5 + $0x1c8] sm:$0xff]
    %v2662 = vld [vmem:[%s5 + $0x1d0] sm:$0xff]
    %v2663 = vld [vmem:[%s5 + $0x1d8] sm:$0xff]
    %v2664 = vld [vmem:[%s5 + $0x1e0] sm:$0xff]
    %v2665 = vld [vmem:[%s5 + $0x1e8] sm:$0xff]
    %v2666 = vld [vmem:[%s5 + $0x1f0] sm:$0xff]
    %v2667 = vld [vmem:[%s5 + $0x1f8] sm:$0xff]
    %v2668 = vld [vmem:[%s5 + $0x200] sm:$0xff]
    %v2669 = vld [vmem:[%s5 + $0x208] sm:$0xff]
    %v2670 = vld [vmem:[%s5 + $0x210] sm:$0xff]
    %v2671 = vld [vmem:[%s5 + $0x218] sm:$0xff]
    %v2672 = vld [vmem:[%s5 + $0x220] sm:$0xff]
    %v2673 = vld [vmem:[%s5 + $0x228] sm:$0xff]
    %v2674 = vld [vmem:[%s5 + $0x230] sm:$0xff]
    %v2675 = vld [vmem:[%s5 + $0x238] sm:$0xff]
    %v2676 = vld [vmem:[%s5 + $0x240] sm:$0xff]
    %v2677 = vld [vmem:[%s5 + $0x248] sm:$0xff]
    %v2678 = vld [vmem:[%s5 + $0x250] sm:$0xff]
    %v2679 = vld [vmem:[%s5 + $0x258] sm:$0xff]
    %v2680 = vld [vmem:[%s5 + $0x260] sm:$0xff]
    %v2681 = vld [vmem:[%s5 + $0x268] sm:$0xff]
    %v2682 = vld [vmem:[%s5 + $0x270] sm:$0xff]
    %v2683 = vld [vmem:[%s5 + $0x278] sm:$0xff]
    %v2684 = vld [vmem:[%s5 + $0x280] sm:$0xff]
    %v2685 = vld [vmem:[%s5 + $0x288] sm:$0xff]
    %v2686 = vld [vmem:[%s5 + $0x290] sm:$0xff]
    %v2687 = vld [vmem:[%s5 + $0x298] sm:$0xff]
    %v2688 = vld [vmem:[%s5 + $0x2a0] sm:$0xff]
    %v2689 = vld [vmem:[%s5 + $0x2a8] sm:$0xff]
    %v2690 = vld [vmem:[%s5 + $0x2b0] sm:$0xff]
    %v2691 = vld [vmem:[%s5 + $0x2b8] sm:$0xff]
    %v2692 = vld [vmem:[%s5 + $0x2c0] sm:$0xff]
    %v2693 = vld [vmem:[%s5 + $0x2c8] sm:$0xff]
    %v2694 = vld [vmem:[%s5 + $0x2d0] sm:$0xff]
    %v2695 = vld [vmem:[%s5 + $0x2d8] sm:$0xff]
    %v2696 = vld [vmem:[%s5 + $0x2e0] sm:$0xff]
    %v2697 = vld [vmem:[%s5 + $0x2e8] sm:$0xff]
    %v2698 = vld [vmem:[%s5 + $0x2f0] sm:$0xff]
    %v2699 = vld [vmem:[%s5 + $0x2f8] sm:$0xff]
    %v2700 = vld [vmem:[%s5 + $0x300] sm:$0xff]
    %v2701 = vld [vmem:[%s5 + $0x308] sm:$0xff]
    %v2702 = vld [vmem:[%s5 + $0x310] sm:$0xff]
    %v2703 = vld [vmem:[%s5 + $0x318] sm:$0xff]
    %v2704 = vld [vmem:[%s5 + $0x320] sm:$0xff]
    %v2705 = vld [vmem:[%s5 + $0x328] sm:$0xff]
    %v2706 = vld [vmem:[%s5 + $0x330] sm:$0xff]
    %v2707 = vld [vmem:[%s5 + $0x338] sm:$0xff]
    %v2708 = vld [vmem:[%s5 + $0x340] sm:$0xff]
    %v2709 = vld [vmem:[%s5 + $0x348] sm:$0xff]
    %v2710 = vld [vmem:[%s5 + $0x350] sm:$0xff]
    %v2711 = vld [vmem:[%s5 + $0x358] sm:$0xff]
    %v2712 = vld [vmem:[%s5 + $0x360] sm:$0xff]
    %v2713 = vld [vmem:[%s5 + $0x368] sm:$0xff]
    %v2714 = vld [vmem:[%s5 + $0x370] sm:$0xff]
    %v2715 = vld [vmem:[%s5 + $0x378] sm:$0xff]
    %v2716 = vld [vmem:[%s5 + $0x380] sm:$0xff]
    %v2717 = vld [vmem:[%s5 + $0x388] sm:$0xff]
    %v2718 = vld [vmem:[%s5 + $0x390] sm:$0xff]
    %v2719 = vld [vmem:[%s5 + $0x398] sm:$0xff]
    %v2720 = vld [vmem:[%s5 + $0x3a0] sm:$0xff]
    %v2721 = vld [vmem:[%s5 + $0x3a8] sm:$0xff]
    %v2722 = vld [vmem:[%s5 + $0x3b0] sm:$0xff]
    %v2723 = vld [vmem:[%s5 + $0x3b8] sm:$0xff]
    %v2724 = vld [vmem:[%s5 + $0x3c0] sm:$0xff]
    %v2725 = vld [vmem:[%s5 + $0x3c8] sm:$0xff]
    %v2726 = vld [vmem:[%s5 + $0x3d0] sm:$0xff]
    %v2727 = vld [vmem:[%s5 + $0x3d8] sm:$0xff]
    %v2728 = vld [vmem:[%s5 + $0x3e0] sm:$0xff]
    %v2729 = vld [vmem:[%s5 + $0x3e8] sm:$0xff]
    %v2730 = vld [vmem:[%s5 + $0x3f0] sm:$0xff]
    %v2731 = vld [vmem:[%s5 + $0x3f8] sm:$0xff]
    %v2732 = vld [vmem:[%s6] sm:$0x1]
    %v2734 = vperm.slane %v2603, 0
    %v2735 = vperm.slane %v2603, 1
    %v2736 = vperm.slane %v2603, 2
    %v2737 = vperm.slane %v2603, 3
    %v2738 = vperm.slane %v2603, 4
    %v2739 = vperm.slane %v2603, 5
    %v2740 = vperm.slane %v2603, 6
    %v2741 = vperm.slane %v2603, 7
    %2750 = vmatpush.msra.mxu0 %v2619
    %2751 = vmatpush.msra.mxu0 %v2618
    %2752 = vmatpush.msra.mxu0 %v2617
    %2753 = vmatpush.msra.mxu0 %v2616
    %2754 = vmatpush.msra.mxu0 %v2615
    %2755 = vmatpush.msra.mxu0 %v2614
    %2756 = vmatpush.msra.mxu0 %v2613
    %2757 = vmatpush.msra.mxu0 %v2612
    %2758 = vmatpush.msra.mxu0 %v2611
    %2759 = vmatpush.msra.mxu0 %v2610
    %2760 = vmatpush.msra.mxu0 %v2609
    %2761 = vmatpush.msra.mxu0 %v2608
    %2762 = vmatpush.msra.mxu0 %v2607
    %2763 = vmatpush.msra.mxu0 %v2606
    %2764 = vmatpush.msra.mxu0 %v2605
    %2765 = vmatpush.msra.mxu0 %v2604
    %2766 = vmatmul.f32.gmra.mxu0 %v2734
    %v2767 = vpop.f32.mrf.mxu0
    %v2768 = vadd.f32 %v2732, %v2767
    %2769 = vdwg.mxu0
    %2770 = vmatpush.msra.mxu0 %v2635
    %2771 = vmatpush.msra.mxu0 %v2634
    %2772 = vmatpush.msra.mxu0 %v2633
    %2773 = vmatpush.msra.mxu0 %v2632
    %2774 = vmatpush.msra.mxu0 %v2631
    %2775 = vmatpush.msra.mxu0 %v2630
    %2776 = vmatpush.msra.mxu0 %v2629
    %2777 = vmatpush.msra.mxu0 %v2628
    %2778 = vmatpush.msra.mxu0 %v2627
    %2779 = vmatpush.msra.mxu0 %v2626
    %2780 = vmatpush.msra.mxu0 %v2625
    %2781 = vmatpush.msra.mxu0 %v2624
    %2782 = vmatpush.msra.mxu0 %v2623
    %2783 = vmatpush.msra.mxu0 %v2622
    %2784 = vmatpush.msra.mxu0 %v2621
    %2785 = vmatpush.msra.mxu0 %v2620
    %2786 = vmatmul.f32.gmra.mxu0 %v2735
    %v2787 = vpop.f32.mrf.mxu0
    %v2788 = vadd.f32 %v2768, %v2787
    %2789 = vdwg.mxu0
    %2790 = vmatpush.msra.mxu0 %v2651
    %2791 = vmatpush.msra.mxu0 %v2650
    %2792 = vmatpush.msra.mxu0 %v2649
    %2793 = vmatpush.msra.mxu0 %v2648
    %2794 = vmatpush.msra.mxu0 %v2647
    %2795 = vmatpush.msra.mxu0 %v2646
    %2796 = vmatpush.msra.mxu0 %v2645
    %2797 = vmatpush.msra.mxu0 %v2644
    %2798 = vmatpush.msra.mxu0 %v2643
    %2799 = vmatpush.msra.mxu0 %v2642
    %2800 = vmatpush.msra.mxu0 %v2641
    %2801 = vmatpush.msra.mxu0 %v2640
    %2802 = vmatpush.msra.mxu0 %v2639
    %2803 = vmatpush.msra.mxu0 %v2638
    %2804 = vmatpush.msra.mxu0 %v2637
    %2805 = vmatpush.msra.mxu0 %v2636
    %2806 = vmatmul.f32.gmra.mxu0 %v2736
    %v2807 = vpop.f32.mrf.mxu0
    %v2808 = vadd.f32 %v2788, %v2807
    %2809 = vdwg.mxu0
    %2810 = vmatpush.msra.mxu0 %v2667
    %2811 = vmatpush.msra.mxu0 %v2666
    %2812 = vmatpush.msra.mxu0 %v2665
    %2813 = vmatpush.msra.mxu0 %v2664
    %2814 = vmatpush.msra.mxu0 %v2663
    %2815 = vmatpush.msra.mxu0 %v2662
    %2816 = vmatpush.msra.mxu0 %v2661
    %2817 = vmatpush.msra.mxu0 %v2660
    %2818 = vmatpush.msra.mxu0 %v2659
    %2819 = vmatpush.msra.mxu0 %v2658
    %2820 = vmatpush.msra.mxu0 %v2657
    %2821 = vmatpush.msra.mxu0 %v2656
    %2822 = vmatpush.msra.mxu0 %v2655
    %2823 = vmatpush.msra.mxu0 %v2654
    %2824 = vmatpush.msra.mxu0 %v2653
    %2825 = vmatpush.msra.mxu0 %v2652
    %2826 = vmatmul.f32.gmra.mxu0 %v2737
    %v2827 = vpop.f32.mrf.mxu0
    %v2828 = vadd.f32 %v2808, %v2827
    %2829 = vdwg.mxu0
    %2830 = vmatpush.msra.mxu0 %v2683
    %2831 = vmatpush.msra.mxu0 %v2682
    %2832 = vmatpush.msra.mxu0 %v2681
    %2833 = vmatpush.msra.mxu0 %v2680
    %2834 = vmatpush.msra.mxu0 %v2679
    %2835 = vmatpush.msra.mxu0 %v2678
    %2836 = vmatpush.msra.mxu0 %v2677
    %2837 = vmatpush.msra.mxu0 %v2676
    %2838 = vmatpush.msra.mxu0 %v2675
    %2839 = vmatpush.msra.mxu0 %v2674
    %2840 = vmatpush.msra.mxu0 %v2673
    %2841 = vmatpush.msra.mxu0 %v2672
    %2842 = vmatpush.msra.mxu0 %v2671
    %2843 = vmatpush.msra.mxu0 %v2670
    %2844 = vmatpush.msra.mxu0 %v2669
    %2845 = vmatpush.msra.mxu0 %v2668
    %2846 = vmatmul.f32.gmra.mxu0 %v2738
    %v2847 = vpop.f32.mrf.mxu0
    %v2848 = vadd.f32 %v2828, %v2847
    %2849 = vdwg.mxu0
    %2850 = vmatpush.msra.mxu0 %v2699
    %2851 = vmatpush.msra.mxu0 %v2698
    %2852 = vmatpush.msra.mxu0 %v2697
    %2853 = vmatpush.msra.mxu0 %v2696
    %2854 = vmatpush.msra.mxu0 %v2695
    %2855 = vmatpush.msra.mxu0 %v2694
    %2856 = vmatpush.msra.mxu0 %v2693
    %2857 = vmatpush.msra.mxu0 %v2692
    %2858 = vmatpush.msra.mxu0 %v2691
    %2859 = vmatpush.msra.mxu0 %v2690
    %2860 = vmatpush.msra.mxu0 %v2689
    %2861 = vmatpush.msra.mxu0 %v2688
    %2862 = vmatpush.msra.mxu0 %v2687
    %2863 = vmatpush.msra.mxu0 %v2686
    %2864 = vmatpush.msra.mxu0 %v2685
    %2865 = vmatpush.msra.mxu0 %v2684
    %2866 = vmatmul.f32.gmra.mxu0 %v2739
    %v2867 = vpop.f32.mrf.mxu0
    %v2868 = vadd.f32 %v2848, %v2867
    %2869 = vdwg.mxu0
    %2870 = vmatpush.msra.mxu0 %v2715
    %2871 = vmatpush.msra.mxu0 %v2714
    %2872 = vmatpush.msra.mxu0 %v2713
    %2873 = vmatpush.msra.mxu0 %v2712
    %2874 = vmatpush.msra.mxu0 %v2711
    %2875 = vmatpush.msra.mxu0 %v2710
    %2876 = vmatpush.msra.mxu0 %v2709
    %2877 = vmatpush.msra.mxu0 %v2708
    %2878 = vmatpush.msra.mxu0 %v2707
    %2879 = vmatpush.msra.mxu0 %v2706
    %2880 = vmatpush.msra.mxu0 %v2705
    %2881 = vmatpush.msra.mxu0 %v2704
    %2882 = vmatpush.msra.mxu0 %v2703
    %2883 = vmatpush.msra.mxu0 %v2702
    %2884 = vmatpush.msra.mxu0 %v2701
    %2885 = vmatpush.msra.mxu0 %v2700
    %2886 = vmatmul.f32.gmra.mxu0 %v2740
    %v2887 = vpop.f32.mrf.mxu0
    %v2888 = vadd.f32 %v2868, %v2887
    %2889 = vdwg.mxu0
    %2890 = vmatpush.msra.mxu0 %v2731
    %2891 = vmatpush.msra.mxu0 %v2730
    %2892 = vmatpush.msra.mxu0 %v2729
    %2893 = vmatpush.msra.mxu0 %v2728
    %2894 = vmatpush.msra.mxu0 %v2727
    %2895 = vmatpush.msra.mxu0 %v2726
    %2896 = vmatpush.msra.mxu0 %v2725
    %2897 = vmatpush.msra.mxu0 %v2724
    %2898 = vmatpush.msra.mxu0 %v2723
    %2899 = vmatpush.msra.mxu0 %v2722
    %2900 = vmatpush.msra.mxu0 %v2721
    %2901 = vmatpush.msra.mxu0 %v2720
    %2902 = vmatpush.msra.mxu0 %v2719
    %2903 = vmatpush.msra.mxu0 %v2718
    %2904 = vmatpush.msra.mxu0 %v2717
    %2905 = vmatpush.msra.mxu0 %v2716
    %2906 = vmatmul.f32.gmra.mxu0 %v2741
    %v2907 = vpop.f32.mrf.mxu0
    %v2908 = vadd.f32 %v2888, %v2907
    %2909 = vdwg.mxu0
    %v2910 = vmax.f32 %v2908, 0.0
    %v2911 = vld [vmem:[%s7] sm:$0xff]
    %v2912 = vld [vmem:[%s7 + $0x8] sm:$0xff]
    %v2913 = vld [vmem:[%s7 + $0x10] sm:$0xff]
    %v2914 = vld [vmem:[%s7 + $0x18] sm:$0xff]
    %v2915 = vld [vmem:[%s7 + $0x20] sm:$0xff]
    %v2916 = vld [vmem:[%s7 + $0x28] sm:$0xff]
    %v2917 = vld [vmem:[%s7 + $0x30] sm:$0xff]
    %v2918 = vld [vmem:[%s7 + $0x38] sm:$0xff]
    %v2919 = vld [vmem:[%s7 + $0x40] sm:$0xff]
    %v2920 = vld [vmem:[%s7 + $0x48] sm:$0xff]
    %v2921 = vld [vmem:[%s7 + $0x50] sm:$0xff]
    %v2922 = vld [vmem:[%s7 + $0x58] sm:$0xff]
    %v2923 = vld [vmem:[%s7 + $0x60] sm:$0xff]
    %v2924 = vld [vmem:[%s7 + $0x68] sm:$0xff]
    %v2925 = vld [vmem:[%s7 + $0x70] sm:$0xff]
    %v2926 = vld [vmem:[%s7 + $0x78] sm:$0xff]
    %v2927 = vld [vmem:[%s8] sm:$0x1]
    %2928 = vmatpush.msra.mxu0 %v2926
    %2929 = vmatpush.msra.mxu0 %v2925
    %2930 = vmatpush.msra.mxu0 %v2924
    %2931 = vmatpush.msra.mxu0 %v2923
    %2932 = vmatpush.msra.mxu0 %v2922
    %2933 = vmatpush.msra.mxu0 %v2921
    %2934 = vmatpush.msra.mxu0 %v2920
    %2935 = vmatpush.msra.mxu0 %v2919
    %2936 = vmatpush.msra.mxu0 %v2918
    %2937 = vmatpush.msra.mxu0 %v2917
    %2938 = vmatpush.msra.mxu0 %v2916
    %2939 = vmatpush.msra.mxu0 %v2915
    %2940 = vmatpush.msra.mxu0 %v2914
    %2941 = vmatpush.msra.mxu0 %v2913
    %2942 = vmatpush.msra.mxu0 %v2912
    %2943 = vmatpush.msra.mxu0 %v2911
    %2944 = vmatmul.f32.gmra.mxu0 %v2910
    %v2945 = vpop.f32.mrf.mxu0
    %v2946 = vadd.f32 %v2927, %v2945
    %2947 = vdwg.mxu0
    %vm2948 = vcmask 73728
    %2949 = vst.msk [vmem:[#allocation7] sm:$0x1] %vm2948, %v2946
    // Predicated region
    $region38: #{net_forward.1} parent=1 // pred_check
      _
    $region39: #{net_forward.1} parent=1 // pred_check_branch
      %2951 = sbr.rel (0) target = $region41
    $region40: #{net_forward.1} parent=1 // pred_region
      %2953 = vsyncadd [#allocation8], 0
      %s2955 = sshll.u32 [#allocation7], 4
      %s2956 = int_to_ptr.vmem [resolvable:$true] %s2955
      %s2957 = sshll.u32 %s9, 4
      %s2958 = int_to_ptr.hbm [resolvable:$true] %s2957
      %2960 = dma.vmem_to_hbm [thread:$0]  %s2956, 16, %s2958, [#allocation8]
    $region41: #{net_forward.1} parent=1 // pred_fallthru
      _
    // Predicated region
    $region42: #{net_forward.1} parent=1 // pred_check
      _
    $region43: #{net_forward.1} parent=1 // pred_check_branch
      %2962 = sbr.rel (0) target = $region45
    $region44: #{net_forward.1} parent=1 // pred_region
      %2964 = dma.done [#allocation8], 16
    $region45: #{net_forward.1} parent=1 // pred_fallthru
      _
    %2965 = vsyncpa [#allocation8], 1

</llo_original>
